<compile_context>
chip_gen: v7x
topology: tpu7x:2x2x1
jax: 0.10.0
libtpu: 0.0.40
codegen_flags: <defaults>
</compile_context>

<pallas_src>
import math
from functools import partial

import jax
import jax.numpy as jnp
import numpy as np
from jax.experimental import pallas as pl
from jax.experimental.pallas import tpu as pltpu


def _to_rgb_kernel(*refs, W, C, num_layers, has_skip, cdt):
    if has_skip:
        (x_ref, mask_ref, w1_ref, b1_ref, w2_ref, b2_ref,
         wu_ref, skip_ref, out_ref) = refs
    else:
        (x_ref, mask_ref, w1_ref, b1_ref, w2_ref, b2_ref, out_ref) = refs

    L = x_ref.shape[-1]                 # nb * H * W lanes (multiple of 128 -> unmasked vst)

    def conv3x3(h, w_ref):
        # h: (Cin, L) f32, unpadded flat layout (rows of W; nb images concatenated on lanes).
        # 9 direct tap matmuls accumulated in f32 -- no im2col staging buffer.
        # Each tap is a static pltpu.roll of the flat activation; any wrapped-in garbage
        # lands ONLY where mask_ref[k] == 0 (per-tap boundary mask), which is what keeps
        # the roll trick correct for 3x3 taps.
        acc = None
        for dy in range(3):
            for dx in range(3):
                k = dy * 3 + dx
                off = (dy - 1) * W + (dx - 1)
                if off == 0:
                    tap = h
                else:
                    tap = pltpu.roll(h, (-off) % L, axis=1) * mask_ref[k:k + 1, :]
                t = jnp.dot(w_ref[k], tap.astype(cdt),
                            preferred_element_type=jnp.float32)
                acc = t if acc is None else acc + t
        return acc

    h = x_ref[...].astype(jnp.float32)                       # (C, L)
    # Hoisted out of the unrolled layer loop (JAX does not CSE broadcast_in_dim).
    b1 = jnp.broadcast_to(b1_ref[...], (C, L))

    # (num_layers - 1) ConvLayers; the PyTorch module repeats the SAME ConvLayer object,
    # so all of them share w1/b1: EqualConv2d(3x3) + Bias + LeakyReLU(0.2).
    # TODO(synk): switch to lax.fori_loop(..., unroll=True) with h in a VMEM scratch if
    #             num_layers grows beyond ~4 (vreg pressure / code size of a full unroll).
    for _ in range(num_layers - 1):
        y = conv3x3(h, w1_ref) + b1
        h = jnp.where(y >= 0, y, 0.2 * y)                    # LeakyReLU(0.2), f32 VPU

    # Final ConvLayer: 1x1 EqualConv2d + Bias, no activation.
    rgb = jnp.dot(w2_ref[...], h.astype(cdt), preferred_element_type=jnp.float32)
    rgb = rgb + jnp.broadcast_to(b2_ref[...], (3, L))

    if has_skip:
        # EqualConv2d(3, 3, 3, 'up') on the nearest-upsampled skip, no bias.
        rgb = rgb + conv3x3(skip_ref[...].astype(jnp.float32), wu_ref)

    out_ref[...] = rgb.astype(out_ref.dtype)                 # lane-dense interior-only store


def _tap_masks(H, W, nb):
    """(9, nb*H*W) f32: mask[k, p] == 1 iff output pixel p's tap k reads an in-bounds
    spatial neighbour (so the lane-rolled tap value at p is valid)."""
    m = np.zeros((9, H, W), np.float32)
    for dy in range(3):
        for dx in range(3):
            k = dy * 3 + dx
            i0, i1 = max(0, 1 - dy), min(H, H + 1 - dy)
            j0, j1 = max(0, 1 - dx), min(W, W + 1 - dx)
            m[k, i0:i1, j0:j1] = 1.0
    return np.tile(m.reshape(9, 1, H * W), (1, nb, 1)).reshape(9, nb * H * W)


def to_rgb(x, skip_rgb, params, *, num_layers, batch_tile=None, use_bf16=True):
    """ToRGB.forward. x: (N, C, H, W); skip_rgb: (N, 3, H//2, W//2) or None.
    Returns (rgb (N, 3, H, W), empty_noises)."""
    N, C, H, W = x.shape
    HW = H * W
    has_skip = skip_rgb is not None
    nb = N if batch_tile is None else batch_tile
    assert N % nb == 0
    L = nb * HW
    assert L % 128 == 0 or nb == N, "pick batch_tile (or pad H*W) so nb*H*W is lane-dense"

    cdt = jnp.bfloat16 if use_bf16 else jnp.float32          # MXU operand dtype

    # Fold equalized-lr scales; per-tap (Cout, Cin) weight matrices, tap k = dy*3 + dx.
    s1 = 1.0 / math.sqrt(C * 9)
    w1t = (jnp.transpose(params["w1"], (2, 3, 0, 1)) * s1).reshape(9, C, C).astype(cdt)
    b1 = params["b1"].reshape(C, 1).astype(jnp.float32)
    s2 = 1.0 / math.sqrt(C * 1)
    w2m = (params["w2"].reshape(3, C) * s2).astype(cdt)
    b2 = params["b2"].reshape(3, 1).astype(jnp.float32)

    # Channel-major lane-dense layout: (C, N*H*W), image n at lanes [n*HW, (n+1)*HW).
    x2 = jnp.transpose(x.reshape(N, C, HW), (1, 0, 2)).reshape(C, N * HW)
    masks = jnp.asarray(_tap_masks(H, W, nb))

    in_specs = [
        pl.BlockSpec((C, L), lambda g: (0, g)),
        pl.BlockSpec((9, L), lambda g: (0, 0)),
        pl.BlockSpec((9, C, C), lambda g: (0, 0, 0)),
        pl.BlockSpec((C, 1), lambda g: (0, 0)),
        pl.BlockSpec((3, C), lambda g: (0, 0)),
        pl.BlockSpec((3, 1), lambda g: (0, 0)),
    ]
    args = [x2, masks, w1t, b1, w2m, b2]

    if has_skip:
        su = 1.0 / math.sqrt(3 * 9)
        wut = (jnp.transpose(params["wu"], (2, 3, 0, 1)) * su).reshape(9, 3, 3).astype(cdt)
        # nearest 2x upsample of the tiny 3-channel skip done wrapper-side (see TODO above).
        sk = jnp.repeat(jnp.repeat(skip_rgb, 2, axis=2), 2, axis=3).astype(jnp.float32)
        sk2 = jnp.transpose(sk.reshape(N, 3, HW), (1, 0, 2)).reshape(3, N * HW)
        in_specs += [pl.BlockSpec((9, 3, 3), lambda g: (0, 0, 0)),
                     pl.BlockSpec((3, L), lambda g: (0, g))]
        args += [wut, sk2]

    kernel = partial(_to_rgb_kernel, W=W, C=C, num_layers=num_layers,
                     has_skip=has_skip, cdt=cdt)

    out2 = pl.pallas_call(
        kernel,
        out_shape=jax.ShapeDtypeStruct((3, N * HW), x.dtype),
        grid=(N // nb,),
        in_specs=in_specs,
        out_specs=pl.BlockSpec((3, L), lambda g: (0, g)),
        compiler_params=pltpu.CompilerParams(dimension_semantics=("parallel",)),
    )(*args)

    rgb = jnp.transpose(out2.reshape(3, N, H, W), (1, 0, 2, 3))
    # noise_injection_type='none' -> the module's "noises" output is always empty.
    return rgb, jnp.zeros((0,), x.dtype)


def init_params(key, in_channels):
    # EqualConv2d weights ~ randn (as in __init__); biases are zero at init but we use
    # small random values so the bias path is actually exercised by the check.
    k1, k2, k3, k4, k5 = jax.random.split(key, 5)
    return {
        "w1": jax.random.normal(k1, (in_channels, in_channels, 3, 3), jnp.float32),
        "b1": 0.1 * jax.random.normal(k2, (in_channels,), jnp.float32),
        "w2": jax.random.normal(k3, (3, in_channels, 1, 1), jnp.float32),
        "b2": 0.1 * jax.random.normal(k4, (3,), jnp.float32),
        "wu": jax.random.normal(k5, (3, 3, 3, 3), jnp.float32),
    }


# ---- pure-JAX reference for verification ----
def to_rgb_ref(x, skip_rgb, params, num_layers):
    N, C, H, W = x.shape
    dn = ("NCHW", "OIHW", "NCHW")
    s1 = 1.0 / math.sqrt(C * 9)
    h = x
    for _ in range(num_layers - 1):
        y = jax.lax.conv_general_dilated(h, params["w1"] * s1, (1, 1), "SAME",
                                         dimension_numbers=dn)
        y = y + params["b1"].reshape(1, C, 1, 1)
        h = jnp.where(y >= 0, y, 0.2 * y)
    s2 = 1.0 / math.sqrt(C * 1)
    rgb = jax.lax.conv_general_dilated(h, params["w2"] * s2, (1, 1), "VALID",
                                       dimension_numbers=dn)
    rgb = rgb + params["b2"].reshape(1, 3, 1, 1)
    if skip_rgb is not None:
        up = jnp.repeat(jnp.repeat(skip_rgb, 2, axis=2), 2, axis=3)
        su = 1.0 / math.sqrt(3 * 9)
        rgb = rgb + jax.lax.conv_general_dilated(up, params["wu"] * su, (1, 1), "SAME",
                                                 dimension_numbers=dn)
    return rgb


if __name__ == "__main__":
    key = jax.random.PRNGKey(0)
    kx, ks, kp = jax.random.split(key, 3)

    N, C, H, W = 2, 4, 16, 16
    NUM_LAYERS = 3
    params = init_params(kp, C)
    x = jax.random.normal(kx, (N, C, H, W), jnp.float32)
    skip_rgb = jax.random.normal(ks, (N, 3, H // 2, W // 2), jnp.float32)

    ref_skip = to_rgb_ref(x, skip_rgb, params, NUM_LAYERS)
    ref_noskip = to_rgb_ref(x, None, params, NUM_LAYERS)

    # f32 matmul path, one image per grid step (grid=(2,), skip branch) -- exact check.
    out, _ = to_rgb(x, skip_rgb, params, num_layers=NUM_LAYERS,
                    batch_tile=1, use_bf16=False)
    out = jax.block_until_ready(out)
    np.testing.assert_allclose(np.asarray(out), np.asarray(ref_skip), rtol=1e-4, atol=1e-4)

    # f32 path, both images batched on the lane axis (512-lane matmuls), no skip -- exact.
    out_ns, _ = to_rgb(x, None, params, num_layers=NUM_LAYERS,
                       batch_tile=2, use_bf16=False)
    out_ns = jax.block_until_ready(out_ns)
    np.testing.assert_allclose(np.asarray(out_ns), np.asarray(ref_noskip), rtol=1e-4, atol=1e-4)

    # bf16-MXU path (v6e/v7x): bf16 operands, f32 accumulation -> looser tolerance.
    out_bf, _ = to_rgb(x, skip_rgb, params, num_layers=NUM_LAYERS,
                       batch_tile=2, use_bf16=True)
    out_bf = jax.block_until_ready(out_bf)
    np.testing.assert_allclose(np.asarray(out_bf), np.asarray(ref_skip), rtol=5e-2, atol=5e-2)

    print("KERNEL_OK")
</pallas_src>

<mosaic_0001>
module attributes {stable_mosaic.version = 11 : i64} {
  func.func @_to_rgb_kernel(%arg0: i32, %arg1: memref<4x256xf32, #tpu.memory_space<vmem>>, %arg2: memref<9x256xf32, #tpu.memory_space<vmem>>, %arg3: memref<9x4x4xf32, #tpu.memory_space<vmem>>, %arg4: memref<4x1xf32, #tpu.memory_space<vmem>>, %arg5: memref<3x4xf32, #tpu.memory_space<vmem>>, %arg6: memref<3x1xf32, #tpu.memory_space<vmem>>, %arg7: memref<9x3x3xf32, #tpu.memory_space<vmem>>, %arg8: memref<3x256xf32, #tpu.memory_space<vmem>>, %arg9: memref<3x256xf32, #tpu.memory_space<vmem>>) attributes {dimension_semantics = [#tpu.dimension_semantics<parallel>], iteration_bounds = array<i64: 2>, scalar_prefetch = 0 : i64, scratch_operands = 0 : i64, tpu.core_type = #tpu.core_type<tc>, window_params = [{transform_indices = @transform_0, window_bounds = array<i64: 4, 256>}, {pipeline_mode = #tpu.pipeline_mode<synchronous>, transform_indices = @transform_1, window_bounds = array<i64: 9, 256>}, {pipeline_mode = #tpu.pipeline_mode<synchronous>, transform_indices = @transform_2, window_bounds = array<i64: 9, 4, 4>}, {pipeline_mode = #tpu.pipeline_mode<synchronous>, transform_indices = @transform_3, window_bounds = array<i64: 4, 1>}, {pipeline_mode = #tpu.pipeline_mode<synchronous>, transform_indices = @transform_4, window_bounds = array<i64: 3, 4>}, {pipeline_mode = #tpu.pipeline_mode<synchronous>, transform_indices = @transform_5, window_bounds = array<i64: 3, 1>}, {pipeline_mode = #tpu.pipeline_mode<synchronous>, transform_indices = @transform_6, window_bounds = array<i64: 9, 3, 3>}, {transform_indices = @transform_7, window_bounds = array<i64: 3, 256>}, {transform_indices = @transform_8, window_bounds = array<i64: 3, 256>}]} {
    %c0 = arith.constant 0 : index
    %c0_0 = arith.constant 0 : index
    %0 = vector.load %arg1[%c0, %c0_0] : memref<4x256xf32, #tpu.memory_space<vmem>>, vector<4x256xf32>
    %c0_1 = arith.constant 0 : index
    %c0_2 = arith.constant 0 : index
    %1 = vector.load %arg4[%c0_1, %c0_2] : memref<4x1xf32, #tpu.memory_space<vmem>>, vector<4x1xf32>
    %2 = vector.shape_cast %1 : vector<4x1xf32> to vector<4x1xf32>
    %3 = vector.broadcast %2 : vector<4x1xf32> to vector<4x256xf32>
    %c17_i32 = arith.constant 17 : i32
    %4 = tpu.dynamic_rotate %0 by %c17_i32 dim 1 : vector<4x256xf32>, i32 -> vector<4x256xf32>
    %c0_3 = arith.constant 0 : index
    %c0_4 = arith.constant 0 : index
    %5 = vector.load %arg2[%c0_3, %c0_4] : memref<9x256xf32, #tpu.memory_space<vmem>>, vector<1x256xf32>
    %6 = vector.broadcast %5 : vector<1x256xf32> to vector<4x256xf32>
    %7 = arith.mulf %4, %6 : vector<4x256xf32>
    %c0_5 = arith.constant 0 : index
    %c0_6 = arith.constant 0 : index
    %c0_7 = arith.constant 0 : index
    %8 = vector.load %arg3[%c0_5, %c0_6, %c0_7] : memref<9x4x4xf32, #tpu.memory_space<vmem>>, vector<1x4x4xf32>
    %9 = vector.shape_cast %8 : vector<1x4x4xf32> to vector<4x4xf32>
    %cst = arith.constant dense<0.000000e+00> : vector<4x256xf32>
    %10 = tpu.matmul %9, %7, %cst {dimension_numbers = #tpu.dot_dimension_numbers<[1], [0], [0], [1], [0, 0, 1, 1], [], []>} : vector<4x4xf32>, vector<4x256xf32>, vector<4x256xf32> -> vector<4x256xf32>
    %c16_i32 = arith.constant 16 : i32
    %11 = tpu.dynamic_rotate %0 by %c16_i32 dim 1 : vector<4x256xf32>, i32 -> vector<4x256xf32>
    %c1 = arith.constant 1 : index
    %c0_8 = arith.constant 0 : index
    %12 = vector.load %arg2[%c1, %c0_8] : memref<9x256xf32, #tpu.memory_space<vmem>>, vector<1x256xf32>
    %13 = vector.broadcast %12 : vector<1x256xf32> to vector<4x256xf32>
    %14 = arith.mulf %11, %13 : vector<4x256xf32>
    %c1_9 = arith.constant 1 : index
    %c0_10 = arith.constant 0 : index
    %c0_11 = arith.constant 0 : index
    %15 = vector.load %arg3[%c1_9, %c0_10, %c0_11] : memref<9x4x4xf32, #tpu.memory_space<vmem>>, vector<1x4x4xf32>
    %16 = vector.shape_cast %15 : vector<1x4x4xf32> to vector<4x4xf32>
    %cst_12 = arith.constant dense<0.000000e+00> : vector<4x256xf32>
    %17 = tpu.matmul %16, %14, %cst_12 {dimension_numbers = #tpu.dot_dimension_numbers<[1], [0], [0], [1], [0, 0, 1, 1], [], []>} : vector<4x4xf32>, vector<4x256xf32>, vector<4x256xf32> -> vector<4x256xf32>
    %18 = arith.addf %10, %17 : vector<4x256xf32>
    %c15_i32 = arith.constant 15 : i32
    %19 = tpu.dynamic_rotate %0 by %c15_i32 dim 1 : vector<4x256xf32>, i32 -> vector<4x256xf32>
    %c2 = arith.constant 2 : index
    %c0_13 = arith.constant 0 : index
    %20 = vector.load %arg2[%c2, %c0_13] : memref<9x256xf32, #tpu.memory_space<vmem>>, vector<1x256xf32>
    %21 = vector.broadcast %20 : vector<1x256xf32> to vector<4x256xf32>
    %22 = arith.mulf %19, %21 : vector<4x256xf32>
    %c2_14 = arith.constant 2 : index
    %c0_15 = arith.constant 0 : index
    %c0_16 = arith.constant 0 : index
    %23 = vector.load %arg3[%c2_14, %c0_15, %c0_16] : memref<9x4x4xf32, #tpu.memory_space<vmem>>, vector<1x4x4xf32>
    %24 = vector.shape_cast %23 : vector<1x4x4xf32> to vector<4x4xf32>
    %cst_17 = arith.constant dense<0.000000e+00> : vector<4x256xf32>
    %25 = tpu.matmul %24, %22, %cst_17 {dimension_numbers = #tpu.dot_dimension_numbers<[1], [0], [0], [1], [0, 0, 1, 1], [], []>} : vector<4x4xf32>, vector<4x256xf32>, vector<4x256xf32> -> vector<4x256xf32>
    %26 = arith.addf %18, %25 : vector<4x256xf32>
    %c1_i32 = arith.constant 1 : i32
    %27 = tpu.dynamic_rotate %0 by %c1_i32 dim 1 : vector<4x256xf32>, i32 -> vector<4x256xf32>
    %c3 = arith.constant 3 : index
    %c0_18 = arith.constant 0 : index
    %28 = vector.load %arg2[%c3, %c0_18] : memref<9x256xf32, #tpu.memory_space<vmem>>, vector<1x256xf32>
    %29 = vector.broadcast %28 : vector<1x256xf32> to vector<4x256xf32>
    %30 = arith.mulf %27, %29 : vector<4x256xf32>
    %c3_19 = arith.constant 3 : index
    %c0_20 = arith.constant 0 : index
    %c0_21 = arith.constant 0 : index
    %31 = vector.load %arg3[%c3_19, %c0_20, %c0_21] : memref<9x4x4xf32, #tpu.memory_space<vmem>>, vector<1x4x4xf32>
    %32 = vector.shape_cast %31 : vector<1x4x4xf32> to vector<4x4xf32>
    %cst_22 = arith.constant dense<0.000000e+00> : vector<4x256xf32>
    %33 = tpu.matmul %32, %30, %cst_22 {dimension_numbers = #tpu.dot_dimension_numbers<[1], [0], [0], [1], [0, 0, 1, 1], [], []>} : vector<4x4xf32>, vector<4x256xf32>, vector<4x256xf32> -> vector<4x256xf32>
    %34 = arith.addf %26, %33 : vector<4x256xf32>
    %c4 = arith.constant 4 : index
    %c0_23 = arith.constant 0 : index
    %c0_24 = arith.constant 0 : index
    %35 = vector.load %arg3[%c4, %c0_23, %c0_24] : memref<9x4x4xf32, #tpu.memory_space<vmem>>, vector<1x4x4xf32>
    %36 = vector.shape_cast %35 : vector<1x4x4xf32> to vector<4x4xf32>
    %cst_25 = arith.constant dense<0.000000e+00> : vector<4x256xf32>
    %37 = tpu.matmul %36, %0, %cst_25 {dimension_numbers = #tpu.dot_dimension_numbers<[1], [0], [0], [1], [0, 0, 1, 1], [], []>} : vector<4x4xf32>, vector<4x256xf32>, vector<4x256xf32> -> vector<4x256xf32>
    %38 = arith.addf %34, %37 : vector<4x256xf32>
    %c255_i32 = arith.constant 255 : i32
    %39 = tpu.dynamic_rotate %0 by %c255_i32 dim 1 : vector<4x256xf32>, i32 -> vector<4x256xf32>
    %c5 = arith.constant 5 : index
    %c0_26 = arith.constant 0 : index
    %40 = vector.load %arg2[%c5, %c0_26] : memref<9x256xf32, #tpu.memory_space<vmem>>, vector<1x256xf32>
    %41 = vector.broadcast %40 : vector<1x256xf32> to vector<4x256xf32>
    %42 = arith.mulf %39, %41 : vector<4x256xf32>
    %c5_27 = arith.constant 5 : index
    %c0_28 = arith.constant 0 : index
    %c0_29 = arith.constant 0 : index
    %43 = vector.load %arg3[%c5_27, %c0_28, %c0_29] : memref<9x4x4xf32, #tpu.memory_space<vmem>>, vector<1x4x4xf32>
    %44 = vector.shape_cast %43 : vector<1x4x4xf32> to vector<4x4xf32>
    %cst_30 = arith.constant dense<0.000000e+00> : vector<4x256xf32>
    %45 = tpu.matmul %44, %42, %cst_30 {dimension_numbers = #tpu.dot_dimension_numbers<[1], [0], [0], [1], [0, 0, 1, 1], [], []>} : vector<4x4xf32>, vector<4x256xf32>, vector<4x256xf32> -> vector<4x256xf32>
    %46 = arith.addf %38, %45 : vector<4x256xf32>
    %c241_i32 = arith.constant 241 : i32
    %47 = tpu.dynamic_rotate %0 by %c241_i32 dim 1 : vector<4x256xf32>, i32 -> vector<4x256xf32>
    %c6 = arith.constant 6 : index
    %c0_31 = arith.constant 0 : index
    %48 = vector.load %arg2[%c6, %c0_31] : memref<9x256xf32, #tpu.memory_space<vmem>>, vector<1x256xf32>
    %49 = vector.broadcast %48 : vector<1x256xf32> to vector<4x256xf32>
    %50 = arith.mulf %47, %49 : vector<4x256xf32>
    %c6_32 = arith.constant 6 : index
    %c0_33 = arith.constant 0 : index
    %c0_34 = arith.constant 0 : index
    %51 = vector.load %arg3[%c6_32, %c0_33, %c0_34] : memref<9x4x4xf32, #tpu.memory_space<vmem>>, vector<1x4x4xf32>
    %52 = vector.shape_cast %51 : vector<1x4x4xf32> to vector<4x4xf32>
    %cst_35 = arith.constant dense<0.000000e+00> : vector<4x256xf32>
    %53 = tpu.matmul %52, %50, %cst_35 {dimension_numbers = #tpu.dot_dimension_numbers<[1], [0], [0], [1], [0, 0, 1, 1], [], []>} : vector<4x4xf32>, vector<4x256xf32>, vector<4x256xf32> -> vector<4x256xf32>
    %54 = arith.addf %46, %53 : vector<4x256xf32>
    %c240_i32 = arith.constant 240 : i32
    %55 = tpu.dynamic_rotate %0 by %c240_i32 dim 1 : vector<4x256xf32>, i32 -> vector<4x256xf32>
    %c7 = arith.constant 7 : index
    %c0_36 = arith.constant 0 : index
    %56 = vector.load %arg2[%c7, %c0_36] : memref<9x256xf32, #tpu.memory_space<vmem>>, vector<1x256xf32>
    %57 = vector.broadcast %56 : vector<1x256xf32> to vector<4x256xf32>
    %58 = arith.mulf %55, %57 : vector<4x256xf32>
    %c7_37 = arith.constant 7 : index
    %c0_38 = arith.constant 0 : index
    %c0_39 = arith.constant 0 : index
    %59 = vector.load %arg3[%c7_37, %c0_38, %c0_39] : memref<9x4x4xf32, #tpu.memory_space<vmem>>, vector<1x4x4xf32>
    %60 = vector.shape_cast %59 : vector<1x4x4xf32> to vector<4x4xf32>
    %cst_40 = arith.constant dense<0.000000e+00> : vector<4x256xf32>
    %61 = tpu.matmul %60, %58, %cst_40 {dimension_numbers = #tpu.dot_dimension_numbers<[1], [0], [0], [1], [0, 0, 1, 1], [], []>} : vector<4x4xf32>, vector<4x256xf32>, vector<4x256xf32> -> vector<4x256xf32>
    %62 = arith.addf %54, %61 : vector<4x256xf32>
    %c239_i32 = arith.constant 239 : i32
    %63 = tpu.dynamic_rotate %0 by %c239_i32 dim 1 : vector<4x256xf32>, i32 -> vector<4x256xf32>
    %c8 = arith.constant 8 : index
    %c0_41 = arith.constant 0 : index
    %64 = vector.load %arg2[%c8, %c0_41] : memref<9x256xf32, #tpu.memory_space<vmem>>, vector<1x256xf32>
    %65 = vector.broadcast %64 : vector<1x256xf32> to vector<4x256xf32>
    %66 = arith.mulf %63, %65 : vector<4x256xf32>
    %c8_42 = arith.constant 8 : index
    %c0_43 = arith.constant 0 : index
    %c0_44 = arith.constant 0 : index
    %67 = vector.load %arg3[%c8_42, %c0_43, %c0_44] : memref<9x4x4xf32, #tpu.memory_space<vmem>>, vector<1x4x4xf32>
    %68 = vector.shape_cast %67 : vector<1x4x4xf32> to vector<4x4xf32>
    %cst_45 = arith.constant dense<0.000000e+00> : vector<4x256xf32>
    %69 = tpu.matmul %68, %66, %cst_45 {dimension_numbers = #tpu.dot_dimension_numbers<[1], [0], [0], [1], [0, 0, 1, 1], [], []>} : vector<4x4xf32>, vector<4x256xf32>, vector<4x256xf32> -> vector<4x256xf32>
    %70 = arith.addf %62, %69 : vector<4x256xf32>
    %71 = arith.addf %70, %3 : vector<4x256xf32>
    %cst_46 = arith.constant 0.000000e+00 : f32
    %72 = vector.broadcast %cst_46 : f32 to vector<4x256xf32>
    %73 = arith.cmpf oge, %71, %72 : vector<4x256xf32>
    %cst_47 = arith.constant 2.000000e-01 : f32
    %74 = vector.broadcast %cst_47 : f32 to vector<4x256xf32>
    %75 = arith.mulf %74, %71 : vector<4x256xf32>
    %76 = arith.select %73, %71, %75 : vector<4x256xi1>, vector<4x256xf32>
    %c17_i32_48 = arith.constant 17 : i32
    %77 = tpu.dynamic_rotate %76 by %c17_i32_48 dim 1 : vector<4x256xf32>, i32 -> vector<4x256xf32>
    %c0_49 = arith.constant 0 : index
    %c0_50 = arith.constant 0 : index
    %78 = vector.load %arg2[%c0_49, %c0_50] : memref<9x256xf32, #tpu.memory_space<vmem>>, vector<1x256xf32>
    %79 = vector.broadcast %78 : vector<1x256xf32> to vector<4x256xf32>
    %80 = arith.mulf %77, %79 : vector<4x256xf32>
    %c0_51 = arith.constant 0 : index
    %c0_52 = arith.constant 0 : index
    %c0_53 = arith.constant 0 : index
    %81 = vector.load %arg3[%c0_51, %c0_52, %c0_53] : memref<9x4x4xf32, #tpu.memory_space<vmem>>, vector<1x4x4xf32>
    %82 = vector.shape_cast %81 : vector<1x4x4xf32> to vector<4x4xf32>
    %cst_54 = arith.constant dense<0.000000e+00> : vector<4x256xf32>
    %83 = tpu.matmul %82, %80, %cst_54 {dimension_numbers = #tpu.dot_dimension_numbers<[1], [0], [0], [1], [0, 0, 1, 1], [], []>} : vector<4x4xf32>, vector<4x256xf32>, vector<4x256xf32> -> vector<4x256xf32>
    %c16_i32_55 = arith.constant 16 : i32
    %84 = tpu.dynamic_rotate %76 by %c16_i32_55 dim 1 : vector<4x256xf32>, i32 -> vector<4x256xf32>
    %c1_56 = arith.constant 1 : index
    %c0_57 = arith.constant 0 : index
    %85 = vector.load %arg2[%c1_56, %c0_57] : memref<9x256xf32, #tpu.memory_space<vmem>>, vector<1x256xf32>
    %86 = vector.broadcast %85 : vector<1x256xf32> to vector<4x256xf32>
    %87 = arith.mulf %84, %86 : vector<4x256xf32>
    %c1_58 = arith.constant 1 : index
    %c0_59 = arith.constant 0 : index
    %c0_60 = arith.constant 0 : index
    %88 = vector.load %arg3[%c1_58, %c0_59, %c0_60] : memref<9x4x4xf32, #tpu.memory_space<vmem>>, vector<1x4x4xf32>
    %89 = vector.shape_cast %88 : vector<1x4x4xf32> to vector<4x4xf32>
    %cst_61 = arith.constant dense<0.000000e+00> : vector<4x256xf32>
    %90 = tpu.matmul %89, %87, %cst_61 {dimension_numbers = #tpu.dot_dimension_numbers<[1], [0], [0], [1], [0, 0, 1, 1], [], []>} : vector<4x4xf32>, vector<4x256xf32>, vector<4x256xf32> -> vector<4x256xf32>
    %91 = arith.addf %83, %90 : vector<4x256xf32>
    %c15_i32_62 = arith.constant 15 : i32
    %92 = tpu.dynamic_rotate %76 by %c15_i32_62 dim 1 : vector<4x256xf32>, i32 -> vector<4x256xf32>
    %c2_63 = arith.constant 2 : index
    %c0_64 = arith.constant 0 : index
    %93 = vector.load %arg2[%c2_63, %c0_64] : memref<9x256xf32, #tpu.memory_space<vmem>>, vector<1x256xf32>
    %94 = vector.broadcast %93 : vector<1x256xf32> to vector<4x256xf32>
    %95 = arith.mulf %92, %94 : vector<4x256xf32>
    %c2_65 = arith.constant 2 : index
    %c0_66 = arith.constant 0 : index
    %c0_67 = arith.constant 0 : index
    %96 = vector.load %arg3[%c2_65, %c0_66, %c0_67] : memref<9x4x4xf32, #tpu.memory_space<vmem>>, vector<1x4x4xf32>
    %97 = vector.shape_cast %96 : vector<1x4x4xf32> to vector<4x4xf32>
    %cst_68 = arith.constant dense<0.000000e+00> : vector<4x256xf32>
    %98 = tpu.matmul %97, %95, %cst_68 {dimension_numbers = #tpu.dot_dimension_numbers<[1], [0], [0], [1], [0, 0, 1, 1], [], []>} : vector<4x4xf32>, vector<4x256xf32>, vector<4x256xf32> -> vector<4x256xf32>
    %99 = arith.addf %91, %98 : vector<4x256xf32>
    %c1_i32_69 = arith.constant 1 : i32
    %100 = tpu.dynamic_rotate %76 by %c1_i32_69 dim 1 : vector<4x256xf32>, i32 -> vector<4x256xf32>
    %c3_70 = arith.constant 3 : index
    %c0_71 = arith.constant 0 : index
    %101 = vector.load %arg2[%c3_70, %c0_71] : memref<9x256xf32, #tpu.memory_space<vmem>>, vector<1x256xf32>
    %102 = vector.broadcast %101 : vector<1x256xf32> to vector<4x256xf32>
    %103 = arith.mulf %100, %102 : vector<4x256xf32>
    %c3_72 = arith.constant 3 : index
    %c0_73 = arith.constant 0 : index
    %c0_74 = arith.constant 0 : index
    %104 = vector.load %arg3[%c3_72, %c0_73, %c0_74] : memref<9x4x4xf32, #tpu.memory_space<vmem>>, vector<1x4x4xf32>
    %105 = vector.shape_cast %104 : vector<1x4x4xf32> to vector<4x4xf32>
    %cst_75 = arith.constant dense<0.000000e+00> : vector<4x256xf32>
    %106 = tpu.matmul %105, %103, %cst_75 {dimension_numbers = #tpu.dot_dimension_numbers<[1], [0], [0], [1], [0, 0, 1, 1], [], []>} : vector<4x4xf32>, vector<4x256xf32>, vector<4x256xf32> -> vector<4x256xf32>
    %107 = arith.addf %99, %106 : vector<4x256xf32>
    %c4_76 = arith.constant 4 : index
    %c0_77 = arith.constant 0 : index
    %c0_78 = arith.constant 0 : index
    %108 = vector.load %arg3[%c4_76, %c0_77, %c0_78] : memref<9x4x4xf32, #tpu.memory_space<vmem>>, vector<1x4x4xf32>
    %109 = vector.shape_cast %108 : vector<1x4x4xf32> to vector<4x4xf32>
    %cst_79 = arith.constant dense<0.000000e+00> : vector<4x256xf32>
    %110 = tpu.matmul %109, %76, %cst_79 {dimension_numbers = #tpu.dot_dimension_numbers<[1], [0], [0], [1], [0, 0, 1, 1], [], []>} : vector<4x4xf32>, vector<4x256xf32>, vector<4x256xf32> -> vector<4x256xf32>
    %111 = arith.addf %107, %110 : vector<4x256xf32>
    %c255_i32_80 = arith.constant 255 : i32
    %112 = tpu.dynamic_rotate %76 by %c255_i32_80 dim 1 : vector<4x256xf32>, i32 -> vector<4x256xf32>
    %c5_81 = arith.constant 5 : index
    %c0_82 = arith.constant 0 : index
    %113 = vector.load %arg2[%c5_81, %c0_82] : memref<9x256xf32, #tpu.memory_space<vmem>>, vector<1x256xf32>
    %114 = vector.broadcast %113 : vector<1x256xf32> to vector<4x256xf32>
    %115 = arith.mulf %112, %114 : vector<4x256xf32>
    %c5_83 = arith.constant 5 : index
    %c0_84 = arith.constant 0 : index
    %c0_85 = arith.constant 0 : index
    %116 = vector.load %arg3[%c5_83, %c0_84, %c0_85] : memref<9x4x4xf32, #tpu.memory_space<vmem>>, vector<1x4x4xf32>
    %117 = vector.shape_cast %116 : vector<1x4x4xf32> to vector<4x4xf32>
    %cst_86 = arith.constant dense<0.000000e+00> : vector<4x256xf32>
    %118 = tpu.matmul %117, %115, %cst_86 {dimension_numbers = #tpu.dot_dimension_numbers<[1], [0], [0], [1], [0, 0, 1, 1], [], []>} : vector<4x4xf32>, vector<4x256xf32>, vector<4x256xf32> -> vector<4x256xf32>
    %119 = arith.addf %111, %118 : vector<4x256xf32>
    %c241_i32_87 = arith.constant 241 : i32
    %120 = tpu.dynamic_rotate %76 by %c241_i32_87 dim 1 : vector<4x256xf32>, i32 -> vector<4x256xf32>
    %c6_88 = arith.constant 6 : index
    %c0_89 = arith.constant 0 : index
    %121 = vector.load %arg2[%c6_88, %c0_89] : memref<9x256xf32, #tpu.memory_space<vmem>>, vector<1x256xf32>
    %122 = vector.broadcast %121 : vector<1x256xf32> to vector<4x256xf32>
    %123 = arith.mulf %120, %122 : vector<4x256xf32>
    %c6_90 = arith.constant 6 : index
    %c0_91 = arith.constant 0 : index
    %c0_92 = arith.constant 0 : index
    %124 = vector.load %arg3[%c6_90, %c0_91, %c0_92] : memref<9x4x4xf32, #tpu.memory_space<vmem>>, vector<1x4x4xf32>
    %125 = vector.shape_cast %124 : vector<1x4x4xf32> to vector<4x4xf32>
    %cst_93 = arith.constant dense<0.000000e+00> : vector<4x256xf32>
    %126 = tpu.matmul %125, %123, %cst_93 {dimension_numbers = #tpu.dot_dimension_numbers<[1], [0], [0], [1], [0, 0, 1, 1], [], []>} : vector<4x4xf32>, vector<4x256xf32>, vector<4x256xf32> -> vector<4x256xf32>
    %127 = arith.addf %119, %126 : vector<4x256xf32>
    %c240_i32_94 = arith.constant 240 : i32
    %128 = tpu.dynamic_rotate %76 by %c240_i32_94 dim 1 : vector<4x256xf32>, i32 -> vector<4x256xf32>
    %c7_95 = arith.constant 7 : index
    %c0_96 = arith.constant 0 : index
    %129 = vector.load %arg2[%c7_95, %c0_96] : memref<9x256xf32, #tpu.memory_space<vmem>>, vector<1x256xf32>
    %130 = vector.broadcast %129 : vector<1x256xf32> to vector<4x256xf32>
    %131 = arith.mulf %128, %130 : vector<4x256xf32>
    %c7_97 = arith.constant 7 : index
    %c0_98 = arith.constant 0 : index
    %c0_99 = arith.constant 0 : index
    %132 = vector.load %arg3[%c7_97, %c0_98, %c0_99] : memref<9x4x4xf32, #tpu.memory_space<vmem>>, vector<1x4x4xf32>
    %133 = vector.shape_cast %132 : vector<1x4x4xf32> to vector<4x4xf32>
    %cst_100 = arith.constant dense<0.000000e+00> : vector<4x256xf32>
    %134 = tpu.matmul %133, %131, %cst_100 {dimension_numbers = #tpu.dot_dimension_numbers<[1], [0], [0], [1], [0, 0, 1, 1], [], []>} : vector<4x4xf32>, vector<4x256xf32>, vector<4x256xf32> -> vector<4x256xf32>
    %135 = arith.addf %127, %134 : vector<4x256xf32>
    %c239_i32_101 = arith.constant 239 : i32
    %136 = tpu.dynamic_rotate %76 by %c239_i32_101 dim 1 : vector<4x256xf32>, i32 -> vector<4x256xf32>
    %c8_102 = arith.constant 8 : index
    %c0_103 = arith.constant 0 : index
    %137 = vector.load %arg2[%c8_102, %c0_103] : memref<9x256xf32, #tpu.memory_space<vmem>>, vector<1x256xf32>
    %138 = vector.broadcast %137 : vector<1x256xf32> to vector<4x256xf32>
    %139 = arith.mulf %136, %138 : vector<4x256xf32>
    %c8_104 = arith.constant 8 : index
    %c0_105 = arith.constant 0 : index
    %c0_106 = arith.constant 0 : index
    %140 = vector.load %arg3[%c8_104, %c0_105, %c0_106] : memref<9x4x4xf32, #tpu.memory_space<vmem>>, vector<1x4x4xf32>
    %141 = vector.shape_cast %140 : vector<1x4x4xf32> to vector<4x4xf32>
    %cst_107 = arith.constant dense<0.000000e+00> : vector<4x256xf32>
    %142 = tpu.matmul %141, %139, %cst_107 {dimension_numbers = #tpu.dot_dimension_numbers<[1], [0], [0], [1], [0, 0, 1, 1], [], []>} : vector<4x4xf32>, vector<4x256xf32>, vector<4x256xf32> -> vector<4x256xf32>
    %143 = arith.addf %135, %142 : vector<4x256xf32>
    %144 = arith.addf %143, %3 : vector<4x256xf32>
    %cst_108 = arith.constant 0.000000e+00 : f32
    %145 = vector.broadcast %cst_108 : f32 to vector<4x256xf32>
    %146 = arith.cmpf oge, %144, %145 : vector<4x256xf32>
    %cst_109 = arith.constant 2.000000e-01 : f32
    %147 = vector.broadcast %cst_109 : f32 to vector<4x256xf32>
    %148 = arith.mulf %147, %144 : vector<4x256xf32>
    %149 = arith.select %146, %144, %148 : vector<4x256xi1>, vector<4x256xf32>
    %c0_110 = arith.constant 0 : index
    %c0_111 = arith.constant 0 : index
    %150 = vector.load %arg5[%c0_110, %c0_111] : memref<3x4xf32, #tpu.memory_space<vmem>>, vector<3x4xf32>
    %cst_112 = arith.constant dense<0.000000e+00> : vector<3x256xf32>
    %151 = tpu.matmul %150, %149, %cst_112 {dimension_numbers = #tpu.dot_dimension_numbers<[1], [0], [0], [1], [0, 0, 1, 1], [], []>} : vector<3x4xf32>, vector<4x256xf32>, vector<3x256xf32> -> vector<3x256xf32>
    %c0_113 = arith.constant 0 : index
    %c0_114 = arith.constant 0 : index
    %152 = vector.load %arg6[%c0_113, %c0_114] : memref<3x1xf32, #tpu.memory_space<vmem>>, vector<3x1xf32>
    %153 = vector.shape_cast %152 : vector<3x1xf32> to vector<3x1xf32>
    %154 = vector.broadcast %153 : vector<3x1xf32> to vector<3x256xf32>
    %155 = arith.addf %151, %154 : vector<3x256xf32>
    %c0_115 = arith.constant 0 : index
    %c0_116 = arith.constant 0 : index
    %156 = vector.load %arg8[%c0_115, %c0_116] : memref<3x256xf32, #tpu.memory_space<vmem>>, vector<3x256xf32>
    %c17_i32_117 = arith.constant 17 : i32
    %157 = tpu.dynamic_rotate %156 by %c17_i32_117 dim 1 : vector<3x256xf32>, i32 -> vector<3x256xf32>
    %c0_118 = arith.constant 0 : index
    %c0_119 = arith.constant 0 : index
    %158 = vector.load %arg2[%c0_118, %c0_119] : memref<9x256xf32, #tpu.memory_space<vmem>>, vector<1x256xf32>
    %159 = vector.broadcast %158 : vector<1x256xf32> to vector<3x256xf32>
    %160 = arith.mulf %157, %159 : vector<3x256xf32>
    %c0_120 = arith.constant 0 : index
    %c0_121 = arith.constant 0 : index
    %c0_122 = arith.constant 0 : index
    %161 = vector.load %arg7[%c0_120, %c0_121, %c0_122] : memref<9x3x3xf32, #tpu.memory_space<vmem>>, vector<1x3x3xf32>
    %162 = vector.shape_cast %161 : vector<1x3x3xf32> to vector<3x3xf32>
    %cst_123 = arith.constant dense<0.000000e+00> : vector<3x256xf32>
    %163 = tpu.matmul %162, %160, %cst_123 {dimension_numbers = #tpu.dot_dimension_numbers<[1], [0], [0], [1], [0, 0, 1, 1], [], []>} : vector<3x3xf32>, vector<3x256xf32>, vector<3x256xf32> -> vector<3x256xf32>
    %c16_i32_124 = arith.constant 16 : i32
    %164 = tpu.dynamic_rotate %156 by %c16_i32_124 dim 1 : vector<3x256xf32>, i32 -> vector<3x256xf32>
    %c1_125 = arith.constant 1 : index
    %c0_126 = arith.constant 0 : index
    %165 = vector.load %arg2[%c1_125, %c0_126] : memref<9x256xf32, #tpu.memory_space<vmem>>, vector<1x256xf32>
    %166 = vector.broadcast %165 : vector<1x256xf32> to vector<3x256xf32>
    %167 = arith.mulf %164, %166 : vector<3x256xf32>
    %c1_127 = arith.constant 1 : index
    %c0_128 = arith.constant 0 : index
    %c0_129 = arith.constant 0 : index
    %168 = vector.load %arg7[%c1_127, %c0_128, %c0_129] : memref<9x3x3xf32, #tpu.memory_space<vmem>>, vector<1x3x3xf32>
    %169 = vector.shape_cast %168 : vector<1x3x3xf32> to vector<3x3xf32>
    %cst_130 = arith.constant dense<0.000000e+00> : vector<3x256xf32>
    %170 = tpu.matmul %169, %167, %cst_130 {dimension_numbers = #tpu.dot_dimension_numbers<[1], [0], [0], [1], [0, 0, 1, 1], [], []>} : vector<3x3xf32>, vector<3x256xf32>, vector<3x256xf32> -> vector<3x256xf32>
    %171 = arith.addf %163, %170 : vector<3x256xf32>
    %c15_i32_131 = arith.constant 15 : i32
    %172 = tpu.dynamic_rotate %156 by %c15_i32_131 dim 1 : vector<3x256xf32>, i32 -> vector<3x256xf32>
    %c2_132 = arith.constant 2 : index
    %c0_133 = arith.constant 0 : index
    %173 = vector.load %arg2[%c2_132, %c0_133] : memref<9x256xf32, #tpu.memory_space<vmem>>, vector<1x256xf32>
    %174 = vector.broadcast %173 : vector<1x256xf32> to vector<3x256xf32>
    %175 = arith.mulf %172, %174 : vector<3x256xf32>
    %c2_134 = arith.constant 2 : index
    %c0_135 = arith.constant 0 : index
    %c0_136 = arith.constant 0 : index
    %176 = vector.load %arg7[%c2_134, %c0_135, %c0_136] : memref<9x3x3xf32, #tpu.memory_space<vmem>>, vector<1x3x3xf32>
    %177 = vector.shape_cast %176 : vector<1x3x3xf32> to vector<3x3xf32>
    %cst_137 = arith.constant dense<0.000000e+00> : vector<3x256xf32>
    %178 = tpu.matmul %177, %175, %cst_137 {dimension_numbers = #tpu.dot_dimension_numbers<[1], [0], [0], [1], [0, 0, 1, 1], [], []>} : vector<3x3xf32>, vector<3x256xf32>, vector<3x256xf32> -> vector<3x256xf32>
    %179 = arith.addf %171, %178 : vector<3x256xf32>
    %c1_i32_138 = arith.constant 1 : i32
    %180 = tpu.dynamic_rotate %156 by %c1_i32_138 dim 1 : vector<3x256xf32>, i32 -> vector<3x256xf32>
    %c3_139 = arith.constant 3 : index
    %c0_140 = arith.constant 0 : index
    %181 = vector.load %arg2[%c3_139, %c0_140] : memref<9x256xf32, #tpu.memory_space<vmem>>, vector<1x256xf32>
    %182 = vector.broadcast %181 : vector<1x256xf32> to vector<3x256xf32>
    %183 = arith.mulf %180, %182 : vector<3x256xf32>
    %c3_141 = arith.constant 3 : index
    %c0_142 = arith.constant 0 : index
    %c0_143 = arith.constant 0 : index
    %184 = vector.load %arg7[%c3_141, %c0_142, %c0_143] : memref<9x3x3xf32, #tpu.memory_space<vmem>>, vector<1x3x3xf32>
    %185 = vector.shape_cast %184 : vector<1x3x3xf32> to vector<3x3xf32>
    %cst_144 = arith.constant dense<0.000000e+00> : vector<3x256xf32>
    %186 = tpu.matmul %185, %183, %cst_144 {dimension_numbers = #tpu.dot_dimension_numbers<[1], [0], [0], [1], [0, 0, 1, 1], [], []>} : vector<3x3xf32>, vector<3x256xf32>, vector<3x256xf32> -> vector<3x256xf32>
    %187 = arith.addf %179, %186 : vector<3x256xf32>
    %c4_145 = arith.constant 4 : index
    %c0_146 = arith.constant 0 : index
    %c0_147 = arith.constant 0 : index
    %188 = vector.load %arg7[%c4_145, %c0_146, %c0_147] : memref<9x3x3xf32, #tpu.memory_space<vmem>>, vector<1x3x3xf32>
    %189 = vector.shape_cast %188 : vector<1x3x3xf32> to vector<3x3xf32>
    %cst_148 = arith.constant dense<0.000000e+00> : vector<3x256xf32>
    %190 = tpu.matmul %189, %156, %cst_148 {dimension_numbers = #tpu.dot_dimension_numbers<[1], [0], [0], [1], [0, 0, 1, 1], [], []>} : vector<3x3xf32>, vector<3x256xf32>, vector<3x256xf32> -> vector<3x256xf32>
    %191 = arith.addf %187, %190 : vector<3x256xf32>
    %c255_i32_149 = arith.constant 255 : i32
    %192 = tpu.dynamic_rotate %156 by %c255_i32_149 dim 1 : vector<3x256xf32>, i32 -> vector<3x256xf32>
    %c5_150 = arith.constant 5 : index
    %c0_151 = arith.constant 0 : index
    %193 = vector.load %arg2[%c5_150, %c0_151] : memref<9x256xf32, #tpu.memory_space<vmem>>, vector<1x256xf32>
    %194 = vector.broadcast %193 : vector<1x256xf32> to vector<3x256xf32>
    %195 = arith.mulf %192, %194 : vector<3x256xf32>
    %c5_152 = arith.constant 5 : index
    %c0_153 = arith.constant 0 : index
    %c0_154 = arith.constant 0 : index
    %196 = vector.load %arg7[%c5_152, %c0_153, %c0_154] : memref<9x3x3xf32, #tpu.memory_space<vmem>>, vector<1x3x3xf32>
    %197 = vector.shape_cast %196 : vector<1x3x3xf32> to vector<3x3xf32>
    %cst_155 = arith.constant dense<0.000000e+00> : vector<3x256xf32>
    %198 = tpu.matmul %197, %195, %cst_155 {dimension_numbers = #tpu.dot_dimension_numbers<[1], [0], [0], [1], [0, 0, 1, 1], [], []>} : vector<3x3xf32>, vector<3x256xf32>, vector<3x256xf32> -> vector<3x256xf32>
    %199 = arith.addf %191, %198 : vector<3x256xf32>
    %c241_i32_156 = arith.constant 241 : i32
    %200 = tpu.dynamic_rotate %156 by %c241_i32_156 dim 1 : vector<3x256xf32>, i32 -> vector<3x256xf32>
    %c6_157 = arith.constant 6 : index
    %c0_158 = arith.constant 0 : index
    %201 = vector.load %arg2[%c6_157, %c0_158] : memref<9x256xf32, #tpu.memory_space<vmem>>, vector<1x256xf32>
    %202 = vector.broadcast %201 : vector<1x256xf32> to vector<3x256xf32>
    %203 = arith.mulf %200, %202 : vector<3x256xf32>
    %c6_159 = arith.constant 6 : index
    %c0_160 = arith.constant 0 : index
    %c0_161 = arith.constant 0 : index
    %204 = vector.load %arg7[%c6_159, %c0_160, %c0_161] : memref<9x3x3xf32, #tpu.memory_space<vmem>>, vector<1x3x3xf32>
    %205 = vector.shape_cast %204 : vector<1x3x3xf32> to vector<3x3xf32>
    %cst_162 = arith.constant dense<0.000000e+00> : vector<3x256xf32>
    %206 = tpu.matmul %205, %203, %cst_162 {dimension_numbers = #tpu.dot_dimension_numbers<[1], [0], [0], [1], [0, 0, 1, 1], [], []>} : vector<3x3xf32>, vector<3x256xf32>, vector<3x256xf32> -> vector<3x256xf32>
    %207 = arith.addf %199, %206 : vector<3x256xf32>
    %c240_i32_163 = arith.constant 240 : i32
    %208 = tpu.dynamic_rotate %156 by %c240_i32_163 dim 1 : vector<3x256xf32>, i32 -> vector<3x256xf32>
    %c7_164 = arith.constant 7 : index
    %c0_165 = arith.constant 0 : index
    %209 = vector.load %arg2[%c7_164, %c0_165] : memref<9x256xf32, #tpu.memory_space<vmem>>, vector<1x256xf32>
    %210 = vector.broadcast %209 : vector<1x256xf32> to vector<3x256xf32>
    %211 = arith.mulf %208, %210 : vector<3x256xf32>
    %c7_166 = arith.constant 7 : index
    %c0_167 = arith.constant 0 : index
    %c0_168 = arith.constant 0 : index
    %212 = vector.load %arg7[%c7_166, %c0_167, %c0_168] : memref<9x3x3xf32, #tpu.memory_space<vmem>>, vector<1x3x3xf32>
    %213 = vector.shape_cast %212 : vector<1x3x3xf32> to vector<3x3xf32>
    %cst_169 = arith.constant dense<0.000000e+00> : vector<3x256xf32>
    %214 = tpu.matmul %213, %211, %cst_169 {dimension_numbers = #tpu.dot_dimension_numbers<[1], [0], [0], [1], [0, 0, 1, 1], [], []>} : vector<3x3xf32>, vector<3x256xf32>, vector<3x256xf32> -> vector<3x256xf32>
    %215 = arith.addf %207, %214 : vector<3x256xf32>
    %c239_i32_170 = arith.constant 239 : i32
    %216 = tpu.dynamic_rotate %156 by %c239_i32_170 dim 1 : vector<3x256xf32>, i32 -> vector<3x256xf32>
    %c8_171 = arith.constant 8 : index
    %c0_172 = arith.constant 0 : index
    %217 = vector.load %arg2[%c8_171, %c0_172] : memref<9x256xf32, #tpu.memory_space<vmem>>, vector<1x256xf32>
    %218 = vector.broadcast %217 : vector<1x256xf32> to vector<3x256xf32>
    %219 = arith.mulf %216, %218 : vector<3x256xf32>
    %c8_173 = arith.constant 8 : index
    %c0_174 = arith.constant 0 : index
    %c0_175 = arith.constant 0 : index
    %220 = vector.load %arg7[%c8_173, %c0_174, %c0_175] : memref<9x3x3xf32, #tpu.memory_space<vmem>>, vector<1x3x3xf32>
    %221 = vector.shape_cast %220 : vector<1x3x3xf32> to vector<3x3xf32>
    %cst_176 = arith.constant dense<0.000000e+00> : vector<3x256xf32>
    %222 = tpu.matmul %221, %219, %cst_176 {dimension_numbers = #tpu.dot_dimension_numbers<[1], [0], [0], [1], [0, 0, 1, 1], [], []>} : vector<3x3xf32>, vector<3x256xf32>, vector<3x256xf32> -> vector<3x256xf32>
    %223 = arith.addf %215, %222 : vector<3x256xf32>
    %224 = arith.addf %155, %223 : vector<3x256xf32>
    %c0_177 = arith.constant 0 : index
    %c0_178 = arith.constant 0 : index
    %225 = vector.load %arg9[%c0_177, %c0_178] : memref<3x256xf32, #tpu.memory_space<vmem>>, vector<3x256xf32>
    tpu.vector_store %arg9[%c0_177, %c0_178], %224 {strides = array<i32>} : memref<3x256xf32, #tpu.memory_space<vmem>>, vector<3x256xf32>,
    return
  }
  func.func @transform_0(%arg0: i32) -> (i32, i32) {
    %c0_i32 = arith.constant 0 : i32
    %c0_i32_0 = arith.constant 0 : i32
    return %c0_i32, %arg0 : i32, i32
  }
  func.func @transform_1(%arg0: i32) -> (i32, i32) {
    %c0_i32 = arith.constant 0 : i32
    %c0_i32_0 = arith.constant 0 : i32
    %c0_i32_1 = arith.constant 0 : i32
    return %c0_i32, %c0_i32_0 : i32, i32
  }
  func.func @transform_2(%arg0: i32) -> (i32, i32, i32) {
    %c0_i32 = arith.constant 0 : i32
    %c0_i32_0 = arith.constant 0 : i32
    %c0_i32_1 = arith.constant 0 : i32
    %c0_i32_2 = arith.constant 0 : i32
    return %c0_i32, %c0_i32_0, %c0_i32_1 : i32, i32, i32
  }
  func.func @transform_3(%arg0: i32) -> (i32, i32) {
    %c0_i32 = arith.constant 0 : i32
    %c0_i32_0 = arith.constant 0 : i32
    %c0_i32_1 = arith.constant 0 : i32
    return %c0_i32, %c0_i32_0 : i32, i32
  }
  func.func @transform_4(%arg0: i32) -> (i32, i32) {
    %c0_i32 = arith.constant 0 : i32
    %c0_i32_0 = arith.constant 0 : i32
    %c0_i32_1 = arith.constant 0 : i32
    return %c0_i32, %c0_i32_0 : i32, i32
  }
  func.func @transform_5(%arg0: i32) -> (i32, i32) {
    %c0_i32 = arith.constant 0 : i32
    %c0_i32_0 = arith.constant 0 : i32
    %c0_i32_1 = arith.constant 0 : i32
    return %c0_i32, %c0_i32_0 : i32, i32
  }
  func.func @transform_6(%arg0: i32) -> (i32, i32, i32) {
    %c0_i32 = arith.constant 0 : i32
    %c0_i32_0 = arith.constant 0 : i32
    %c0_i32_1 = arith.constant 0 : i32
    %c0_i32_2 = arith.constant 0 : i32
    return %c0_i32, %c0_i32_0, %c0_i32_1 : i32, i32, i32
  }
  func.func @transform_7(%arg0: i32) -> (i32, i32) {
    %c0_i32 = arith.constant 0 : i32
    %c0_i32_0 = arith.constant 0 : i32
    return %c0_i32, %arg0 : i32, i32
  }
  func.func @transform_8(%arg0: i32) -> (i32, i32) {
    %c0_i32 = arith.constant 0 : i32
    %c0_i32_0 = arith.constant 0 : i32
    return %c0_i32, %arg0 : i32, i32
  }
}

</mosaic_0001>

<llo_original>
// kernel: tpu_custom_call.1
$region0: #{tpu_custom_call.1}
  #allocation0 [shape = 'u32[]', space=smem, size = 0x4, offset = 0x4, fixed_abs, tag = 'smem constant byte address 0x4 - core index']
  #allocation1 [shape = 'u32[144,128]{1,0:T(1,128)}', space=vmem, size = 0x12000, scoped, tag = 'internal scratch']
  %s0 = inlined_call_operand.vmem [shape: f32[4,512], index: 0, kind: input, shape index: {}]
  %s1 = inlined_call_operand.vmem [shape: f32[9,256], index: 1, kind: input, shape index: {}]
  %s2 = inlined_call_operand.vmem [shape: f32[9,4,4], index: 2, kind: input, shape index: {}]
  %s3 = inlined_call_operand.vmem [shape: f32[4,1], index: 3, kind: input, shape index: {}]
  %s4 = inlined_call_operand.vmem [shape: f32[3,4], index: 4, kind: input, shape index: {}]
  %s5 = inlined_call_operand.vmem [shape: f32[3,1], index: 5, kind: input, shape index: {}]
  %s6 = inlined_call_operand.vmem [shape: f32[9,3,3], index: 6, kind: input, shape index: {}]
  %s7 = inlined_call_operand.vmem [shape: f32[3,512], index: 7, kind: input, shape index: {}]
  %s8 = inlined_call_operand.hbm [shape: f32[3,512], index: 8, kind: output, shape index: {}]
  %s9 = sld [smem:[#allocation0]]
  $region65: #{tpu_custom_call.1} parent=0
    _
  %s11 = ssub.s32 1, %s9
  %s12 = scalar_select 0, %s11, %s9
  $region1: #{tpu_custom_call.1} parent=0
    #allocation2 [shape = 'u8[8192]{0}', space=vmem, size = 0x2000, scoped, tag = 'output window, operand 0']
    #allocation3 [shape = 's32[2]{0}', space=sflag, size = 0x8, scoped, tag = 'scoped memory for tpu_custom_call.1']
    %13 = vsyncpa [#allocation3], 0
    %s14 = scalar_lea.sflag [#allocation3], 1
    %15 = vsyncpa %s14, 0
    loop: start=0, step=1, limit=4
    $region2: #{tpu_custom_call.1} parent=1 // loop_pre_header
      _
    $region3: #{tpu_custom_call.1} parent=1 // loop_header
      %s17 = sphi 0, %s21
      %p18 = scmp.ge.s32.totalorder %s17, 4
      %s27 = sphi 0, %s29
      %s30 = sphi 0, %s27
      %s31 = sphi 0, %s30
      %s47 = sphi 0, %s31
      %s51 = sphi 0, %s51
      %s53 = sphi 0, %s51
      %s54 = sphi 0, %s53
      %s68 = sphi 0, %s54
      %s72 = sphi 0, %s72
      %s74 = sphi 0, %s72
      %s75 = sphi 0, %s74
      %s89 = sphi 0, %s75
      %s93 = sphi 0, %s93
      %s95 = sphi 0, %s93
      %s96 = sphi 0, %s95
      %s110 = sphi 0, %s96
      %s114 = sphi 0, %s114
      %s116 = sphi 0, %s114
      %s117 = sphi 0, %s116
      %s131 = sphi 0, %s117
      %s135 = sphi 0, %s135
      %s137 = sphi 0, %s135
      %s138 = sphi 0, %s137
      %s152 = sphi 0, %s138
      %s156 = sphi 0, %s156
      %s158 = sphi 0, %s156
      %s159 = sphi 0, %s158
      %s173 = sphi 0, %s159
      %s179 = sphi 0, %s181
      %s182 = sphi 0, %s179
      %s183 = sphi 0, %s182
      %s199 = sphi 0, %s183
      %s205 = sphi 0, %s207
      %s208 = sphi 0, %s205
      %s209 = sphi 0, %s208
      %s225 = sphi 0, %s209
    $region4: #{tpu_custom_call.1} parent=1 // loop_header_branch
      %20 = sbr.rel (%p18) target = $region8
    $region5: #{tpu_custom_call.1} parent=1 // loop_body
      %s22 = ssub.s32 %s17, 1
      %s23 = ssub.s32 %s17, 2
      %s24 = sadd.s32 %s17, 1
      %s25 = ssub.s32 %s17, %s24
      %p26 = scmp.eq.s32.totalorder %s25, 0
      %s28 = sadd.s32 %s27, 1
      %s29 = scalar_select %p26, %s27, %s28
      %p32 = pneg %p26
      %p33 = scmp.eq.s32.totalorder %s17, 1
      %p34 = por %p32, %p33
      %p35 = scmp.ne.s32.totalorder %s27, %s30
      %p36 = scmp.eq.s32.totalorder %s17, 0
      %p37 = por %p35, %p36
      %p38 = scmp.ne.s32.totalorder %s27, %s30
      %p39 = scmp.eq.s32.totalorder %s22, 1
      %p40 = por %p38, %p39
      %p41 = scmp.ne.s32.totalorder %s30, %s31
      %p42 = scmp.eq.s32.totalorder %s22, 0
      %p43 = por %p41, %p42
      %p44 = scmp.ne.s32.totalorder %s30, %s31
      %p45 = scmp.eq.s32.totalorder %s23, 1
      %p46 = por %p44, %p45
      %p48 = scmp.ne.s32.totalorder %s31, %s47
      %p49 = scmp.eq.s32.totalorder %s23, 0
      %p50 = por %p48, %p49
      %s52 = sadd.s32 %s51, 1
      %p55 = scmp.eq.s32.totalorder %s17, 1
      %p56 = scmp.ne.s32.totalorder %s51, %s53
      %p57 = scmp.eq.s32.totalorder %s17, 0
      %p58 = por %p56, %p57
      %p59 = scmp.ne.s32.totalorder %s51, %s53
      %p60 = scmp.eq.s32.totalorder %s22, 1
      %p61 = por %p59, %p60
      %p62 = scmp.ne.s32.totalorder %s53, %s54
      %p63 = scmp.eq.s32.totalorder %s22, 0
      %p64 = por %p62, %p63
      %p65 = scmp.ne.s32.totalorder %s53, %s54
      %p66 = scmp.eq.s32.totalorder %s23, 1
      %p67 = por %p65, %p66
      %p69 = scmp.ne.s32.totalorder %s54, %s68
      %p70 = scmp.eq.s32.totalorder %s23, 0
      %p71 = por %p69, %p70
      %s73 = sadd.s32 %s72, 1
      %p76 = scmp.eq.s32.totalorder %s17, 1
      %p77 = scmp.ne.s32.totalorder %s72, %s74
      %p78 = scmp.eq.s32.totalorder %s17, 0
      %p79 = por %p77, %p78
      %p80 = scmp.ne.s32.totalorder %s72, %s74
      %p81 = scmp.eq.s32.totalorder %s22, 1
      %p82 = por %p80, %p81
      %p83 = scmp.ne.s32.totalorder %s74, %s75
      %p84 = scmp.eq.s32.totalorder %s22, 0
      %p85 = por %p83, %p84
      %p86 = scmp.ne.s32.totalorder %s74, %s75
      %p87 = scmp.eq.s32.totalorder %s23, 1
      %p88 = por %p86, %p87
      %p90 = scmp.ne.s32.totalorder %s75, %s89
      %p91 = scmp.eq.s32.totalorder %s23, 0
      %p92 = por %p90, %p91
      %s94 = sadd.s32 %s93, 1
      %p97 = scmp.eq.s32.totalorder %s17, 1
      %p98 = scmp.ne.s32.totalorder %s93, %s95
      %p99 = scmp.eq.s32.totalorder %s17, 0
      %p100 = por %p98, %p99
      %p101 = scmp.ne.s32.totalorder %s93, %s95
      %p102 = scmp.eq.s32.totalorder %s22, 1
      %p103 = por %p101, %p102
      %p104 = scmp.ne.s32.totalorder %s95, %s96
      %p105 = scmp.eq.s32.totalorder %s22, 0
      %p106 = por %p104, %p105
      %p107 = scmp.ne.s32.totalorder %s95, %s96
      %p108 = scmp.eq.s32.totalorder %s23, 1
      %p109 = por %p107, %p108
      %p111 = scmp.ne.s32.totalorder %s96, %s110
      %p112 = scmp.eq.s32.totalorder %s23, 0
      %p113 = por %p111, %p112
      %s115 = sadd.s32 %s114, 1
      %p118 = scmp.eq.s32.totalorder %s17, 1
      %p119 = scmp.ne.s32.totalorder %s114, %s116
      %p120 = scmp.eq.s32.totalorder %s17, 0
      %p121 = por %p119, %p120
      %p122 = scmp.ne.s32.totalorder %s114, %s116
      %p123 = scmp.eq.s32.totalorder %s22, 1
      %p124 = por %p122, %p123
      %p125 = scmp.ne.s32.totalorder %s116, %s117
      %p126 = scmp.eq.s32.totalorder %s22, 0
      %p127 = por %p125, %p126
      %p128 = scmp.ne.s32.totalorder %s116, %s117
      %p129 = scmp.eq.s32.totalorder %s23, 1
      %p130 = por %p128, %p129
      %p132 = scmp.ne.s32.totalorder %s117, %s131
      %p133 = scmp.eq.s32.totalorder %s23, 0
      %p134 = por %p132, %p133
      %s136 = sadd.s32 %s135, 1
      %p139 = scmp.eq.s32.totalorder %s17, 1
      %p140 = scmp.ne.s32.totalorder %s135, %s137
      %p141 = scmp.eq.s32.totalorder %s17, 0
      %p142 = por %p140, %p141
      %p143 = scmp.ne.s32.totalorder %s135, %s137
      %p144 = scmp.eq.s32.totalorder %s22, 1
      %p145 = por %p143, %p144
      %p146 = scmp.ne.s32.totalorder %s137, %s138
      %p147 = scmp.eq.s32.totalorder %s22, 0
      %p148 = por %p146, %p147
      %p149 = scmp.ne.s32.totalorder %s137, %s138
      %p150 = scmp.eq.s32.totalorder %s23, 1
      %p151 = por %p149, %p150
      %p153 = scmp.ne.s32.totalorder %s138, %s152
      %p154 = scmp.eq.s32.totalorder %s23, 0
      %p155 = por %p153, %p154
      %s157 = sadd.s32 %s156, 1
      %p160 = scmp.eq.s32.totalorder %s17, 1
      %p161 = scmp.ne.s32.totalorder %s156, %s158
      %p162 = scmp.eq.s32.totalorder %s17, 0
      %p163 = por %p161, %p162
      %p164 = scmp.ne.s32.totalorder %s156, %s158
      %p165 = scmp.eq.s32.totalorder %s22, 1
      %p166 = por %p164, %p165
      %p167 = scmp.ne.s32.totalorder %s158, %s159
      %p168 = scmp.eq.s32.totalorder %s22, 0
      %p169 = por %p167, %p168
      %p170 = scmp.ne.s32.totalorder %s158, %s159
      %p171 = scmp.eq.s32.totalorder %s23, 1
      %p172 = por %p170, %p171
      %p174 = scmp.ne.s32.totalorder %s159, %s173
      %p175 = scmp.eq.s32.totalorder %s23, 0
      %p176 = por %p174, %p175
      %s177 = ssub.s32 %s17, %s24
      %p178 = scmp.eq.s32.totalorder %s177, 0
      %s180 = sadd.s32 %s179, 1
      %s181 = scalar_select %p178, %s179, %s180
      %p184 = pneg %p178
      %p185 = scmp.eq.s32.totalorder %s17, 1
      %p186 = por %p184, %p185
      %p187 = scmp.ne.s32.totalorder %s179, %s182
      %p188 = scmp.eq.s32.totalorder %s17, 0
      %p189 = por %p187, %p188
      %p190 = scmp.ne.s32.totalorder %s179, %s182
      %p191 = scmp.eq.s32.totalorder %s22, 1
      %p192 = por %p190, %p191
      %p193 = scmp.ne.s32.totalorder %s182, %s183
      %p194 = scmp.eq.s32.totalorder %s22, 0
      %p195 = por %p193, %p194
      %p196 = scmp.ne.s32.totalorder %s182, %s183
      %p197 = scmp.eq.s32.totalorder %s23, 1
      %p198 = por %p196, %p197
      %p200 = scmp.ne.s32.totalorder %s183, %s199
      %p201 = scmp.eq.s32.totalorder %s23, 0
      %p202 = por %p200, %p201
      %s203 = ssub.s32 %s17, %s24
      %p204 = scmp.eq.s32.totalorder %s203, 0
      %s206 = sadd.s32 %s205, 1
      %s207 = scalar_select %p204, %s205, %s206
      %p210 = pneg %p204
      %p211 = scmp.eq.s32.totalorder %s17, 1
      %p212 = por %p210, %p211
      %p213 = scmp.ne.s32.totalorder %s205, %s208
      %p214 = scmp.eq.s32.totalorder %s17, 0
      %p215 = por %p213, %p214
      %p216 = scmp.ne.s32.totalorder %s205, %s208
      %p217 = scmp.eq.s32.totalorder %s22, 1
      %p218 = por %p216, %p217
      %p219 = scmp.ne.s32.totalorder %s208, %s209
      %p220 = scmp.eq.s32.totalorder %s22, 0
      %p221 = por %p219, %p220
      %p222 = scmp.ne.s32.totalorder %s208, %s209
      %p223 = scmp.eq.s32.totalorder %s23, 1
      %p224 = por %p222, %p223
      %p226 = scmp.ne.s32.totalorder %s209, %s225
      %p227 = scmp.eq.s32.totalorder %s23, 0
      %p228 = por %p226, %p227
      %p229 = scmp.le.s32.totalorder 1, %s17
      %p230 = scmp.lt.s32.totalorder %s17, 3
      %p231 = pnand %p229, %p230
      %p232 = pneg %p231
      // Predicated region
      $region9: #{tpu_custom_call.1} parent=5 // pred_check
        _
      $region10: #{tpu_custom_call.1} parent=5 // pred_check_branch
        %234 = sbr.rel (%p231) target = $region12
      $region11: #{tpu_custom_call.1} parent=5 // pred_region
        %s235 = ssub.s32 %s17, 1
        // Predicated region
        $region13: #{tpu_custom_call.1} parent=11 // pred_check
          %p236 = pneg %p64
        $region14: #{tpu_custom_call.1} parent=11 // pred_check_branch
          %238 = sbr.rel (%p236) target = $region16
        $region15: #{tpu_custom_call.1} parent=11 // pred_region
          _
        $region16: #{tpu_custom_call.1} parent=11 // pred_fallthru
          _
        // Predicated region
        $region17: #{tpu_custom_call.1} parent=11 // pred_check
          %p239 = pneg %p85
        $region18: #{tpu_custom_call.1} parent=11 // pred_check_branch
          %241 = sbr.rel (%p239) target = $region20
        $region19: #{tpu_custom_call.1} parent=11 // pred_region
          _
        $region20: #{tpu_custom_call.1} parent=11 // pred_fallthru
          _
        // Predicated region
        $region21: #{tpu_custom_call.1} parent=11 // pred_check
          %p242 = pneg %p106
        $region22: #{tpu_custom_call.1} parent=11 // pred_check_branch
          %244 = sbr.rel (%p242) target = $region24
        $region23: #{tpu_custom_call.1} parent=11 // pred_region
          _
        $region24: #{tpu_custom_call.1} parent=11 // pred_fallthru
          _
        // Predicated region
        $region25: #{tpu_custom_call.1} parent=11 // pred_check
          %p245 = pneg %p127
        $region26: #{tpu_custom_call.1} parent=11 // pred_check_branch
          %247 = sbr.rel (%p245) target = $region28
        $region27: #{tpu_custom_call.1} parent=11 // pred_region
          _
        $region28: #{tpu_custom_call.1} parent=11 // pred_fallthru
          _
        // Predicated region
        $region29: #{tpu_custom_call.1} parent=11 // pred_check
          %p248 = pneg %p148
        $region30: #{tpu_custom_call.1} parent=11 // pred_check_branch
          %250 = sbr.rel (%p248) target = $region32
        $region31: #{tpu_custom_call.1} parent=11 // pred_region
          _
        $region32: #{tpu_custom_call.1} parent=11 // pred_fallthru
          _
        // Predicated region
        $region33: #{tpu_custom_call.1} parent=11 // pred_check
          %p251 = pneg %p169
        $region34: #{tpu_custom_call.1} parent=11 // pred_check_branch
          %253 = sbr.rel (%p251) target = $region36
        $region35: #{tpu_custom_call.1} parent=11 // pred_region
          _
        $region36: #{tpu_custom_call.1} parent=11 // pred_fallthru
          _
      $region12: #{tpu_custom_call.1} parent=5 // pred_fallthru
        _
      %p254 = scmp.lt.s32.totalorder %s17, 2
      // Predicated region
      $region37: #{tpu_custom_call.1} parent=5 // pred_check
        %p255 = pneg %p254
      $region38: #{tpu_custom_call.1} parent=5 // pred_check_branch
        %257 = sbr.rel (%p255) target = $region40
      $region39: #{tpu_custom_call.1} parent=5 // pred_region
        // Predicated region
        $region41: #{tpu_custom_call.1} parent=39 // pred_check
          %p258 = pneg %p37
        $region42: #{tpu_custom_call.1} parent=39 // pred_check_branch
          %260 = sbr.rel (%p258) target = $region44
        $region43: #{tpu_custom_call.1} parent=39 // pred_region
          %s261 = smul.u32 2, %s17
          %p262 = scmp.lt.s32.totalorder %s261, 3
          %s263 = scalar_select %p262, %s261, 3
          %s264 = smul.addr %s263, 4
          %s265 = scalar_lea.vmem %s0, %s264
          %s266 = smul.u32 2, %s17
        $region44: #{tpu_custom_call.1} parent=39 // pred_fallthru
          _
        // Predicated region
        $region45: #{tpu_custom_call.1} parent=39 // pred_check
          %p267 = pneg %p189
        $region46: #{tpu_custom_call.1} parent=39 // pred_check_branch
          %269 = sbr.rel (%p267) target = $region48
        $region47: #{tpu_custom_call.1} parent=39 // pred_region
          %s270 = smul.u32 2, %s17
          %p271 = scmp.lt.s32.totalorder %s270, 3
          %s272 = scalar_select %p271, %s270, 3
          %s273 = smul.addr %s272, 4
          %s274 = scalar_lea.vmem %s7, %s273
          %s275 = smul.u32 2, %s17
        $region48: #{tpu_custom_call.1} parent=39 // pred_fallthru
          _
      $region40: #{tpu_custom_call.1} parent=5 // pred_fallthru
        _
      %p276 = scmp.le.s32.totalorder 1, %s17
      %p277 = scmp.lt.s32.totalorder %s17, 3
      %p278 = pnand %p276, %p277
      %p279 = pneg %p278
      // Predicated region
      $region49: #{tpu_custom_call.1} parent=5 // pred_check
        _
      $region50: #{tpu_custom_call.1} parent=5 // pred_check_branch
        %281 = sbr.rel (%p278) target = $region52
      $region51: #{tpu_custom_call.1} parent=5 // pred_region
        %s282 = ssub.s32 %s17, 1
        %s283 = smul.u32 2, %s22
        %p284 = scmp.lt.s32.totalorder %s283, 3
        %s285 = scalar_select %p284, %s283, 3
        %s286 = smul.addr %s285, 4
        %s287 = scalar_lea.vmem %s0, %s286
        %p288 = pneg %p43
        %p289 = pneg %p40
        %p290 = pneg %p64
        %p291 = pneg %p61
        %p292 = pneg %p85
        %p293 = pneg %p82
        %p294 = pneg %p106
        %p295 = pneg %p103
        %p296 = pneg %p127
        %p297 = pneg %p124
        %p298 = pneg %p148
        %p299 = pneg %p145
        %p300 = pneg %p169
        %p301 = pneg %p166
        %s302 = smul.u32 2, %s22
        %p303 = scmp.lt.s32.totalorder %s302, 3
        %s304 = scalar_select %p303, %s302, 3
        %s305 = smul.addr %s304, 4
        %s306 = scalar_lea.vmem %s7, %s305
        %p307 = pneg %p195
        %p308 = pneg %p192
        %p309 = pneg %p221
        %p310 = pneg %p218
        %s311 = sand.u32 %s208, 1
        %s312 = scalar_lea.sflag [#allocation3], %s311
        %s313 = sand.u32 %s208, 1
        %s314 = smul.addr %s313, 8
        %s315 = scalar_lea.vmem [#allocation2], %s314
        %s316 = smul.u32 2, %s22
        %p317 = scmp.lt.s32.totalorder %s316, 3
        %s318 = scalar_select %p317, %s316, 3
        %s319 = smul.addr %s318, 4
        %s320 = scalar_lea.vmem %s0, %s319
        %s321 = smul.u32 2, %s22
        %s322 = smul.u32 2, %s22
        %p323 = scmp.lt.s32.totalorder %s322, 3
        %s324 = scalar_select %p323, %s322, 3
        %s325 = smul.addr %s324, 4
        %s326 = scalar_lea.vmem %s7, %s325
        %s327 = smul.u32 2, %s22
        %s328 = smul.u32 2, %s22
        %v329 = vld [vmem:[%s320] sm:$0xff]
        %v330 = vld [vmem:[%s3] sm:$0xf]
        %332 = vset.pattern.permute.xlu0 0
        %333 = vperm.xlu0 %332, %v330
        %v334 = vpop.permute.xlu0 %333
        %v337 = vcombine.high %v329, %v329
        %339 = vrot.lane.b32.xlu0 %v329, 17
        %v340 = vpop.permute.xlu0 %339
        %341 = vrot.lane.b32.xlu0 %v337, 17
        %v342 = vpop.permute.xlu0 %341
        %v343 = vlaneseq
        %v344 = vand.u32 %v343, 127
        %vm345 = vcmp.lt.s32.totalorder %v344, 17
        %v346 = vsel %vm345, %v340, %v342
        %v347 = vsel %vm345, %v342, %v340
        %v348 = vld [vmem:[%s1] ss:$8 sm:$0x3]
        %v350 = vlaneseq
        %v351 = vshrl.u32 %v350, 7
        %v352 = vsub.s32 0, %v351
        %v353 = vrot.slane %v348, %v352
        %v354 = vlaneseq
        %v355 = vshrl.u32 %v354, 7
        %v356 = vsub.s32 1, %v355
        %v357 = vrot.slane %v348, %v356
        %v360 = vmul.f32 %v347, %v353
        %v361 = vmul.f32 %v346, %v357
        %v362 = vld [vmem:[%s2] sm:$0xf]
        %363 = vrot.lane.b32.xlu0 %v329, 16
        %v364 = vpop.permute.xlu0 %363
        %365 = vrot.lane.b32.xlu0 %v337, 16
        %v366 = vpop.permute.xlu0 %365
        %vm367 = vcmp.lt.s32.totalorder %v344, 16
        %v368 = vsel %vm367, %v364, %v366
        %v369 = vsel %vm367, %v366, %v364
        %s370 = scalar_lea.vmem %s1, 1
        %v371 = vld [vmem:[%s370] ss:$8 sm:$0x3]
        %v373 = vlaneseq
        %v374 = vshrl.u32 %v373, 7
        %v375 = vsub.s32 0, %v374
        %v376 = vrot.slane %v371, %v375
        %v377 = vlaneseq
        %v378 = vshrl.u32 %v377, 7
        %v379 = vsub.s32 1, %v378
        %v380 = vrot.slane %v371, %v379
        %v383 = vmul.f32 %v369, %v376
        %v384 = vmul.f32 %v368, %v380
        %s385 = scalar_lea.vmem %s2, 4
        %v386 = vld [vmem:[%s385] sm:$0xf]
        %vm387 = vcmask 31744
        %v389 = vsel %vm387, %v386, 0
        %vm391 = vcmask 1043456
        %v393 = vsel %vm391, %v383, 0
        %v396 = vsel %vm391, %v384, 0
        %398 = vmatprep.subr.mxu0 %v396
        %399 = vmatpush1.msra.mxu0 %v393
        %400 = vmatprep.subr.mxu0 0.0
        %401 = vmatpush1.msra.mxu0 0.0
        %402 = vmatprep.subr.mxu0 0.0
        %403 = vmatpush1.msra.mxu0 0.0
        %404 = vmatprep.subr.mxu0 0.0
        %405 = vmatpush1.msra.mxu0 0.0
        %406 = vmatprep.subr.mxu0 0.0
        %407 = vmatpush1.msra.mxu0 0.0
        %408 = vmatprep.subr.mxu0 0.0
        %409 = vmatpush1.msra.mxu0 0.0
        %410 = vmatprep.subr.mxu0 0.0
        %411 = vmatpush1.msra.mxu0 0.0
        %412 = vmatprep.subr.mxu0 0.0
        %413 = vmatpush1.msra.mxu0 0.0
        %414 = vmatprep.subr.mxu0 0.0
        %415 = vmatpush1.msra.mxu0 0.0
        %416 = vmatprep.subr.mxu0 0.0
        %417 = vmatpush1.msra.mxu0 0.0
        %418 = vmatprep.subr.mxu0 0.0
        %419 = vmatpush1.msra.mxu0 0.0
        %420 = vmatprep.subr.mxu0 0.0
        %421 = vmatpush1.msra.mxu0 0.0
        %422 = vmatprep.subr.mxu0 0.0
        %423 = vmatpush1.msra.mxu0 0.0
        %424 = vmatprep.subr.mxu0 0.0
        %425 = vmatpush1.msra.mxu0 0.0
        %426 = vmatprep.subr.mxu0 0.0
        %427 = vmatpush1.msra.mxu0 0.0
        %428 = vmatprep.subr.mxu0 0.0
        %429 = vmatpush1.msra.mxu0 0.0
        %430 = vmatprep.subr.mxu0 0.0
        %431 = vmatpush1.msra.mxu0 0.0
        %432 = vmatprep.subr.mxu0 0.0
        %433 = vmatpush1.msra.mxu0 0.0
        %434 = vmatprep.subr.mxu0 0.0
        %435 = vmatpush1.msra.mxu0 0.0
        %436 = vmatprep.subr.mxu0 0.0
        %437 = vmatpush1.msra.mxu0 0.0
        %438 = vmatprep.subr.mxu0 0.0
        %439 = vmatpush1.msra.mxu0 0.0
        %440 = vmatprep.subr.mxu0 0.0
        %441 = vmatpush1.msra.mxu0 0.0
        %442 = vmatprep.subr.mxu0 0.0
        %443 = vmatpush1.msra.mxu0 0.0
        %444 = vmatprep.subr.mxu0 0.0
        %445 = vmatpush1.msra.mxu0 0.0
        %446 = vmatprep.subr.mxu0 0.0
        %447 = vmatpush1.msra.mxu0 0.0
        %448 = vmatprep.subr.mxu0 0.0
        %449 = vmatpush1.msra.mxu0 0.0
        %450 = vmatprep.subr.mxu0 0.0
        %451 = vmatpush1.msra.mxu0 0.0
        %452 = vmatprep.subr.mxu0 0.0
        %453 = vmatpush1.msra.mxu0 0.0
        %454 = vmatprep.subr.mxu0 0.0
        %455 = vmatpush1.msra.mxu0 0.0
        %456 = vmatprep.subr.mxu0 0.0
        %457 = vmatpush1.msra.mxu0 0.0
        %458 = vmatprep.subr.mxu0 0.0
        %459 = vmatpush1.msra.mxu0 0.0
        %460 = vmatprep.subr.mxu0 0.0
        %461 = vmatpush1.msra.mxu0 0.0
        %462 = vmatprep.mubr.f32.mxu0 0.0
        %463 = vmatmul.mubr.f32.gmra.mrb[0].mxu0 %v389
        %v464 = vpop.f32.mrb[0].mxu0
        %v465 = vadd.f32 0.0, %v464
        %v466 = vpop.f32.mrb[0].mxu0
        %v467 = vadd.f32 0.0, %v466
        %468 = vdwg.mxu0
        %v470 = vsel %vm387, %v362, 0
        %v473 = vsel %vm391, %v360, 0
        %v476 = vsel %vm391, %v361, 0
        %478 = vmatprep.subr.mxu0 %v476
        %479 = vmatpush1.msra.mxu0 %v473
        %480 = vmatprep.subr.mxu0 0.0
        %481 = vmatpush1.msra.mxu0 0.0
        %482 = vmatprep.subr.mxu0 0.0
        %483 = vmatpush1.msra.mxu0 0.0
        %484 = vmatprep.subr.mxu0 0.0
        %485 = vmatpush1.msra.mxu0 0.0
        %486 = vmatprep.subr.mxu0 0.0
        %487 = vmatpush1.msra.mxu0 0.0
        %488 = vmatprep.subr.mxu0 0.0
        %489 = vmatpush1.msra.mxu0 0.0
        %490 = vmatprep.subr.mxu0 0.0
        %491 = vmatpush1.msra.mxu0 0.0
        %492 = vmatprep.subr.mxu0 0.0
        %493 = vmatpush1.msra.mxu0 0.0
        %494 = vmatprep.subr.mxu0 0.0
        %495 = vmatpush1.msra.mxu0 0.0
        %496 = vmatprep.subr.mxu0 0.0
        %497 = vmatpush1.msra.mxu0 0.0
        %498 = vmatprep.subr.mxu0 0.0
        %499 = vmatpush1.msra.mxu0 0.0
        %500 = vmatprep.subr.mxu0 0.0
        %501 = vmatpush1.msra.mxu0 0.0
        %502 = vmatprep.subr.mxu0 0.0
        %503 = vmatpush1.msra.mxu0 0.0
        %504 = vmatprep.subr.mxu0 0.0
        %505 = vmatpush1.msra.mxu0 0.0
        %506 = vmatprep.subr.mxu0 0.0
        %507 = vmatpush1.msra.mxu0 0.0
        %508 = vmatprep.subr.mxu0 0.0
        %509 = vmatpush1.msra.mxu0 0.0
        %510 = vmatprep.subr.mxu0 0.0
        %511 = vmatpush1.msra.mxu0 0.0
        %512 = vmatprep.subr.mxu0 0.0
        %513 = vmatpush1.msra.mxu0 0.0
        %514 = vmatprep.subr.mxu0 0.0
        %515 = vmatpush1.msra.mxu0 0.0
        %516 = vmatprep.subr.mxu0 0.0
        %517 = vmatpush1.msra.mxu0 0.0
        %518 = vmatprep.subr.mxu0 0.0
        %519 = vmatpush1.msra.mxu0 0.0
        %520 = vmatprep.subr.mxu0 0.0
        %521 = vmatpush1.msra.mxu0 0.0
        %522 = vmatprep.subr.mxu0 0.0
        %523 = vmatpush1.msra.mxu0 0.0
        %524 = vmatprep.subr.mxu0 0.0
        %525 = vmatpush1.msra.mxu0 0.0
        %526 = vmatprep.subr.mxu0 0.0
        %527 = vmatpush1.msra.mxu0 0.0
        %528 = vmatprep.subr.mxu0 0.0
        %529 = vmatpush1.msra.mxu0 0.0
        %530 = vmatprep.subr.mxu0 0.0
        %531 = vmatpush1.msra.mxu0 0.0
        %532 = vmatprep.subr.mxu0 0.0
        %533 = vmatpush1.msra.mxu0 0.0
        %534 = vmatprep.subr.mxu0 0.0
        %535 = vmatpush1.msra.mxu0 0.0
        %536 = vmatprep.subr.mxu0 0.0
        %537 = vmatpush1.msra.mxu0 0.0
        %538 = vmatprep.subr.mxu0 0.0
        %539 = vmatpush1.msra.mxu0 0.0
        %540 = vmatprep.subr.mxu0 0.0
        %541 = vmatpush1.msra.mxu0 0.0
        %542 = vmatprep.mubr.f32.mxu0 0.0
        %543 = vmatmul.mubr.f32.gmra.mrb[0].mxu0 %v470
        %v544 = vpop.f32.mrb[0].mxu0
        %v545 = vadd.f32 %v465, %v544
        %v546 = vpop.f32.mrb[0].mxu0
        %v547 = vadd.f32 %v467, %v546
        %548 = vdwg.mxu0
        %549 = vrot.lane.b32.xlu0 %v329, 15
        %v550 = vpop.permute.xlu0 %549
        %551 = vrot.lane.b32.xlu0 %v337, 15
        %v552 = vpop.permute.xlu0 %551
        %vm553 = vcmp.lt.s32.totalorder %v344, 15
        %v554 = vsel %vm553, %v550, %v552
        %v555 = vsel %vm553, %v552, %v550
        %s556 = scalar_lea.vmem %s1, 2
        %v557 = vld [vmem:[%s556] ss:$8 sm:$0x3]
        %v559 = vlaneseq
        %v560 = vshrl.u32 %v559, 7
        %v561 = vsub.s32 0, %v560
        %v562 = vrot.slane %v557, %v561
        %v563 = vlaneseq
        %v564 = vshrl.u32 %v563, 7
        %v565 = vsub.s32 1, %v564
        %v566 = vrot.slane %v557, %v565
        %v569 = vmul.f32 %v555, %v562
        %v570 = vmul.f32 %v554, %v566
        %s571 = scalar_lea.vmem %s2, 8
        %v572 = vld [vmem:[%s571] sm:$0xf]
        %v574 = vsel %vm387, %v572, 0
        %v577 = vsel %vm391, %v569, 0
        %v580 = vsel %vm391, %v570, 0
        %582 = vmatprep.subr.mxu0 %v580
        %583 = vmatpush1.msra.mxu0 %v577
        %584 = vmatprep.subr.mxu0 0.0
        %585 = vmatpush1.msra.mxu0 0.0
        %586 = vmatprep.subr.mxu0 0.0
        %587 = vmatpush1.msra.mxu0 0.0
        %588 = vmatprep.subr.mxu0 0.0
        %589 = vmatpush1.msra.mxu0 0.0
        %590 = vmatprep.subr.mxu0 0.0
        %591 = vmatpush1.msra.mxu0 0.0
        %592 = vmatprep.subr.mxu0 0.0
        %593 = vmatpush1.msra.mxu0 0.0
        %594 = vmatprep.subr.mxu0 0.0
        %595 = vmatpush1.msra.mxu0 0.0
        %596 = vmatprep.subr.mxu0 0.0
        %597 = vmatpush1.msra.mxu0 0.0
        %598 = vmatprep.subr.mxu0 0.0
        %599 = vmatpush1.msra.mxu0 0.0
        %600 = vmatprep.subr.mxu0 0.0
        %601 = vmatpush1.msra.mxu0 0.0
        %602 = vmatprep.subr.mxu0 0.0
        %603 = vmatpush1.msra.mxu0 0.0
        %604 = vmatprep.subr.mxu0 0.0
        %605 = vmatpush1.msra.mxu0 0.0
        %606 = vmatprep.subr.mxu0 0.0
        %607 = vmatpush1.msra.mxu0 0.0
        %608 = vmatprep.subr.mxu0 0.0
        %609 = vmatpush1.msra.mxu0 0.0
        %610 = vmatprep.subr.mxu0 0.0
        %611 = vmatpush1.msra.mxu0 0.0
        %612 = vmatprep.subr.mxu0 0.0
        %613 = vmatpush1.msra.mxu0 0.0
        %614 = vmatprep.subr.mxu0 0.0
        %615 = vmatpush1.msra.mxu0 0.0
        %616 = vmatprep.subr.mxu0 0.0
        %617 = vmatpush1.msra.mxu0 0.0
        %618 = vmatprep.subr.mxu0 0.0
        %619 = vmatpush1.msra.mxu0 0.0
        %620 = vmatprep.subr.mxu0 0.0
        %621 = vmatpush1.msra.mxu0 0.0
        %622 = vmatprep.subr.mxu0 0.0
        %623 = vmatpush1.msra.mxu0 0.0
        %624 = vmatprep.subr.mxu0 0.0
        %625 = vmatpush1.msra.mxu0 0.0
        %626 = vmatprep.subr.mxu0 0.0
        %627 = vmatpush1.msra.mxu0 0.0
        %628 = vmatprep.subr.mxu0 0.0
        %629 = vmatpush1.msra.mxu0 0.0
        %630 = vmatprep.subr.mxu0 0.0
        %631 = vmatpush1.msra.mxu0 0.0
        %632 = vmatprep.subr.mxu0 0.0
        %633 = vmatpush1.msra.mxu0 0.0
        %634 = vmatprep.subr.mxu0 0.0
        %635 = vmatpush1.msra.mxu0 0.0
        %636 = vmatprep.subr.mxu0 0.0
        %637 = vmatpush1.msra.mxu0 0.0
        %638 = vmatprep.subr.mxu0 0.0
        %639 = vmatpush1.msra.mxu0 0.0
        %640 = vmatprep.subr.mxu0 0.0
        %641 = vmatpush1.msra.mxu0 0.0
        %642 = vmatprep.subr.mxu0 0.0
        %643 = vmatpush1.msra.mxu0 0.0
        %644 = vmatprep.subr.mxu0 0.0
        %645 = vmatpush1.msra.mxu0 0.0
        %646 = vmatprep.mubr.f32.mxu0 0.0
        %647 = vmatmul.mubr.f32.gmra.mrb[0].mxu0 %v574
        %v648 = vpop.f32.mrb[0].mxu0
        %v649 = vadd.f32 0.0, %v648
        %v650 = vpop.f32.mrb[0].mxu0
        %v651 = vadd.f32 0.0, %v650
        %652 = vdwg.mxu0
        %v653 = vadd.f32 %v545, %v649
        %v654 = vadd.f32 %v547, %v651
        %655 = vrot.lane.b32.xlu0 %v329, 1
        %v656 = vpop.permute.xlu0 %655
        %657 = vrot.lane.b32.xlu0 %v337, 1
        %v658 = vpop.permute.xlu0 %657
        %vm659 = vcmp.lt.s32.totalorder %v344, 1
        %v660 = vsel %vm659, %v656, %v658
        %v661 = vsel %vm659, %v658, %v656
        %s662 = scalar_lea.vmem %s1, 3
        %v663 = vld [vmem:[%s662] ss:$8 sm:$0x3]
        %v665 = vlaneseq
        %v666 = vshrl.u32 %v665, 7
        %v667 = vsub.s32 0, %v666
        %v668 = vrot.slane %v663, %v667
        %v669 = vlaneseq
        %v670 = vshrl.u32 %v669, 7
        %v671 = vsub.s32 1, %v670
        %v672 = vrot.slane %v663, %v671
        %v675 = vmul.f32 %v661, %v668
        %v676 = vmul.f32 %v660, %v672
        %s677 = scalar_lea.vmem %s2, 12
        %v678 = vld [vmem:[%s677] sm:$0xf]
        %v680 = vsel %vm387, %v678, 0
        %v683 = vsel %vm391, %v675, 0
        %v686 = vsel %vm391, %v676, 0
        %688 = vmatprep.subr.mxu0 %v686
        %689 = vmatpush1.msra.mxu0 %v683
        %690 = vmatprep.subr.mxu0 0.0
        %691 = vmatpush1.msra.mxu0 0.0
        %692 = vmatprep.subr.mxu0 0.0
        %693 = vmatpush1.msra.mxu0 0.0
        %694 = vmatprep.subr.mxu0 0.0
        %695 = vmatpush1.msra.mxu0 0.0
        %696 = vmatprep.subr.mxu0 0.0
        %697 = vmatpush1.msra.mxu0 0.0
        %698 = vmatprep.subr.mxu0 0.0
        %699 = vmatpush1.msra.mxu0 0.0
        %700 = vmatprep.subr.mxu0 0.0
        %701 = vmatpush1.msra.mxu0 0.0
        %702 = vmatprep.subr.mxu0 0.0
        %703 = vmatpush1.msra.mxu0 0.0
        %704 = vmatprep.subr.mxu0 0.0
        %705 = vmatpush1.msra.mxu0 0.0
        %706 = vmatprep.subr.mxu0 0.0
        %707 = vmatpush1.msra.mxu0 0.0
        %708 = vmatprep.subr.mxu0 0.0
        %709 = vmatpush1.msra.mxu0 0.0
        %710 = vmatprep.subr.mxu0 0.0
        %711 = vmatpush1.msra.mxu0 0.0
        %712 = vmatprep.subr.mxu0 0.0
        %713 = vmatpush1.msra.mxu0 0.0
        %714 = vmatprep.subr.mxu0 0.0
        %715 = vmatpush1.msra.mxu0 0.0
        %716 = vmatprep.subr.mxu0 0.0
        %717 = vmatpush1.msra.mxu0 0.0
        %718 = vmatprep.subr.mxu0 0.0
        %719 = vmatpush1.msra.mxu0 0.0
        %720 = vmatprep.subr.mxu0 0.0
        %721 = vmatpush1.msra.mxu0 0.0
        %722 = vmatprep.subr.mxu0 0.0
        %723 = vmatpush1.msra.mxu0 0.0
        %724 = vmatprep.subr.mxu0 0.0
        %725 = vmatpush1.msra.mxu0 0.0
        %726 = vmatprep.subr.mxu0 0.0
        %727 = vmatpush1.msra.mxu0 0.0
        %728 = vmatprep.subr.mxu0 0.0
        %729 = vmatpush1.msra.mxu0 0.0
        %730 = vmatprep.subr.mxu0 0.0
        %731 = vmatpush1.msra.mxu0 0.0
        %732 = vmatprep.subr.mxu0 0.0
        %733 = vmatpush1.msra.mxu0 0.0
        %734 = vmatprep.subr.mxu0 0.0
        %735 = vmatpush1.msra.mxu0 0.0
        %736 = vmatprep.subr.mxu0 0.0
        %737 = vmatpush1.msra.mxu0 0.0
        %738 = vmatprep.subr.mxu0 0.0
        %739 = vmatpush1.msra.mxu0 0.0
        %740 = vmatprep.subr.mxu0 0.0
        %741 = vmatpush1.msra.mxu0 0.0
        %742 = vmatprep.subr.mxu0 0.0
        %743 = vmatpush1.msra.mxu0 0.0
        %744 = vmatprep.subr.mxu0 0.0
        %745 = vmatpush1.msra.mxu0 0.0
        %746 = vmatprep.subr.mxu0 0.0
        %747 = vmatpush1.msra.mxu0 0.0
        %748 = vmatprep.subr.mxu0 0.0
        %749 = vmatpush1.msra.mxu0 0.0
        %750 = vmatprep.subr.mxu0 0.0
        %751 = vmatpush1.msra.mxu0 0.0
        %752 = vmatprep.mubr.f32.mxu0 0.0
        %753 = vmatmul.mubr.f32.gmra.mrb[0].mxu0 %v680
        %v754 = vpop.f32.mrb[0].mxu0
        %v755 = vadd.f32 0.0, %v754
        %v756 = vpop.f32.mrb[0].mxu0
        %v757 = vadd.f32 0.0, %v756
        %758 = vdwg.mxu0
        %v759 = vadd.f32 %v653, %v755
        %v760 = vadd.f32 %v654, %v757
        %s761 = scalar_lea.vmem %s2, 16
        %v762 = vld [vmem:[%s761] sm:$0xf]
        %v764 = vsel %vm387, %v762, 0
        %v766 = vsel %vm391, %v329, 0
        %v768 = vsel %vm391, %v337, 0
        %770 = vmatprep.subr.mxu0 %v768
        %771 = vmatpush1.msra.mxu0 %v766
        %772 = vmatprep.subr.mxu0 0.0
        %773 = vmatpush1.msra.mxu0 0.0
        %774 = vmatprep.subr.mxu0 0.0
        %775 = vmatpush1.msra.mxu0 0.0
        %776 = vmatprep.subr.mxu0 0.0
        %777 = vmatpush1.msra.mxu0 0.0
        %778 = vmatprep.subr.mxu0 0.0
        %779 = vmatpush1.msra.mxu0 0.0
        %780 = vmatprep.subr.mxu0 0.0
        %781 = vmatpush1.msra.mxu0 0.0
        %782 = vmatprep.subr.mxu0 0.0
        %783 = vmatpush1.msra.mxu0 0.0
        %784 = vmatprep.subr.mxu0 0.0
        %785 = vmatpush1.msra.mxu0 0.0
        %786 = vmatprep.subr.mxu0 0.0
        %787 = vmatpush1.msra.mxu0 0.0
        %788 = vmatprep.subr.mxu0 0.0
        %789 = vmatpush1.msra.mxu0 0.0
        %790 = vmatprep.subr.mxu0 0.0
        %791 = vmatpush1.msra.mxu0 0.0
        %792 = vmatprep.subr.mxu0 0.0
        %793 = vmatpush1.msra.mxu0 0.0
        %794 = vmatprep.subr.mxu0 0.0
        %795 = vmatpush1.msra.mxu0 0.0
        %796 = vmatprep.subr.mxu0 0.0
        %797 = vmatpush1.msra.mxu0 0.0
        %798 = vmatprep.subr.mxu0 0.0
        %799 = vmatpush1.msra.mxu0 0.0
        %800 = vmatprep.subr.mxu0 0.0
        %801 = vmatpush1.msra.mxu0 0.0
        %802 = vmatprep.subr.mxu0 0.0
        %803 = vmatpush1.msra.mxu0 0.0
        %804 = vmatprep.subr.mxu0 0.0
        %805 = vmatpush1.msra.mxu0 0.0
        %806 = vmatprep.subr.mxu0 0.0
        %807 = vmatpush1.msra.mxu0 0.0
        %808 = vmatprep.subr.mxu0 0.0
        %809 = vmatpush1.msra.mxu0 0.0
        %810 = vmatprep.subr.mxu0 0.0
        %811 = vmatpush1.msra.mxu0 0.0
        %812 = vmatprep.subr.mxu0 0.0
        %813 = vmatpush1.msra.mxu0 0.0
        %814 = vmatprep.subr.mxu0 0.0
        %815 = vmatpush1.msra.mxu0 0.0
        %816 = vmatprep.subr.mxu0 0.0
        %817 = vmatpush1.msra.mxu0 0.0
        %818 = vmatprep.subr.mxu0 0.0
        %819 = vmatpush1.msra.mxu0 0.0
        %820 = vmatprep.subr.mxu0 0.0
        %821 = vmatpush1.msra.mxu0 0.0
        %822 = vmatprep.subr.mxu0 0.0
        %823 = vmatpush1.msra.mxu0 0.0
        %824 = vmatprep.subr.mxu0 0.0
        %825 = vmatpush1.msra.mxu0 0.0
        %826 = vmatprep.subr.mxu0 0.0
        %827 = vmatpush1.msra.mxu0 0.0
        %828 = vmatprep.subr.mxu0 0.0
        %829 = vmatpush1.msra.mxu0 0.0
        %830 = vmatprep.subr.mxu0 0.0
        %831 = vmatpush1.msra.mxu0 0.0
        %832 = vmatprep.subr.mxu0 0.0
        %833 = vmatpush1.msra.mxu0 0.0
        %834 = vmatprep.mubr.f32.mxu0 0.0
        %835 = vmatmul.mubr.f32.gmra.mrb[0].mxu0 %v764
        %v836 = vpop.f32.mrb[0].mxu0
        %v837 = vadd.f32 0.0, %v836
        %v838 = vpop.f32.mrb[0].mxu0
        %v839 = vadd.f32 0.0, %v838
        %840 = vdwg.mxu0
        %v841 = vadd.f32 %v759, %v837
        %v842 = vadd.f32 %v760, %v839
        %843 = vrot.lane.b32.xlu0 %v329, 127
        %v844 = vpop.permute.xlu0 %843
        %845 = vrot.lane.b32.xlu0 %v337, 127
        %v846 = vpop.permute.xlu0 %845
        %vm847 = vcmp.lt.s32.totalorder %v344, 127
        %v848 = vsel %vm847, %v844, %v846
        %v849 = vsel %vm847, %v846, %v844
        %s850 = scalar_lea.vmem %s1, 5
        %v851 = vld [vmem:[%s850] ss:$8 sm:$0x3]
        %v853 = vlaneseq
        %v854 = vshrl.u32 %v853, 7
        %v855 = vsub.s32 0, %v854
        %v856 = vrot.slane %v851, %v855
        %v857 = vlaneseq
        %v858 = vshrl.u32 %v857, 7
        %v859 = vsub.s32 1, %v858
        %v860 = vrot.slane %v851, %v859
        %v863 = vmul.f32 %v848, %v856
        %v864 = vmul.f32 %v849, %v860
        %s865 = scalar_lea.vmem %s2, 20
        %v866 = vld [vmem:[%s865] sm:$0xf]
        %v868 = vsel %vm387, %v866, 0
        %v871 = vsel %vm391, %v863, 0
        %v874 = vsel %vm391, %v864, 0
        %876 = vmatprep.subr.mxu0 %v874
        %877 = vmatpush1.msra.mxu0 %v871
        %878 = vmatprep.subr.mxu0 0.0
        %879 = vmatpush1.msra.mxu0 0.0
        %880 = vmatprep.subr.mxu0 0.0
        %881 = vmatpush1.msra.mxu0 0.0
        %882 = vmatprep.subr.mxu0 0.0
        %883 = vmatpush1.msra.mxu0 0.0
        %884 = vmatprep.subr.mxu0 0.0
        %885 = vmatpush1.msra.mxu0 0.0
        %886 = vmatprep.subr.mxu0 0.0
        %887 = vmatpush1.msra.mxu0 0.0
        %888 = vmatprep.subr.mxu0 0.0
        %889 = vmatpush1.msra.mxu0 0.0
        %890 = vmatprep.subr.mxu0 0.0
        %891 = vmatpush1.msra.mxu0 0.0
        %892 = vmatprep.subr.mxu0 0.0
        %893 = vmatpush1.msra.mxu0 0.0
        %894 = vmatprep.subr.mxu0 0.0
        %895 = vmatpush1.msra.mxu0 0.0
        %896 = vmatprep.subr.mxu0 0.0
        %897 = vmatpush1.msra.mxu0 0.0
        %898 = vmatprep.subr.mxu0 0.0
        %899 = vmatpush1.msra.mxu0 0.0
        %900 = vmatprep.subr.mxu0 0.0
        %901 = vmatpush1.msra.mxu0 0.0
        %902 = vmatprep.subr.mxu0 0.0
        %903 = vmatpush1.msra.mxu0 0.0
        %904 = vmatprep.subr.mxu0 0.0
        %905 = vmatpush1.msra.mxu0 0.0
        %906 = vmatprep.subr.mxu0 0.0
        %907 = vmatpush1.msra.mxu0 0.0
        %908 = vmatprep.subr.mxu0 0.0
        %909 = vmatpush1.msra.mxu0 0.0
        %910 = vmatprep.subr.mxu0 0.0
        %911 = vmatpush1.msra.mxu0 0.0
        %912 = vmatprep.subr.mxu0 0.0
        %913 = vmatpush1.msra.mxu0 0.0
        %914 = vmatprep.subr.mxu0 0.0
        %915 = vmatpush1.msra.mxu0 0.0
        %916 = vmatprep.subr.mxu0 0.0
        %917 = vmatpush1.msra.mxu0 0.0
        %918 = vmatprep.subr.mxu0 0.0
        %919 = vmatpush1.msra.mxu0 0.0
        %920 = vmatprep.subr.mxu0 0.0
        %921 = vmatpush1.msra.mxu0 0.0
        %922 = vmatprep.subr.mxu0 0.0
        %923 = vmatpush1.msra.mxu0 0.0
        %924 = vmatprep.subr.mxu0 0.0
        %925 = vmatpush1.msra.mxu0 0.0
        %926 = vmatprep.subr.mxu0 0.0
        %927 = vmatpush1.msra.mxu0 0.0
        %928 = vmatprep.subr.mxu0 0.0
        %929 = vmatpush1.msra.mxu0 0.0
        %930 = vmatprep.subr.mxu0 0.0
        %931 = vmatpush1.msra.mxu0 0.0
        %932 = vmatprep.subr.mxu0 0.0
        %933 = vmatpush1.msra.mxu0 0.0
        %934 = vmatprep.subr.mxu0 0.0
        %935 = vmatpush1.msra.mxu0 0.0
        %936 = vmatprep.subr.mxu0 0.0
        %937 = vmatpush1.msra.mxu0 0.0
        %938 = vmatprep.subr.mxu0 0.0
        %939 = vmatpush1.msra.mxu0 0.0
        %940 = vmatprep.mubr.f32.mxu0 0.0
        %941 = vmatmul.mubr.f32.gmra.mrb[0].mxu0 %v868
        %v942 = vpop.f32.mrb[0].mxu0
        %v943 = vadd.f32 0.0, %v942
        %v944 = vpop.f32.mrb[0].mxu0
        %v945 = vadd.f32 0.0, %v944
        %946 = vdwg.mxu0
        %v947 = vadd.f32 %v841, %v943
        %v948 = vadd.f32 %v842, %v945
        %949 = vrot.lane.b32.xlu0 %v329, 113
        %v950 = vpop.permute.xlu0 %949
        %951 = vrot.lane.b32.xlu0 %v337, 113
        %v952 = vpop.permute.xlu0 %951
        %vm953 = vcmp.lt.s32.totalorder %v344, 113
        %v954 = vsel %vm953, %v950, %v952
        %v955 = vsel %vm953, %v952, %v950
        %s956 = scalar_lea.vmem %s1, 6
        %v957 = vld [vmem:[%s956] ss:$8 sm:$0x3]
        %v959 = vlaneseq
        %v960 = vshrl.u32 %v959, 7
        %v961 = vsub.s32 0, %v960
        %v962 = vrot.slane %v957, %v961
        %v963 = vlaneseq
        %v964 = vshrl.u32 %v963, 7
        %v965 = vsub.s32 1, %v964
        %v966 = vrot.slane %v957, %v965
        %v969 = vmul.f32 %v954, %v962
        %v970 = vmul.f32 %v955, %v966
        %s971 = scalar_lea.vmem %s2, 24
        %v972 = vld [vmem:[%s971] sm:$0xf]
        %v974 = vsel %vm387, %v972, 0
        %v977 = vsel %vm391, %v969, 0
        %v980 = vsel %vm391, %v970, 0
        %982 = vmatprep.subr.mxu0 %v980
        %983 = vmatpush1.msra.mxu0 %v977
        %984 = vmatprep.subr.mxu0 0.0
        %985 = vmatpush1.msra.mxu0 0.0
        %986 = vmatprep.subr.mxu0 0.0
        %987 = vmatpush1.msra.mxu0 0.0
        %988 = vmatprep.subr.mxu0 0.0
        %989 = vmatpush1.msra.mxu0 0.0
        %990 = vmatprep.subr.mxu0 0.0
        %991 = vmatpush1.msra.mxu0 0.0
        %992 = vmatprep.subr.mxu0 0.0
        %993 = vmatpush1.msra.mxu0 0.0
        %994 = vmatprep.subr.mxu0 0.0
        %995 = vmatpush1.msra.mxu0 0.0
        %996 = vmatprep.subr.mxu0 0.0
        %997 = vmatpush1.msra.mxu0 0.0
        %998 = vmatprep.subr.mxu0 0.0
        %999 = vmatpush1.msra.mxu0 0.0
        %1000 = vmatprep.subr.mxu0 0.0
        %1001 = vmatpush1.msra.mxu0 0.0
        %1002 = vmatprep.subr.mxu0 0.0
        %1003 = vmatpush1.msra.mxu0 0.0
        %1004 = vmatprep.subr.mxu0 0.0
        %1005 = vmatpush1.msra.mxu0 0.0
        %1006 = vmatprep.subr.mxu0 0.0
        %1007 = vmatpush1.msra.mxu0 0.0
        %1008 = vmatprep.subr.mxu0 0.0
        %1009 = vmatpush1.msra.mxu0 0.0
        %1010 = vmatprep.subr.mxu0 0.0
        %1011 = vmatpush1.msra.mxu0 0.0
        %1012 = vmatprep.subr.mxu0 0.0
        %1013 = vmatpush1.msra.mxu0 0.0
        %1014 = vmatprep.subr.mxu0 0.0
        %1015 = vmatpush1.msra.mxu0 0.0
        %1016 = vmatprep.subr.mxu0 0.0
        %1017 = vmatpush1.msra.mxu0 0.0
        %1018 = vmatprep.subr.mxu0 0.0
        %1019 = vmatpush1.msra.mxu0 0.0
        %1020 = vmatprep.subr.mxu0 0.0
        %1021 = vmatpush1.msra.mxu0 0.0
        %1022 = vmatprep.subr.mxu0 0.0
        %1023 = vmatpush1.msra.mxu0 0.0
        %1024 = vmatprep.subr.mxu0 0.0
        %1025 = vmatpush1.msra.mxu0 0.0
        %1026 = vmatprep.subr.mxu0 0.0
        %1027 = vmatpush1.msra.mxu0 0.0
        %1028 = vmatprep.subr.mxu0 0.0
        %1029 = vmatpush1.msra.mxu0 0.0
        %1030 = vmatprep.subr.mxu0 0.0
        %1031 = vmatpush1.msra.mxu0 0.0
        %1032 = vmatprep.subr.mxu0 0.0
        %1033 = vmatpush1.msra.mxu0 0.0
        %1034 = vmatprep.subr.mxu0 0.0
        %1035 = vmatpush1.msra.mxu0 0.0
        %1036 = vmatprep.subr.mxu0 0.0
        %1037 = vmatpush1.msra.mxu0 0.0
        %1038 = vmatprep.subr.mxu0 0.0
        %1039 = vmatpush1.msra.mxu0 0.0
        %1040 = vmatprep.subr.mxu0 0.0
        %1041 = vmatpush1.msra.mxu0 0.0
        %1042 = vmatprep.subr.mxu0 0.0
        %1043 = vmatpush1.msra.mxu0 0.0
        %1044 = vmatprep.subr.mxu0 0.0
        %1045 = vmatpush1.msra.mxu0 0.0
        %1046 = vmatprep.mubr.f32.mxu0 0.0
        %1047 = vmatmul.mubr.f32.gmra.mrb[0].mxu0 %v974
        %v1048 = vpop.f32.mrb[0].mxu0
        %v1049 = vadd.f32 0.0, %v1048
        %v1050 = vpop.f32.mrb[0].mxu0
        %v1051 = vadd.f32 0.0, %v1050
        %1052 = vdwg.mxu0
        %v1053 = vadd.f32 %v947, %v1049
        %v1054 = vadd.f32 %v948, %v1051
        %1055 = vrot.lane.b32.xlu0 %v329, 112
        %v1056 = vpop.permute.xlu0 %1055
        %1057 = vrot.lane.b32.xlu0 %v337, 112
        %v1058 = vpop.permute.xlu0 %1057
        %vm1059 = vcmp.lt.s32.totalorder %v344, 112
        %v1060 = vsel %vm1059, %v1056, %v1058
        %v1061 = vsel %vm1059, %v1058, %v1056
        %s1062 = scalar_lea.vmem %s1, 7
        %v1063 = vld [vmem:[%s1062] ss:$8 sm:$0x3]
        %v1065 = vlaneseq
        %v1066 = vshrl.u32 %v1065, 7
        %v1067 = vsub.s32 0, %v1066
        %v1068 = vrot.slane %v1063, %v1067
        %v1069 = vlaneseq
        %v1070 = vshrl.u32 %v1069, 7
        %v1071 = vsub.s32 1, %v1070
        %v1072 = vrot.slane %v1063, %v1071
        %v1075 = vmul.f32 %v1060, %v1068
        %v1076 = vmul.f32 %v1061, %v1072
        %s1077 = scalar_lea.vmem %s2, 28
        %v1078 = vld [vmem:[%s1077] sm:$0xf]
        %v1080 = vsel %vm387, %v1078, 0
        %v1083 = vsel %vm391, %v1075, 0
        %v1086 = vsel %vm391, %v1076, 0
        %1088 = vmatprep.subr.mxu0 %v1086
        %1089 = vmatpush1.msra.mxu0 %v1083
        %1090 = vmatprep.subr.mxu0 0.0
        %1091 = vmatpush1.msra.mxu0 0.0
        %1092 = vmatprep.subr.mxu0 0.0
        %1093 = vmatpush1.msra.mxu0 0.0
        %1094 = vmatprep.subr.mxu0 0.0
        %1095 = vmatpush1.msra.mxu0 0.0
        %1096 = vmatprep.subr.mxu0 0.0
        %1097 = vmatpush1.msra.mxu0 0.0
        %1098 = vmatprep.subr.mxu0 0.0
        %1099 = vmatpush1.msra.mxu0 0.0
        %1100 = vmatprep.subr.mxu0 0.0
        %1101 = vmatpush1.msra.mxu0 0.0
        %1102 = vmatprep.subr.mxu0 0.0
        %1103 = vmatpush1.msra.mxu0 0.0
        %1104 = vmatprep.subr.mxu0 0.0
        %1105 = vmatpush1.msra.mxu0 0.0
        %1106 = vmatprep.subr.mxu0 0.0
        %1107 = vmatpush1.msra.mxu0 0.0
        %1108 = vmatprep.subr.mxu0 0.0
        %1109 = vmatpush1.msra.mxu0 0.0
        %1110 = vmatprep.subr.mxu0 0.0
        %1111 = vmatpush1.msra.mxu0 0.0
        %1112 = vmatprep.subr.mxu0 0.0
        %1113 = vmatpush1.msra.mxu0 0.0
        %1114 = vmatprep.subr.mxu0 0.0
        %1115 = vmatpush1.msra.mxu0 0.0
        %1116 = vmatprep.subr.mxu0 0.0
        %1117 = vmatpush1.msra.mxu0 0.0
        %1118 = vmatprep.subr.mxu0 0.0
        %1119 = vmatpush1.msra.mxu0 0.0
        %1120 = vmatprep.subr.mxu0 0.0
        %1121 = vmatpush1.msra.mxu0 0.0
        %1122 = vmatprep.subr.mxu0 0.0
        %1123 = vmatpush1.msra.mxu0 0.0
        %1124 = vmatprep.subr.mxu0 0.0
        %1125 = vmatpush1.msra.mxu0 0.0
        %1126 = vmatprep.subr.mxu0 0.0
        %1127 = vmatpush1.msra.mxu0 0.0
        %1128 = vmatprep.subr.mxu0 0.0
        %1129 = vmatpush1.msra.mxu0 0.0
        %1130 = vmatprep.subr.mxu0 0.0
        %1131 = vmatpush1.msra.mxu0 0.0
        %1132 = vmatprep.subr.mxu0 0.0
        %1133 = vmatpush1.msra.mxu0 0.0
        %1134 = vmatprep.subr.mxu0 0.0
        %1135 = vmatpush1.msra.mxu0 0.0
        %1136 = vmatprep.subr.mxu0 0.0
        %1137 = vmatpush1.msra.mxu0 0.0
        %1138 = vmatprep.subr.mxu0 0.0
        %1139 = vmatpush1.msra.mxu0 0.0
        %1140 = vmatprep.subr.mxu0 0.0
        %1141 = vmatpush1.msra.mxu0 0.0
        %1142 = vmatprep.subr.mxu0 0.0
        %1143 = vmatpush1.msra.mxu0 0.0
        %1144 = vmatprep.subr.mxu0 0.0
        %1145 = vmatpush1.msra.mxu0 0.0
        %1146 = vmatprep.subr.mxu0 0.0
        %1147 = vmatpush1.msra.mxu0 0.0
        %1148 = vmatprep.subr.mxu0 0.0
        %1149 = vmatpush1.msra.mxu0 0.0
        %1150 = vmatprep.subr.mxu0 0.0
        %1151 = vmatpush1.msra.mxu0 0.0
        %1152 = vmatprep.mubr.f32.mxu0 0.0
        %1153 = vmatmul.mubr.f32.gmra.mrb[0].mxu0 %v1080
        %v1154 = vpop.f32.mrb[0].mxu0
        %v1155 = vadd.f32 0.0, %v1154
        %v1156 = vpop.f32.mrb[0].mxu0
        %v1157 = vadd.f32 0.0, %v1156
        %1158 = vdwg.mxu0
        %v1159 = vadd.f32 %v1053, %v1155
        %v1160 = vadd.f32 %v1054, %v1157
        %1161 = vrot.lane.b32.xlu0 %v329, 111
        %v1162 = vpop.permute.xlu0 %1161
        %1163 = vrot.lane.b32.xlu0 %v337, 111
        %v1164 = vpop.permute.xlu0 %1163
        %vm1165 = vcmp.lt.s32.totalorder %v344, 111
        %v1166 = vsel %vm1165, %v1162, %v1164
        %v1167 = vsel %vm1165, %v1164, %v1162
        %s1168 = scalar_lea.vmem %s1, 16
        %v1169 = vld [vmem:[%s1168] ss:$8 sm:$0x3]
        %v1171 = vlaneseq
        %v1172 = vshrl.u32 %v1171, 7
        %v1173 = vsub.s32 0, %v1172
        %v1174 = vrot.slane %v1169, %v1173
        %v1175 = vlaneseq
        %v1176 = vshrl.u32 %v1175, 7
        %v1177 = vsub.s32 1, %v1176
        %v1178 = vrot.slane %v1169, %v1177
        %v1181 = vmul.f32 %v1166, %v1174
        %v1182 = vmul.f32 %v1167, %v1178
        %s1183 = scalar_lea.vmem %s2, 32
        %v1184 = vld [vmem:[%s1183] sm:$0xf]
        %v1186 = vsel %vm387, %v1184, 0
        %v1189 = vsel %vm391, %v1181, 0
        %v1192 = vsel %vm391, %v1182, 0
        %1194 = vmatprep.subr.mxu0 %v1192
        %1195 = vmatpush1.msra.mxu0 %v1189
        %1196 = vmatprep.subr.mxu0 0.0
        %1197 = vmatpush1.msra.mxu0 0.0
        %1198 = vmatprep.subr.mxu0 0.0
        %1199 = vmatpush1.msra.mxu0 0.0
        %1200 = vmatprep.subr.mxu0 0.0
        %1201 = vmatpush1.msra.mxu0 0.0
        %1202 = vmatprep.subr.mxu0 0.0
        %1203 = vmatpush1.msra.mxu0 0.0
        %1204 = vmatprep.subr.mxu0 0.0
        %1205 = vmatpush1.msra.mxu0 0.0
        %1206 = vmatprep.subr.mxu0 0.0
        %1207 = vmatpush1.msra.mxu0 0.0
        %1208 = vmatprep.subr.mxu0 0.0
        %1209 = vmatpush1.msra.mxu0 0.0
        %1210 = vmatprep.subr.mxu0 0.0
        %1211 = vmatpush1.msra.mxu0 0.0
        %1212 = vmatprep.subr.mxu0 0.0
        %1213 = vmatpush1.msra.mxu0 0.0
        %1214 = vmatprep.subr.mxu0 0.0
        %1215 = vmatpush1.msra.mxu0 0.0
        %1216 = vmatprep.subr.mxu0 0.0
        %1217 = vmatpush1.msra.mxu0 0.0
        %1218 = vmatprep.subr.mxu0 0.0
        %1219 = vmatpush1.msra.mxu0 0.0
        %1220 = vmatprep.subr.mxu0 0.0
        %1221 = vmatpush1.msra.mxu0 0.0
        %1222 = vmatprep.subr.mxu0 0.0
        %1223 = vmatpush1.msra.mxu0 0.0
        %1224 = vmatprep.subr.mxu0 0.0
        %1225 = vmatpush1.msra.mxu0 0.0
        %1226 = vmatprep.subr.mxu0 0.0
        %1227 = vmatpush1.msra.mxu0 0.0
        %1228 = vmatprep.subr.mxu0 0.0
        %1229 = vmatpush1.msra.mxu0 0.0
        %1230 = vmatprep.subr.mxu0 0.0
        %1231 = vmatpush1.msra.mxu0 0.0
        %1232 = vmatprep.subr.mxu0 0.0
        %1233 = vmatpush1.msra.mxu0 0.0
        %1234 = vmatprep.subr.mxu0 0.0
        %1235 = vmatpush1.msra.mxu0 0.0
        %1236 = vmatprep.subr.mxu0 0.0
        %1237 = vmatpush1.msra.mxu0 0.0
        %1238 = vmatprep.subr.mxu0 0.0
        %1239 = vmatpush1.msra.mxu0 0.0
        %1240 = vmatprep.subr.mxu0 0.0
        %1241 = vmatpush1.msra.mxu0 0.0
        %1242 = vmatprep.subr.mxu0 0.0
        %1243 = vmatpush1.msra.mxu0 0.0
        %1244 = vmatprep.subr.mxu0 0.0
        %1245 = vmatpush1.msra.mxu0 0.0
        %1246 = vmatprep.subr.mxu0 0.0
        %1247 = vmatpush1.msra.mxu0 0.0
        %1248 = vmatprep.subr.mxu0 0.0
        %1249 = vmatpush1.msra.mxu0 0.0
        %1250 = vmatprep.subr.mxu0 0.0
        %1251 = vmatpush1.msra.mxu0 0.0
        %1252 = vmatprep.subr.mxu0 0.0
        %1253 = vmatpush1.msra.mxu0 0.0
        %1254 = vmatprep.subr.mxu0 0.0
        %1255 = vmatpush1.msra.mxu0 0.0
        %1256 = vmatprep.subr.mxu0 0.0
        %1257 = vmatpush1.msra.mxu0 0.0
        %1258 = vmatprep.mubr.f32.mxu0 0.0
        %1259 = vmatmul.mubr.f32.gmra.mrb[0].mxu0 %v1186
        %v1260 = vpop.f32.mrb[0].mxu0
        %v1261 = vadd.f32 0.0, %v1260
        %v1262 = vpop.f32.mrb[0].mxu0
        %v1263 = vadd.f32 0.0, %v1262
        %1264 = vdwg.mxu0
        %v1265 = vadd.f32 %v1159, %v1261
        %v1266 = vadd.f32 %v1160, %v1263
        %v1267 = vadd.f32 %v1265, %v334
        %v1268 = vadd.f32 %v1266, %v334
        %vm1269 = vcmp.ge.f32.partialorder %v1267, 0.0
        %vm1270 = vcmp.ge.f32.partialorder %v1268, 0.0
        %v1271 = vmul.f32 %v1267, 0.2
        %v1272 = vmul.f32 %v1268, 0.2
        %v1273 = vsel %vm1269, %v1267, %v1271
        %v1274 = vsel %vm1270, %v1268, %v1272
        %1275 = vrot.lane.b32.xlu0 %v1273, 17
        %v1276 = vpop.permute.xlu0 %1275
        %1277 = vrot.lane.b32.xlu0 %v1274, 17
        %v1278 = vpop.permute.xlu0 %1277
        %v1279 = vsel %vm345, %v1276, %v1278
        %v1280 = vsel %vm345, %v1278, %v1276
        %v1281 = vmul.f32 %v1280, %v353
        %v1282 = vmul.f32 %v1279, %v357
        %1283 = vrot.lane.b32.xlu0 %v1273, 16
        %v1284 = vpop.permute.xlu0 %1283
        %1285 = vrot.lane.b32.xlu0 %v1274, 16
        %v1286 = vpop.permute.xlu0 %1285
        %v1287 = vsel %vm367, %v1284, %v1286
        %v1288 = vsel %vm367, %v1286, %v1284
        %v1289 = vmul.f32 %v1288, %v376
        %v1290 = vmul.f32 %v1287, %v380
        %v1292 = vsel %vm391, %v1289, 0
        %v1295 = vsel %vm391, %v1290, 0
        %1297 = vmatprep.subr.mxu0 %v1295
        %1298 = vmatpush1.msra.mxu0 %v1292
        %1299 = vmatprep.subr.mxu0 0.0
        %1300 = vmatpush1.msra.mxu0 0.0
        %1301 = vmatprep.subr.mxu0 0.0
        %1302 = vmatpush1.msra.mxu0 0.0
        %1303 = vmatprep.subr.mxu0 0.0
        %1304 = vmatpush1.msra.mxu0 0.0
        %1305 = vmatprep.subr.mxu0 0.0
        %1306 = vmatpush1.msra.mxu0 0.0
        %1307 = vmatprep.subr.mxu0 0.0
        %1308 = vmatpush1.msra.mxu0 0.0
        %1309 = vmatprep.subr.mxu0 0.0
        %1310 = vmatpush1.msra.mxu0 0.0
        %1311 = vmatprep.subr.mxu0 0.0
        %1312 = vmatpush1.msra.mxu0 0.0
        %1313 = vmatprep.subr.mxu0 0.0
        %1314 = vmatpush1.msra.mxu0 0.0
        %1315 = vmatprep.subr.mxu0 0.0
        %1316 = vmatpush1.msra.mxu0 0.0
        %1317 = vmatprep.subr.mxu0 0.0
        %1318 = vmatpush1.msra.mxu0 0.0
        %1319 = vmatprep.subr.mxu0 0.0
        %1320 = vmatpush1.msra.mxu0 0.0
        %1321 = vmatprep.subr.mxu0 0.0
        %1322 = vmatpush1.msra.mxu0 0.0
        %1323 = vmatprep.subr.mxu0 0.0
        %1324 = vmatpush1.msra.mxu0 0.0
        %1325 = vmatprep.subr.mxu0 0.0
        %1326 = vmatpush1.msra.mxu0 0.0
        %1327 = vmatprep.subr.mxu0 0.0
        %1328 = vmatpush1.msra.mxu0 0.0
        %1329 = vmatprep.subr.mxu0 0.0
        %1330 = vmatpush1.msra.mxu0 0.0
        %1331 = vmatprep.subr.mxu0 0.0
        %1332 = vmatpush1.msra.mxu0 0.0
        %1333 = vmatprep.subr.mxu0 0.0
        %1334 = vmatpush1.msra.mxu0 0.0
        %1335 = vmatprep.subr.mxu0 0.0
        %1336 = vmatpush1.msra.mxu0 0.0
        %1337 = vmatprep.subr.mxu0 0.0
        %1338 = vmatpush1.msra.mxu0 0.0
        %1339 = vmatprep.subr.mxu0 0.0
        %1340 = vmatpush1.msra.mxu0 0.0
        %1341 = vmatprep.subr.mxu0 0.0
        %1342 = vmatpush1.msra.mxu0 0.0
        %1343 = vmatprep.subr.mxu0 0.0
        %1344 = vmatpush1.msra.mxu0 0.0
        %1345 = vmatprep.subr.mxu0 0.0
        %1346 = vmatpush1.msra.mxu0 0.0
        %1347 = vmatprep.subr.mxu0 0.0
        %1348 = vmatpush1.msra.mxu0 0.0
        %1349 = vmatprep.subr.mxu0 0.0
        %1350 = vmatpush1.msra.mxu0 0.0
        %1351 = vmatprep.subr.mxu0 0.0
        %1352 = vmatpush1.msra.mxu0 0.0
        %1353 = vmatprep.subr.mxu0 0.0
        %1354 = vmatpush1.msra.mxu0 0.0
        %1355 = vmatprep.subr.mxu0 0.0
        %1356 = vmatpush1.msra.mxu0 0.0
        %1357 = vmatprep.subr.mxu0 0.0
        %1358 = vmatpush1.msra.mxu0 0.0
        %1359 = vmatprep.subr.mxu0 0.0
        %1360 = vmatpush1.msra.mxu0 0.0
        %1361 = vmatprep.mubr.f32.mxu0 0.0
        %1362 = vmatmul.mubr.f32.gmra.mrb[0].mxu0 %v389
        %v1363 = vpop.f32.mrb[0].mxu0
        %v1364 = vadd.f32 0.0, %v1363
        %v1365 = vpop.f32.mrb[0].mxu0
        %v1366 = vadd.f32 0.0, %v1365
        %1367 = vdwg.mxu0
        %v1369 = vsel %vm391, %v1281, 0
        %v1372 = vsel %vm391, %v1282, 0
        %1374 = vmatprep.subr.mxu0 %v1372
        %1375 = vmatpush1.msra.mxu0 %v1369
        %1376 = vmatprep.subr.mxu0 0.0
        %1377 = vmatpush1.msra.mxu0 0.0
        %1378 = vmatprep.subr.mxu0 0.0
        %1379 = vmatpush1.msra.mxu0 0.0
        %1380 = vmatprep.subr.mxu0 0.0
        %1381 = vmatpush1.msra.mxu0 0.0
        %1382 = vmatprep.subr.mxu0 0.0
        %1383 = vmatpush1.msra.mxu0 0.0
        %1384 = vmatprep.subr.mxu0 0.0
        %1385 = vmatpush1.msra.mxu0 0.0
        %1386 = vmatprep.subr.mxu0 0.0
        %1387 = vmatpush1.msra.mxu0 0.0
        %1388 = vmatprep.subr.mxu0 0.0
        %1389 = vmatpush1.msra.mxu0 0.0
        %1390 = vmatprep.subr.mxu0 0.0
        %1391 = vmatpush1.msra.mxu0 0.0
        %1392 = vmatprep.subr.mxu0 0.0
        %1393 = vmatpush1.msra.mxu0 0.0
        %1394 = vmatprep.subr.mxu0 0.0
        %1395 = vmatpush1.msra.mxu0 0.0
        %1396 = vmatprep.subr.mxu0 0.0
        %1397 = vmatpush1.msra.mxu0 0.0
        %1398 = vmatprep.subr.mxu0 0.0
        %1399 = vmatpush1.msra.mxu0 0.0
        %1400 = vmatprep.subr.mxu0 0.0
        %1401 = vmatpush1.msra.mxu0 0.0
        %1402 = vmatprep.subr.mxu0 0.0
        %1403 = vmatpush1.msra.mxu0 0.0
        %1404 = vmatprep.subr.mxu0 0.0
        %1405 = vmatpush1.msra.mxu0 0.0
        %1406 = vmatprep.subr.mxu0 0.0
        %1407 = vmatpush1.msra.mxu0 0.0
        %1408 = vmatprep.subr.mxu0 0.0
        %1409 = vmatpush1.msra.mxu0 0.0
        %1410 = vmatprep.subr.mxu0 0.0
        %1411 = vmatpush1.msra.mxu0 0.0
        %1412 = vmatprep.subr.mxu0 0.0
        %1413 = vmatpush1.msra.mxu0 0.0
        %1414 = vmatprep.subr.mxu0 0.0
        %1415 = vmatpush1.msra.mxu0 0.0
        %1416 = vmatprep.subr.mxu0 0.0
        %1417 = vmatpush1.msra.mxu0 0.0
        %1418 = vmatprep.subr.mxu0 0.0
        %1419 = vmatpush1.msra.mxu0 0.0
        %1420 = vmatprep.subr.mxu0 0.0
        %1421 = vmatpush1.msra.mxu0 0.0
        %1422 = vmatprep.subr.mxu0 0.0
        %1423 = vmatpush1.msra.mxu0 0.0
        %1424 = vmatprep.subr.mxu0 0.0
        %1425 = vmatpush1.msra.mxu0 0.0
        %1426 = vmatprep.subr.mxu0 0.0
        %1427 = vmatpush1.msra.mxu0 0.0
        %1428 = vmatprep.subr.mxu0 0.0
        %1429 = vmatpush1.msra.mxu0 0.0
        %1430 = vmatprep.subr.mxu0 0.0
        %1431 = vmatpush1.msra.mxu0 0.0
        %1432 = vmatprep.subr.mxu0 0.0
        %1433 = vmatpush1.msra.mxu0 0.0
        %1434 = vmatprep.subr.mxu0 0.0
        %1435 = vmatpush1.msra.mxu0 0.0
        %1436 = vmatprep.subr.mxu0 0.0
        %1437 = vmatpush1.msra.mxu0 0.0
        %1438 = vmatprep.mubr.f32.mxu0 0.0
        %1439 = vmatmul.mubr.f32.gmra.mrb[0].mxu0 %v470
        %v1440 = vpop.f32.mrb[0].mxu0
        %v1441 = vadd.f32 %v1364, %v1440
        %v1442 = vpop.f32.mrb[0].mxu0
        %v1443 = vadd.f32 %v1366, %v1442
        %1444 = vdwg.mxu0
        %1445 = vrot.lane.b32.xlu0 %v1273, 15
        %v1446 = vpop.permute.xlu0 %1445
        %1447 = vrot.lane.b32.xlu0 %v1274, 15
        %v1448 = vpop.permute.xlu0 %1447
        %v1449 = vsel %vm553, %v1446, %v1448
        %v1450 = vsel %vm553, %v1448, %v1446
        %v1451 = vmul.f32 %v1450, %v562
        %v1452 = vmul.f32 %v1449, %v566
        %v1454 = vsel %vm391, %v1451, 0
        %v1457 = vsel %vm391, %v1452, 0
        %1459 = vmatprep.subr.mxu0 %v1457
        %1460 = vmatpush1.msra.mxu0 %v1454
        %1461 = vmatprep.subr.mxu0 0.0
        %1462 = vmatpush1.msra.mxu0 0.0
        %1463 = vmatprep.subr.mxu0 0.0
        %1464 = vmatpush1.msra.mxu0 0.0
        %1465 = vmatprep.subr.mxu0 0.0
        %1466 = vmatpush1.msra.mxu0 0.0
        %1467 = vmatprep.subr.mxu0 0.0
        %1468 = vmatpush1.msra.mxu0 0.0
        %1469 = vmatprep.subr.mxu0 0.0
        %1470 = vmatpush1.msra.mxu0 0.0
        %1471 = vmatprep.subr.mxu0 0.0
        %1472 = vmatpush1.msra.mxu0 0.0
        %1473 = vmatprep.subr.mxu0 0.0
        %1474 = vmatpush1.msra.mxu0 0.0
        %1475 = vmatprep.subr.mxu0 0.0
        %1476 = vmatpush1.msra.mxu0 0.0
        %1477 = vmatprep.subr.mxu0 0.0
        %1478 = vmatpush1.msra.mxu0 0.0
        %1479 = vmatprep.subr.mxu0 0.0
        %1480 = vmatpush1.msra.mxu0 0.0
        %1481 = vmatprep.subr.mxu0 0.0
        %1482 = vmatpush1.msra.mxu0 0.0
        %1483 = vmatprep.subr.mxu0 0.0
        %1484 = vmatpush1.msra.mxu0 0.0
        %1485 = vmatprep.subr.mxu0 0.0
        %1486 = vmatpush1.msra.mxu0 0.0
        %1487 = vmatprep.subr.mxu0 0.0
        %1488 = vmatpush1.msra.mxu0 0.0
        %1489 = vmatprep.subr.mxu0 0.0
        %1490 = vmatpush1.msra.mxu0 0.0
        %1491 = vmatprep.subr.mxu0 0.0
        %1492 = vmatpush1.msra.mxu0 0.0
        %1493 = vmatprep.subr.mxu0 0.0
        %1494 = vmatpush1.msra.mxu0 0.0
        %1495 = vmatprep.subr.mxu0 0.0
        %1496 = vmatpush1.msra.mxu0 0.0
        %1497 = vmatprep.subr.mxu0 0.0
        %1498 = vmatpush1.msra.mxu0 0.0
        %1499 = vmatprep.subr.mxu0 0.0
        %1500 = vmatpush1.msra.mxu0 0.0
        %1501 = vmatprep.subr.mxu0 0.0
        %1502 = vmatpush1.msra.mxu0 0.0
        %1503 = vmatprep.subr.mxu0 0.0
        %1504 = vmatpush1.msra.mxu0 0.0
        %1505 = vmatprep.subr.mxu0 0.0
        %1506 = vmatpush1.msra.mxu0 0.0
        %1507 = vmatprep.subr.mxu0 0.0
        %1508 = vmatpush1.msra.mxu0 0.0
        %1509 = vmatprep.subr.mxu0 0.0
        %1510 = vmatpush1.msra.mxu0 0.0
        %1511 = vmatprep.subr.mxu0 0.0
        %1512 = vmatpush1.msra.mxu0 0.0
        %1513 = vmatprep.subr.mxu0 0.0
        %1514 = vmatpush1.msra.mxu0 0.0
        %1515 = vmatprep.subr.mxu0 0.0
        %1516 = vmatpush1.msra.mxu0 0.0
        %1517 = vmatprep.subr.mxu0 0.0
        %1518 = vmatpush1.msra.mxu0 0.0
        %1519 = vmatprep.subr.mxu0 0.0
        %1520 = vmatpush1.msra.mxu0 0.0
        %1521 = vmatprep.subr.mxu0 0.0
        %1522 = vmatpush1.msra.mxu0 0.0
        %1523 = vmatprep.mubr.f32.mxu0 0.0
        %1524 = vmatmul.mubr.f32.gmra.mrb[0].mxu0 %v574
        %v1525 = vpop.f32.mrb[0].mxu0
        %v1526 = vadd.f32 0.0, %v1525
        %v1527 = vpop.f32.mrb[0].mxu0
        %v1528 = vadd.f32 0.0, %v1527
        %1529 = vdwg.mxu0
        %v1530 = vadd.f32 %v1441, %v1526
        %v1531 = vadd.f32 %v1443, %v1528
        %1532 = vrot.lane.b32.xlu0 %v1273, 1
        %v1533 = vpop.permute.xlu0 %1532
        %1534 = vrot.lane.b32.xlu0 %v1274, 1
        %v1535 = vpop.permute.xlu0 %1534
        %v1536 = vsel %vm659, %v1533, %v1535
        %v1537 = vsel %vm659, %v1535, %v1533
        %v1538 = vmul.f32 %v1537, %v668
        %v1539 = vmul.f32 %v1536, %v672
        %v1541 = vsel %vm391, %v1538, 0
        %v1544 = vsel %vm391, %v1539, 0
        %1546 = vmatprep.subr.mxu0 %v1544
        %1547 = vmatpush1.msra.mxu0 %v1541
        %1548 = vmatprep.subr.mxu0 0.0
        %1549 = vmatpush1.msra.mxu0 0.0
        %1550 = vmatprep.subr.mxu0 0.0
        %1551 = vmatpush1.msra.mxu0 0.0
        %1552 = vmatprep.subr.mxu0 0.0
        %1553 = vmatpush1.msra.mxu0 0.0
        %1554 = vmatprep.subr.mxu0 0.0
        %1555 = vmatpush1.msra.mxu0 0.0
        %1556 = vmatprep.subr.mxu0 0.0
        %1557 = vmatpush1.msra.mxu0 0.0
        %1558 = vmatprep.subr.mxu0 0.0
        %1559 = vmatpush1.msra.mxu0 0.0
        %1560 = vmatprep.subr.mxu0 0.0
        %1561 = vmatpush1.msra.mxu0 0.0
        %1562 = vmatprep.subr.mxu0 0.0
        %1563 = vmatpush1.msra.mxu0 0.0
        %1564 = vmatprep.subr.mxu0 0.0
        %1565 = vmatpush1.msra.mxu0 0.0
        %1566 = vmatprep.subr.mxu0 0.0
        %1567 = vmatpush1.msra.mxu0 0.0
        %1568 = vmatprep.subr.mxu0 0.0
        %1569 = vmatpush1.msra.mxu0 0.0
        %1570 = vmatprep.subr.mxu0 0.0
        %1571 = vmatpush1.msra.mxu0 0.0
        %1572 = vmatprep.subr.mxu0 0.0
        %1573 = vmatpush1.msra.mxu0 0.0
        %1574 = vmatprep.subr.mxu0 0.0
        %1575 = vmatpush1.msra.mxu0 0.0
        %1576 = vmatprep.subr.mxu0 0.0
        %1577 = vmatpush1.msra.mxu0 0.0
        %1578 = vmatprep.subr.mxu0 0.0
        %1579 = vmatpush1.msra.mxu0 0.0
        %1580 = vmatprep.subr.mxu0 0.0
        %1581 = vmatpush1.msra.mxu0 0.0
        %1582 = vmatprep.subr.mxu0 0.0
        %1583 = vmatpush1.msra.mxu0 0.0
        %1584 = vmatprep.subr.mxu0 0.0
        %1585 = vmatpush1.msra.mxu0 0.0
        %1586 = vmatprep.subr.mxu0 0.0
        %1587 = vmatpush1.msra.mxu0 0.0
        %1588 = vmatprep.subr.mxu0 0.0
        %1589 = vmatpush1.msra.mxu0 0.0
        %1590 = vmatprep.subr.mxu0 0.0
        %1591 = vmatpush1.msra.mxu0 0.0
        %1592 = vmatprep.subr.mxu0 0.0
        %1593 = vmatpush1.msra.mxu0 0.0
        %1594 = vmatprep.subr.mxu0 0.0
        %1595 = vmatpush1.msra.mxu0 0.0
        %1596 = vmatprep.subr.mxu0 0.0
        %1597 = vmatpush1.msra.mxu0 0.0
        %1598 = vmatprep.subr.mxu0 0.0
        %1599 = vmatpush1.msra.mxu0 0.0
        %1600 = vmatprep.subr.mxu0 0.0
        %1601 = vmatpush1.msra.mxu0 0.0
        %1602 = vmatprep.subr.mxu0 0.0
        %1603 = vmatpush1.msra.mxu0 0.0
        %1604 = vmatprep.subr.mxu0 0.0
        %1605 = vmatpush1.msra.mxu0 0.0
        %1606 = vmatprep.subr.mxu0 0.0
        %1607 = vmatpush1.msra.mxu0 0.0
        %1608 = vmatprep.subr.mxu0 0.0
        %1609 = vmatpush1.msra.mxu0 0.0
        %1610 = vmatprep.mubr.f32.mxu0 0.0
        %1611 = vmatmul.mubr.f32.gmra.mrb[0].mxu0 %v680
        %v1612 = vpop.f32.mrb[0].mxu0
        %v1613 = vadd.f32 0.0, %v1612
        %v1614 = vpop.f32.mrb[0].mxu0
        %v1615 = vadd.f32 0.0, %v1614
        %1616 = vdwg.mxu0
        %v1617 = vadd.f32 %v1530, %v1613
        %v1618 = vadd.f32 %v1531, %v1615
        %v1620 = vsel %vm391, %v1273, 0
        %v1623 = vsel %vm391, %v1274, 0
        %1625 = vmatprep.subr.mxu0 %v1623
        %1626 = vmatpush1.msra.mxu0 %v1620
        %1627 = vmatprep.subr.mxu0 0.0
        %1628 = vmatpush1.msra.mxu0 0.0
        %1629 = vmatprep.subr.mxu0 0.0
        %1630 = vmatpush1.msra.mxu0 0.0
        %1631 = vmatprep.subr.mxu0 0.0
        %1632 = vmatpush1.msra.mxu0 0.0
        %1633 = vmatprep.subr.mxu0 0.0
        %1634 = vmatpush1.msra.mxu0 0.0
        %1635 = vmatprep.subr.mxu0 0.0
        %1636 = vmatpush1.msra.mxu0 0.0
        %1637 = vmatprep.subr.mxu0 0.0
        %1638 = vmatpush1.msra.mxu0 0.0
        %1639 = vmatprep.subr.mxu0 0.0
        %1640 = vmatpush1.msra.mxu0 0.0
        %1641 = vmatprep.subr.mxu0 0.0
        %1642 = vmatpush1.msra.mxu0 0.0
        %1643 = vmatprep.subr.mxu0 0.0
        %1644 = vmatpush1.msra.mxu0 0.0
        %1645 = vmatprep.subr.mxu0 0.0
        %1646 = vmatpush1.msra.mxu0 0.0
        %1647 = vmatprep.subr.mxu0 0.0
        %1648 = vmatpush1.msra.mxu0 0.0
        %1649 = vmatprep.subr.mxu0 0.0
        %1650 = vmatpush1.msra.mxu0 0.0
        %1651 = vmatprep.subr.mxu0 0.0
        %1652 = vmatpush1.msra.mxu0 0.0
        %1653 = vmatprep.subr.mxu0 0.0
        %1654 = vmatpush1.msra.mxu0 0.0
        %1655 = vmatprep.subr.mxu0 0.0
        %1656 = vmatpush1.msra.mxu0 0.0
        %1657 = vmatprep.subr.mxu0 0.0
        %1658 = vmatpush1.msra.mxu0 0.0
        %1659 = vmatprep.subr.mxu0 0.0
        %1660 = vmatpush1.msra.mxu0 0.0
        %1661 = vmatprep.subr.mxu0 0.0
        %1662 = vmatpush1.msra.mxu0 0.0
        %1663 = vmatprep.subr.mxu0 0.0
        %1664 = vmatpush1.msra.mxu0 0.0
        %1665 = vmatprep.subr.mxu0 0.0
        %1666 = vmatpush1.msra.mxu0 0.0
        %1667 = vmatprep.subr.mxu0 0.0
        %1668 = vmatpush1.msra.mxu0 0.0
        %1669 = vmatprep.subr.mxu0 0.0
        %1670 = vmatpush1.msra.mxu0 0.0
        %1671 = vmatprep.subr.mxu0 0.0
        %1672 = vmatpush1.msra.mxu0 0.0
        %1673 = vmatprep.subr.mxu0 0.0
        %1674 = vmatpush1.msra.mxu0 0.0
        %1675 = vmatprep.subr.mxu0 0.0
        %1676 = vmatpush1.msra.mxu0 0.0
        %1677 = vmatprep.subr.mxu0 0.0
        %1678 = vmatpush1.msra.mxu0 0.0
        %1679 = vmatprep.subr.mxu0 0.0
        %1680 = vmatpush1.msra.mxu0 0.0
        %1681 = vmatprep.subr.mxu0 0.0
        %1682 = vmatpush1.msra.mxu0 0.0
        %1683 = vmatprep.subr.mxu0 0.0
        %1684 = vmatpush1.msra.mxu0 0.0
        %1685 = vmatprep.subr.mxu0 0.0
        %1686 = vmatpush1.msra.mxu0 0.0
        %1687 = vmatprep.subr.mxu0 0.0
        %1688 = vmatpush1.msra.mxu0 0.0
        %1689 = vmatprep.mubr.f32.mxu0 0.0
        %1690 = vmatmul.mubr.f32.gmra.mrb[0].mxu0 %v764
        %v1691 = vpop.f32.mrb[0].mxu0
        %v1692 = vadd.f32 0.0, %v1691
        %v1693 = vpop.f32.mrb[0].mxu0
        %v1694 = vadd.f32 0.0, %v1693
        %1695 = vdwg.mxu0
        %v1696 = vadd.f32 %v1617, %v1692
        %v1697 = vadd.f32 %v1618, %v1694
        %1698 = vrot.lane.b32.xlu0 %v1273, 127
        %v1699 = vpop.permute.xlu0 %1698
        %1700 = vrot.lane.b32.xlu0 %v1274, 127
        %v1701 = vpop.permute.xlu0 %1700
        %v1702 = vsel %vm847, %v1699, %v1701
        %v1703 = vsel %vm847, %v1701, %v1699
        %v1704 = vmul.f32 %v1702, %v856
        %v1705 = vmul.f32 %v1703, %v860
        %v1707 = vsel %vm391, %v1704, 0
        %v1710 = vsel %vm391, %v1705, 0
        %1712 = vmatprep.subr.mxu0 %v1710
        %1713 = vmatpush1.msra.mxu0 %v1707
        %1714 = vmatprep.subr.mxu0 0.0
        %1715 = vmatpush1.msra.mxu0 0.0
        %1716 = vmatprep.subr.mxu0 0.0
        %1717 = vmatpush1.msra.mxu0 0.0
        %1718 = vmatprep.subr.mxu0 0.0
        %1719 = vmatpush1.msra.mxu0 0.0
        %1720 = vmatprep.subr.mxu0 0.0
        %1721 = vmatpush1.msra.mxu0 0.0
        %1722 = vmatprep.subr.mxu0 0.0
        %1723 = vmatpush1.msra.mxu0 0.0
        %1724 = vmatprep.subr.mxu0 0.0
        %1725 = vmatpush1.msra.mxu0 0.0
        %1726 = vmatprep.subr.mxu0 0.0
        %1727 = vmatpush1.msra.mxu0 0.0
        %1728 = vmatprep.subr.mxu0 0.0
        %1729 = vmatpush1.msra.mxu0 0.0
        %1730 = vmatprep.subr.mxu0 0.0
        %1731 = vmatpush1.msra.mxu0 0.0
        %1732 = vmatprep.subr.mxu0 0.0
        %1733 = vmatpush1.msra.mxu0 0.0
        %1734 = vmatprep.subr.mxu0 0.0
        %1735 = vmatpush1.msra.mxu0 0.0
        %1736 = vmatprep.subr.mxu0 0.0
        %1737 = vmatpush1.msra.mxu0 0.0
        %1738 = vmatprep.subr.mxu0 0.0
        %1739 = vmatpush1.msra.mxu0 0.0
        %1740 = vmatprep.subr.mxu0 0.0
        %1741 = vmatpush1.msra.mxu0 0.0
        %1742 = vmatprep.subr.mxu0 0.0
        %1743 = vmatpush1.msra.mxu0 0.0
        %1744 = vmatprep.subr.mxu0 0.0
        %1745 = vmatpush1.msra.mxu0 0.0
        %1746 = vmatprep.subr.mxu0 0.0
        %1747 = vmatpush1.msra.mxu0 0.0
        %1748 = vmatprep.subr.mxu0 0.0
        %1749 = vmatpush1.msra.mxu0 0.0
        %1750 = vmatprep.subr.mxu0 0.0
        %1751 = vmatpush1.msra.mxu0 0.0
        %1752 = vmatprep.subr.mxu0 0.0
        %1753 = vmatpush1.msra.mxu0 0.0
        %1754 = vmatprep.subr.mxu0 0.0
        %1755 = vmatpush1.msra.mxu0 0.0
        %1756 = vmatprep.subr.mxu0 0.0
        %1757 = vmatpush1.msra.mxu0 0.0
        %1758 = vmatprep.subr.mxu0 0.0
        %1759 = vmatpush1.msra.mxu0 0.0
        %1760 = vmatprep.subr.mxu0 0.0
        %1761 = vmatpush1.msra.mxu0 0.0
        %1762 = vmatprep.subr.mxu0 0.0
        %1763 = vmatpush1.msra.mxu0 0.0
        %1764 = vmatprep.subr.mxu0 0.0
        %1765 = vmatpush1.msra.mxu0 0.0
        %1766 = vmatprep.subr.mxu0 0.0
        %1767 = vmatpush1.msra.mxu0 0.0
        %1768 = vmatprep.subr.mxu0 0.0
        %1769 = vmatpush1.msra.mxu0 0.0
        %1770 = vmatprep.subr.mxu0 0.0
        %1771 = vmatpush1.msra.mxu0 0.0
        %1772 = vmatprep.subr.mxu0 0.0
        %1773 = vmatpush1.msra.mxu0 0.0
        %1774 = vmatprep.subr.mxu0 0.0
        %1775 = vmatpush1.msra.mxu0 0.0
        %1776 = vmatprep.mubr.f32.mxu0 0.0
        %1777 = vmatmul.mubr.f32.gmra.mrb[0].mxu0 %v868
        %v1778 = vpop.f32.mrb[0].mxu0
        %v1779 = vadd.f32 0.0, %v1778
        %v1780 = vpop.f32.mrb[0].mxu0
        %v1781 = vadd.f32 0.0, %v1780
        %1782 = vdwg.mxu0
        %v1783 = vadd.f32 %v1696, %v1779
        %v1784 = vadd.f32 %v1697, %v1781
        %1785 = vrot.lane.b32.xlu0 %v1273, 113
        %v1786 = vpop.permute.xlu0 %1785
        %1787 = vrot.lane.b32.xlu0 %v1274, 113
        %v1788 = vpop.permute.xlu0 %1787
        %v1789 = vsel %vm953, %v1786, %v1788
        %v1790 = vsel %vm953, %v1788, %v1786
        %v1791 = vmul.f32 %v1789, %v962
        %v1792 = vmul.f32 %v1790, %v966
        %v1794 = vsel %vm391, %v1791, 0
        %v1797 = vsel %vm391, %v1792, 0
        %1799 = vmatprep.subr.mxu0 %v1797
        %1800 = vmatpush1.msra.mxu0 %v1794
        %1801 = vmatprep.subr.mxu0 0.0
        %1802 = vmatpush1.msra.mxu0 0.0
        %1803 = vmatprep.subr.mxu0 0.0
        %1804 = vmatpush1.msra.mxu0 0.0
        %1805 = vmatprep.subr.mxu0 0.0
        %1806 = vmatpush1.msra.mxu0 0.0
        %1807 = vmatprep.subr.mxu0 0.0
        %1808 = vmatpush1.msra.mxu0 0.0
        %1809 = vmatprep.subr.mxu0 0.0
        %1810 = vmatpush1.msra.mxu0 0.0
        %1811 = vmatprep.subr.mxu0 0.0
        %1812 = vmatpush1.msra.mxu0 0.0
        %1813 = vmatprep.subr.mxu0 0.0
        %1814 = vmatpush1.msra.mxu0 0.0
        %1815 = vmatprep.subr.mxu0 0.0
        %1816 = vmatpush1.msra.mxu0 0.0
        %1817 = vmatprep.subr.mxu0 0.0
        %1818 = vmatpush1.msra.mxu0 0.0
        %1819 = vmatprep.subr.mxu0 0.0
        %1820 = vmatpush1.msra.mxu0 0.0
        %1821 = vmatprep.subr.mxu0 0.0
        %1822 = vmatpush1.msra.mxu0 0.0
        %1823 = vmatprep.subr.mxu0 0.0
        %1824 = vmatpush1.msra.mxu0 0.0
        %1825 = vmatprep.subr.mxu0 0.0
        %1826 = vmatpush1.msra.mxu0 0.0
        %1827 = vmatprep.subr.mxu0 0.0
        %1828 = vmatpush1.msra.mxu0 0.0
        %1829 = vmatprep.subr.mxu0 0.0
        %1830 = vmatpush1.msra.mxu0 0.0
        %1831 = vmatprep.subr.mxu0 0.0
        %1832 = vmatpush1.msra.mxu0 0.0
        %1833 = vmatprep.subr.mxu0 0.0
        %1834 = vmatpush1.msra.mxu0 0.0
        %1835 = vmatprep.subr.mxu0 0.0
        %1836 = vmatpush1.msra.mxu0 0.0
        %1837 = vmatprep.subr.mxu0 0.0
        %1838 = vmatpush1.msra.mxu0 0.0
        %1839 = vmatprep.subr.mxu0 0.0
        %1840 = vmatpush1.msra.mxu0 0.0
        %1841 = vmatprep.subr.mxu0 0.0
        %1842 = vmatpush1.msra.mxu0 0.0
        %1843 = vmatprep.subr.mxu0 0.0
        %1844 = vmatpush1.msra.mxu0 0.0
        %1845 = vmatprep.subr.mxu0 0.0
        %1846 = vmatpush1.msra.mxu0 0.0
        %1847 = vmatprep.subr.mxu0 0.0
        %1848 = vmatpush1.msra.mxu0 0.0
        %1849 = vmatprep.subr.mxu0 0.0
        %1850 = vmatpush1.msra.mxu0 0.0
        %1851 = vmatprep.subr.mxu0 0.0
        %1852 = vmatpush1.msra.mxu0 0.0
        %1853 = vmatprep.subr.mxu0 0.0
        %1854 = vmatpush1.msra.mxu0 0.0
        %1855 = vmatprep.subr.mxu0 0.0
        %1856 = vmatpush1.msra.mxu0 0.0
        %1857 = vmatprep.subr.mxu0 0.0
        %1858 = vmatpush1.msra.mxu0 0.0
        %1859 = vmatprep.subr.mxu0 0.0
        %1860 = vmatpush1.msra.mxu0 0.0
        %1861 = vmatprep.subr.mxu0 0.0
        %1862 = vmatpush1.msra.mxu0 0.0
        %1863 = vmatprep.mubr.f32.mxu0 0.0
        %1864 = vmatmul.mubr.f32.gmra.mrb[0].mxu0 %v974
        %v1865 = vpop.f32.mrb[0].mxu0
        %v1866 = vadd.f32 0.0, %v1865
        %v1867 = vpop.f32.mrb[0].mxu0
        %v1868 = vadd.f32 0.0, %v1867
        %1869 = vdwg.mxu0
        %v1870 = vadd.f32 %v1783, %v1866
        %v1871 = vadd.f32 %v1784, %v1868
        %1872 = vrot.lane.b32.xlu0 %v1273, 112
        %v1873 = vpop.permute.xlu0 %1872
        %1874 = vrot.lane.b32.xlu0 %v1274, 112
        %v1875 = vpop.permute.xlu0 %1874
        %v1876 = vsel %vm1059, %v1873, %v1875
        %v1877 = vsel %vm1059, %v1875, %v1873
        %v1878 = vmul.f32 %v1876, %v1068
        %v1879 = vmul.f32 %v1877, %v1072
        %v1881 = vsel %vm391, %v1878, 0
        %v1884 = vsel %vm391, %v1879, 0
        %1886 = vmatprep.subr.mxu0 %v1884
        %1887 = vmatpush1.msra.mxu0 %v1881
        %1888 = vmatprep.subr.mxu0 0.0
        %1889 = vmatpush1.msra.mxu0 0.0
        %1890 = vmatprep.subr.mxu0 0.0
        %1891 = vmatpush1.msra.mxu0 0.0
        %1892 = vmatprep.subr.mxu0 0.0
        %1893 = vmatpush1.msra.mxu0 0.0
        %1894 = vmatprep.subr.mxu0 0.0
        %1895 = vmatpush1.msra.mxu0 0.0
        %1896 = vmatprep.subr.mxu0 0.0
        %1897 = vmatpush1.msra.mxu0 0.0
        %1898 = vmatprep.subr.mxu0 0.0
        %1899 = vmatpush1.msra.mxu0 0.0
        %1900 = vmatprep.subr.mxu0 0.0
        %1901 = vmatpush1.msra.mxu0 0.0
        %1902 = vmatprep.subr.mxu0 0.0
        %1903 = vmatpush1.msra.mxu0 0.0
        %1904 = vmatprep.subr.mxu0 0.0
        %1905 = vmatpush1.msra.mxu0 0.0
        %1906 = vmatprep.subr.mxu0 0.0
        %1907 = vmatpush1.msra.mxu0 0.0
        %1908 = vmatprep.subr.mxu0 0.0
        %1909 = vmatpush1.msra.mxu0 0.0
        %1910 = vmatprep.subr.mxu0 0.0
        %1911 = vmatpush1.msra.mxu0 0.0
        %1912 = vmatprep.subr.mxu0 0.0
        %1913 = vmatpush1.msra.mxu0 0.0
        %1914 = vmatprep.subr.mxu0 0.0
        %1915 = vmatpush1.msra.mxu0 0.0
        %1916 = vmatprep.subr.mxu0 0.0
        %1917 = vmatpush1.msra.mxu0 0.0
        %1918 = vmatprep.subr.mxu0 0.0
        %1919 = vmatpush1.msra.mxu0 0.0
        %1920 = vmatprep.subr.mxu0 0.0
        %1921 = vmatpush1.msra.mxu0 0.0
        %1922 = vmatprep.subr.mxu0 0.0
        %1923 = vmatpush1.msra.mxu0 0.0
        %1924 = vmatprep.subr.mxu0 0.0
        %1925 = vmatpush1.msra.mxu0 0.0
        %1926 = vmatprep.subr.mxu0 0.0
        %1927 = vmatpush1.msra.mxu0 0.0
        %1928 = vmatprep.subr.mxu0 0.0
        %1929 = vmatpush1.msra.mxu0 0.0
        %1930 = vmatprep.subr.mxu0 0.0
        %1931 = vmatpush1.msra.mxu0 0.0
        %1932 = vmatprep.subr.mxu0 0.0
        %1933 = vmatpush1.msra.mxu0 0.0
        %1934 = vmatprep.subr.mxu0 0.0
        %1935 = vmatpush1.msra.mxu0 0.0
        %1936 = vmatprep.subr.mxu0 0.0
        %1937 = vmatpush1.msra.mxu0 0.0
        %1938 = vmatprep.subr.mxu0 0.0
        %1939 = vmatpush1.msra.mxu0 0.0
        %1940 = vmatprep.subr.mxu0 0.0
        %1941 = vmatpush1.msra.mxu0 0.0
        %1942 = vmatprep.subr.mxu0 0.0
        %1943 = vmatpush1.msra.mxu0 0.0
        %1944 = vmatprep.subr.mxu0 0.0
        %1945 = vmatpush1.msra.mxu0 0.0
        %1946 = vmatprep.subr.mxu0 0.0
        %1947 = vmatpush1.msra.mxu0 0.0
        %1948 = vmatprep.subr.mxu0 0.0
        %1949 = vmatpush1.msra.mxu0 0.0
        %1950 = vmatprep.mubr.f32.mxu0 0.0
        %1951 = vmatmul.mubr.f32.gmra.mrb[0].mxu0 %v1080
        %v1952 = vpop.f32.mrb[0].mxu0
        %v1953 = vadd.f32 0.0, %v1952
        %v1954 = vpop.f32.mrb[0].mxu0
        %v1955 = vadd.f32 0.0, %v1954
        %1956 = vdwg.mxu0
        %v1957 = vadd.f32 %v1870, %v1953
        %v1958 = vadd.f32 %v1871, %v1955
        %1959 = vrot.lane.b32.xlu0 %v1273, 111
        %v1960 = vpop.permute.xlu0 %1959
        %1961 = vrot.lane.b32.xlu0 %v1274, 111
        %v1962 = vpop.permute.xlu0 %1961
        %v1963 = vsel %vm1165, %v1960, %v1962
        %v1964 = vsel %vm1165, %v1962, %v1960
        %v1965 = vmul.f32 %v1963, %v1174
        %v1966 = vmul.f32 %v1964, %v1178
        %v1968 = vsel %vm391, %v1965, 0
        %v1971 = vsel %vm391, %v1966, 0
        %1973 = vmatprep.subr.mxu0 %v1971
        %1974 = vmatpush1.msra.mxu0 %v1968
        %1975 = vmatprep.subr.mxu0 0.0
        %1976 = vmatpush1.msra.mxu0 0.0
        %1977 = vmatprep.subr.mxu0 0.0
        %1978 = vmatpush1.msra.mxu0 0.0
        %1979 = vmatprep.subr.mxu0 0.0
        %1980 = vmatpush1.msra.mxu0 0.0
        %1981 = vmatprep.subr.mxu0 0.0
        %1982 = vmatpush1.msra.mxu0 0.0
        %1983 = vmatprep.subr.mxu0 0.0
        %1984 = vmatpush1.msra.mxu0 0.0
        %1985 = vmatprep.subr.mxu0 0.0
        %1986 = vmatpush1.msra.mxu0 0.0
        %1987 = vmatprep.subr.mxu0 0.0
        %1988 = vmatpush1.msra.mxu0 0.0
        %1989 = vmatprep.subr.mxu0 0.0
        %1990 = vmatpush1.msra.mxu0 0.0
        %1991 = vmatprep.subr.mxu0 0.0
        %1992 = vmatpush1.msra.mxu0 0.0
        %1993 = vmatprep.subr.mxu0 0.0
        %1994 = vmatpush1.msra.mxu0 0.0
        %1995 = vmatprep.subr.mxu0 0.0
        %1996 = vmatpush1.msra.mxu0 0.0
        %1997 = vmatprep.subr.mxu0 0.0
        %1998 = vmatpush1.msra.mxu0 0.0
        %1999 = vmatprep.subr.mxu0 0.0
        %2000 = vmatpush1.msra.mxu0 0.0
        %2001 = vmatprep.subr.mxu0 0.0
        %2002 = vmatpush1.msra.mxu0 0.0
        %2003 = vmatprep.subr.mxu0 0.0
        %2004 = vmatpush1.msra.mxu0 0.0
        %2005 = vmatprep.subr.mxu0 0.0
        %2006 = vmatpush1.msra.mxu0 0.0
        %2007 = vmatprep.subr.mxu0 0.0
        %2008 = vmatpush1.msra.mxu0 0.0
        %2009 = vmatprep.subr.mxu0 0.0
        %2010 = vmatpush1.msra.mxu0 0.0
        %2011 = vmatprep.subr.mxu0 0.0
        %2012 = vmatpush1.msra.mxu0 0.0
        %2013 = vmatprep.subr.mxu0 0.0
        %2014 = vmatpush1.msra.mxu0 0.0
        %2015 = vmatprep.subr.mxu0 0.0
        %2016 = vmatpush1.msra.mxu0 0.0
        %2017 = vmatprep.subr.mxu0 0.0
        %2018 = vmatpush1.msra.mxu0 0.0
        %2019 = vmatprep.subr.mxu0 0.0
        %2020 = vmatpush1.msra.mxu0 0.0
        %2021 = vmatprep.subr.mxu0 0.0
        %2022 = vmatpush1.msra.mxu0 0.0
        %2023 = vmatprep.subr.mxu0 0.0
        %2024 = vmatpush1.msra.mxu0 0.0
        %2025 = vmatprep.subr.mxu0 0.0
        %2026 = vmatpush1.msra.mxu0 0.0
        %2027 = vmatprep.subr.mxu0 0.0
        %2028 = vmatpush1.msra.mxu0 0.0
        %2029 = vmatprep.subr.mxu0 0.0
        %2030 = vmatpush1.msra.mxu0 0.0
        %2031 = vmatprep.subr.mxu0 0.0
        %2032 = vmatpush1.msra.mxu0 0.0
        %2033 = vmatprep.subr.mxu0 0.0
        %2034 = vmatpush1.msra.mxu0 0.0
        %2035 = vmatprep.subr.mxu0 0.0
        %2036 = vmatpush1.msra.mxu0 0.0
        %2037 = vmatprep.mubr.f32.mxu0 0.0
        %2038 = vmatmul.mubr.f32.gmra.mrb[0].mxu0 %v1186
        %v2039 = vpop.f32.mrb[0].mxu0
        %v2040 = vadd.f32 0.0, %v2039
        %v2041 = vpop.f32.mrb[0].mxu0
        %v2042 = vadd.f32 0.0, %v2041
        %2043 = vdwg.mxu0
        %v2044 = vadd.f32 %v1957, %v2040
        %v2045 = vadd.f32 %v1958, %v2042
        %v2046 = vadd.f32 %v2044, %v334
        %v2047 = vadd.f32 %v2045, %v334
        %vm2048 = vcmp.ge.f32.partialorder %v2046, 0.0
        %vm2049 = vcmp.ge.f32.partialorder %v2047, 0.0
        %v2050 = vmul.f32 %v2046, 0.2
        %v2051 = vmul.f32 %v2047, 0.2
        %v2052 = vsel %vm2048, %v2046, %v2050
        %v2053 = vsel %vm2049, %v2047, %v2051
        %v2054 = vld [vmem:[%s4] sm:$0x7]
        %v2055 = vld [vmem:[%s5] sm:$0x7]
        %2057 = vset.pattern.permute.xlu0 0
        %2058 = vperm.xlu0 %2057, %v2055
        %v2059 = vpop.permute.xlu0 %2058
        %v2062 = vsel %vm387, %v2054, 0
        %v2065 = vsel %vm391, %v2052, 0
        %v2068 = vsel %vm391, %v2053, 0
        %2070 = vmatprep.subr.mxu0 %v2068
        %2071 = vmatpush1.msra.mxu0 %v2065
        %2072 = vmatprep.subr.mxu0 0.0
        %2073 = vmatpush1.msra.mxu0 0.0
        %2074 = vmatprep.subr.mxu0 0.0
        %2075 = vmatpush1.msra.mxu0 0.0
        %2076 = vmatprep.subr.mxu0 0.0
        %2077 = vmatpush1.msra.mxu0 0.0
        %2078 = vmatprep.subr.mxu0 0.0
        %2079 = vmatpush1.msra.mxu0 0.0
        %2080 = vmatprep.subr.mxu0 0.0
        %2081 = vmatpush1.msra.mxu0 0.0
        %2082 = vmatprep.subr.mxu0 0.0
        %2083 = vmatpush1.msra.mxu0 0.0
        %2084 = vmatprep.subr.mxu0 0.0
        %2085 = vmatpush1.msra.mxu0 0.0
        %2086 = vmatprep.subr.mxu0 0.0
        %2087 = vmatpush1.msra.mxu0 0.0
        %2088 = vmatprep.subr.mxu0 0.0
        %2089 = vmatpush1.msra.mxu0 0.0
        %2090 = vmatprep.subr.mxu0 0.0
        %2091 = vmatpush1.msra.mxu0 0.0
        %2092 = vmatprep.subr.mxu0 0.0
        %2093 = vmatpush1.msra.mxu0 0.0
        %2094 = vmatprep.subr.mxu0 0.0
        %2095 = vmatpush1.msra.mxu0 0.0
        %2096 = vmatprep.subr.mxu0 0.0
        %2097 = vmatpush1.msra.mxu0 0.0
        %2098 = vmatprep.subr.mxu0 0.0
        %2099 = vmatpush1.msra.mxu0 0.0
        %2100 = vmatprep.subr.mxu0 0.0
        %2101 = vmatpush1.msra.mxu0 0.0
        %2102 = vmatprep.subr.mxu0 0.0
        %2103 = vmatpush1.msra.mxu0 0.0
        %2104 = vmatprep.subr.mxu0 0.0
        %2105 = vmatpush1.msra.mxu0 0.0
        %2106 = vmatprep.subr.mxu0 0.0
        %2107 = vmatpush1.msra.mxu0 0.0
        %2108 = vmatprep.subr.mxu0 0.0
        %2109 = vmatpush1.msra.mxu0 0.0
        %2110 = vmatprep.subr.mxu0 0.0
        %2111 = vmatpush1.msra.mxu0 0.0
        %2112 = vmatprep.subr.mxu0 0.0
        %2113 = vmatpush1.msra.mxu0 0.0
        %2114 = vmatprep.subr.mxu0 0.0
        %2115 = vmatpush1.msra.mxu0 0.0
        %2116 = vmatprep.subr.mxu0 0.0
        %2117 = vmatpush1.msra.mxu0 0.0
        %2118 = vmatprep.subr.mxu0 0.0
        %2119 = vmatpush1.msra.mxu0 0.0
        %2120 = vmatprep.subr.mxu0 0.0
        %2121 = vmatpush1.msra.mxu0 0.0
        %2122 = vmatprep.subr.mxu0 0.0
        %2123 = vmatpush1.msra.mxu0 0.0
        %2124 = vmatprep.subr.mxu0 0.0
        %2125 = vmatpush1.msra.mxu0 0.0
        %2126 = vmatprep.subr.mxu0 0.0
        %2127 = vmatpush1.msra.mxu0 0.0
        %2128 = vmatprep.subr.mxu0 0.0
        %2129 = vmatpush1.msra.mxu0 0.0
        %2130 = vmatprep.subr.mxu0 0.0
        %2131 = vmatpush1.msra.mxu0 0.0
        %2132 = vmatprep.subr.mxu0 0.0
        %2133 = vmatpush1.msra.mxu0 0.0
        %2134 = vmatprep.mubr.f32.mxu0 0.0
        %2135 = vmatmul.mubr.f32.gmra.mrb[0].mxu0 %v2062
        %v2136 = vpop.f32.mrb[0].mxu0
        %v2137 = vadd.f32 %v2059, %v2136
        %v2138 = vpop.f32.mrb[0].mxu0
        %v2139 = vadd.f32 %v2059, %v2138
        %2140 = vdwg.mxu0
        %v2141 = vld [vmem:[%s326] sm:$0x77]
        %v2143 = vcombine.high %v2141, %v2141
        %2145 = vrot.lane.b32.xlu0 %v2141, 17
        %v2146 = vpop.permute.xlu0 %2145
        %2147 = vrot.lane.b32.xlu0 %v2143, 17
        %v2148 = vpop.permute.xlu0 %2147
        %v2149 = vsel %vm345, %v2146, %v2148
        %v2150 = vsel %vm345, %v2148, %v2146
        %v2151 = vmul.f32 %v2150, %v353
        %v2152 = vmul.f32 %v2149, %v357
        %v2153 = vld [vmem:[%s6] sm:$0x7]
        %2154 = vrot.lane.b32.xlu0 %v2141, 16
        %v2155 = vpop.permute.xlu0 %2154
        %2156 = vrot.lane.b32.xlu0 %v2143, 16
        %v2157 = vpop.permute.xlu0 %2156
        %v2158 = vsel %vm367, %v2155, %v2157
        %v2159 = vsel %vm367, %v2157, %v2155
        %v2160 = vmul.f32 %v2159, %v376
        %v2161 = vmul.f32 %v2158, %v380
        %s2162 = scalar_lea.vmem %s6, 4
        %v2163 = vld [vmem:[%s2162] sm:$0x7]
        %vm2164 = vcmask 23552
        %v2166 = vsel %vm2164, %v2163, 0
        %vm2168 = vcmask 1042432
        %v2170 = vsel %vm2168, %v2160, 0
        %v2173 = vsel %vm2168, %v2161, 0
        %2175 = vmatprep.subr.mxu0 %v2173
        %2176 = vmatpush1.msra.mxu0 %v2170
        %2177 = vmatprep.subr.mxu0 0.0
        %2178 = vmatpush1.msra.mxu0 0.0
        %2179 = vmatprep.subr.mxu0 0.0
        %2180 = vmatpush1.msra.mxu0 0.0
        %2181 = vmatprep.subr.mxu0 0.0
        %2182 = vmatpush1.msra.mxu0 0.0
        %2183 = vmatprep.subr.mxu0 0.0
        %2184 = vmatpush1.msra.mxu0 0.0
        %2185 = vmatprep.subr.mxu0 0.0
        %2186 = vmatpush1.msra.mxu0 0.0
        %2187 = vmatprep.subr.mxu0 0.0
        %2188 = vmatpush1.msra.mxu0 0.0
        %2189 = vmatprep.subr.mxu0 0.0
        %2190 = vmatpush1.msra.mxu0 0.0
        %2191 = vmatprep.subr.mxu0 0.0
        %2192 = vmatpush1.msra.mxu0 0.0
        %2193 = vmatprep.subr.mxu0 0.0
        %2194 = vmatpush1.msra.mxu0 0.0
        %2195 = vmatprep.subr.mxu0 0.0
        %2196 = vmatpush1.msra.mxu0 0.0
        %2197 = vmatprep.subr.mxu0 0.0
        %2198 = vmatpush1.msra.mxu0 0.0
        %2199 = vmatprep.subr.mxu0 0.0
        %2200 = vmatpush1.msra.mxu0 0.0
        %2201 = vmatprep.subr.mxu0 0.0
        %2202 = vmatpush1.msra.mxu0 0.0
        %2203 = vmatprep.subr.mxu0 0.0
        %2204 = vmatpush1.msra.mxu0 0.0
        %2205 = vmatprep.subr.mxu0 0.0
        %2206 = vmatpush1.msra.mxu0 0.0
        %2207 = vmatprep.subr.mxu0 0.0
        %2208 = vmatpush1.msra.mxu0 0.0
        %2209 = vmatprep.subr.mxu0 0.0
        %2210 = vmatpush1.msra.mxu0 0.0
        %2211 = vmatprep.subr.mxu0 0.0
        %2212 = vmatpush1.msra.mxu0 0.0
        %2213 = vmatprep.subr.mxu0 0.0
        %2214 = vmatpush1.msra.mxu0 0.0
        %2215 = vmatprep.subr.mxu0 0.0
        %2216 = vmatpush1.msra.mxu0 0.0
        %2217 = vmatprep.subr.mxu0 0.0
        %2218 = vmatpush1.msra.mxu0 0.0
        %2219 = vmatprep.subr.mxu0 0.0
        %2220 = vmatpush1.msra.mxu0 0.0
        %2221 = vmatprep.subr.mxu0 0.0
        %2222 = vmatpush1.msra.mxu0 0.0
        %2223 = vmatprep.subr.mxu0 0.0
        %2224 = vmatpush1.msra.mxu0 0.0
        %2225 = vmatprep.subr.mxu0 0.0
        %2226 = vmatpush1.msra.mxu0 0.0
        %2227 = vmatprep.subr.mxu0 0.0
        %2228 = vmatpush1.msra.mxu0 0.0
        %2229 = vmatprep.subr.mxu0 0.0
        %2230 = vmatpush1.msra.mxu0 0.0
        %2231 = vmatprep.subr.mxu0 0.0
        %2232 = vmatpush1.msra.mxu0 0.0
        %2233 = vmatprep.subr.mxu0 0.0
        %2234 = vmatpush1.msra.mxu0 0.0
        %2235 = vmatprep.subr.mxu0 0.0
        %2236 = vmatpush1.msra.mxu0 0.0
        %2237 = vmatprep.subr.mxu0 0.0
        %2238 = vmatpush1.msra.mxu0 0.0
        %2239 = vmatprep.mubr.f32.mxu0 0.0
        %2240 = vmatmul.mubr.f32.gmra.mrb[0].mxu0 %v2166
        %v2241 = vpop.f32.mrb[0].mxu0
        %v2242 = vadd.f32 0.0, %v2241
        %v2243 = vpop.f32.mrb[0].mxu0
        %v2244 = vadd.f32 0.0, %v2243
        %2245 = vdwg.mxu0
        %v2247 = vsel %vm2164, %v2153, 0
        %v2250 = vsel %vm2168, %v2151, 0
        %v2253 = vsel %vm2168, %v2152, 0
        %2255 = vmatprep.subr.mxu0 %v2253
        %2256 = vmatpush1.msra.mxu0 %v2250
        %2257 = vmatprep.subr.mxu0 0.0
        %2258 = vmatpush1.msra.mxu0 0.0
        %2259 = vmatprep.subr.mxu0 0.0
        %2260 = vmatpush1.msra.mxu0 0.0
        %2261 = vmatprep.subr.mxu0 0.0
        %2262 = vmatpush1.msra.mxu0 0.0
        %2263 = vmatprep.subr.mxu0 0.0
        %2264 = vmatpush1.msra.mxu0 0.0
        %2265 = vmatprep.subr.mxu0 0.0
        %2266 = vmatpush1.msra.mxu0 0.0
        %2267 = vmatprep.subr.mxu0 0.0
        %2268 = vmatpush1.msra.mxu0 0.0
        %2269 = vmatprep.subr.mxu0 0.0
        %2270 = vmatpush1.msra.mxu0 0.0
        %2271 = vmatprep.subr.mxu0 0.0
        %2272 = vmatpush1.msra.mxu0 0.0
        %2273 = vmatprep.subr.mxu0 0.0
        %2274 = vmatpush1.msra.mxu0 0.0
        %2275 = vmatprep.subr.mxu0 0.0
        %2276 = vmatpush1.msra.mxu0 0.0
        %2277 = vmatprep.subr.mxu0 0.0
        %2278 = vmatpush1.msra.mxu0 0.0
        %2279 = vmatprep.subr.mxu0 0.0
        %2280 = vmatpush1.msra.mxu0 0.0
        %2281 = vmatprep.subr.mxu0 0.0
        %2282 = vmatpush1.msra.mxu0 0.0
        %2283 = vmatprep.subr.mxu0 0.0
        %2284 = vmatpush1.msra.mxu0 0.0
        %2285 = vmatprep.subr.mxu0 0.0
        %2286 = vmatpush1.msra.mxu0 0.0
        %2287 = vmatprep.subr.mxu0 0.0
        %2288 = vmatpush1.msra.mxu0 0.0
        %2289 = vmatprep.subr.mxu0 0.0
        %2290 = vmatpush1.msra.mxu0 0.0
        %2291 = vmatprep.subr.mxu0 0.0
        %2292 = vmatpush1.msra.mxu0 0.0
        %2293 = vmatprep.subr.mxu0 0.0
        %2294 = vmatpush1.msra.mxu0 0.0
        %2295 = vmatprep.subr.mxu0 0.0
        %2296 = vmatpush1.msra.mxu0 0.0
        %2297 = vmatprep.subr.mxu0 0.0
        %2298 = vmatpush1.msra.mxu0 0.0
        %2299 = vmatprep.subr.mxu0 0.0
        %2300 = vmatpush1.msra.mxu0 0.0
        %2301 = vmatprep.subr.mxu0 0.0
        %2302 = vmatpush1.msra.mxu0 0.0
        %2303 = vmatprep.subr.mxu0 0.0
        %2304 = vmatpush1.msra.mxu0 0.0
        %2305 = vmatprep.subr.mxu0 0.0
        %2306 = vmatpush1.msra.mxu0 0.0
        %2307 = vmatprep.subr.mxu0 0.0
        %2308 = vmatpush1.msra.mxu0 0.0
        %2309 = vmatprep.subr.mxu0 0.0
        %2310 = vmatpush1.msra.mxu0 0.0
        %2311 = vmatprep.subr.mxu0 0.0
        %2312 = vmatpush1.msra.mxu0 0.0
        %2313 = vmatprep.subr.mxu0 0.0
        %2314 = vmatpush1.msra.mxu0 0.0
        %2315 = vmatprep.subr.mxu0 0.0
        %2316 = vmatpush1.msra.mxu0 0.0
        %2317 = vmatprep.subr.mxu0 0.0
        %2318 = vmatpush1.msra.mxu0 0.0
        %2319 = vmatprep.mubr.f32.mxu0 0.0
        %2320 = vmatmul.mubr.f32.gmra.mrb[0].mxu0 %v2247
        %v2321 = vpop.f32.mrb[0].mxu0
        %v2322 = vadd.f32 %v2242, %v2321
        %v2323 = vpop.f32.mrb[0].mxu0
        %v2324 = vadd.f32 %v2244, %v2323
        %2325 = vdwg.mxu0
        %2326 = vrot.lane.b32.xlu0 %v2141, 15
        %v2327 = vpop.permute.xlu0 %2326
        %2328 = vrot.lane.b32.xlu0 %v2143, 15
        %v2329 = vpop.permute.xlu0 %2328
        %v2330 = vsel %vm553, %v2327, %v2329
        %v2331 = vsel %vm553, %v2329, %v2327
        %v2332 = vmul.f32 %v2331, %v562
        %v2333 = vmul.f32 %v2330, %v566
        %s2334 = scalar_lea.vmem %s6, 8
        %v2335 = vld [vmem:[%s2334] sm:$0x7]
        %v2337 = vsel %vm2164, %v2335, 0
        %v2340 = vsel %vm2168, %v2332, 0
        %v2343 = vsel %vm2168, %v2333, 0
        %2345 = vmatprep.subr.mxu0 %v2343
        %2346 = vmatpush1.msra.mxu0 %v2340
        %2347 = vmatprep.subr.mxu0 0.0
        %2348 = vmatpush1.msra.mxu0 0.0
        %2349 = vmatprep.subr.mxu0 0.0
        %2350 = vmatpush1.msra.mxu0 0.0
        %2351 = vmatprep.subr.mxu0 0.0
        %2352 = vmatpush1.msra.mxu0 0.0
        %2353 = vmatprep.subr.mxu0 0.0
        %2354 = vmatpush1.msra.mxu0 0.0
        %2355 = vmatprep.subr.mxu0 0.0
        %2356 = vmatpush1.msra.mxu0 0.0
        %2357 = vmatprep.subr.mxu0 0.0
        %2358 = vmatpush1.msra.mxu0 0.0
        %2359 = vmatprep.subr.mxu0 0.0
        %2360 = vmatpush1.msra.mxu0 0.0
        %2361 = vmatprep.subr.mxu0 0.0
        %2362 = vmatpush1.msra.mxu0 0.0
        %2363 = vmatprep.subr.mxu0 0.0
        %2364 = vmatpush1.msra.mxu0 0.0
        %2365 = vmatprep.subr.mxu0 0.0
        %2366 = vmatpush1.msra.mxu0 0.0
        %2367 = vmatprep.subr.mxu0 0.0
        %2368 = vmatpush1.msra.mxu0 0.0
        %2369 = vmatprep.subr.mxu0 0.0
        %2370 = vmatpush1.msra.mxu0 0.0
        %2371 = vmatprep.subr.mxu0 0.0
        %2372 = vmatpush1.msra.mxu0 0.0
        %2373 = vmatprep.subr.mxu0 0.0
        %2374 = vmatpush1.msra.mxu0 0.0
        %2375 = vmatprep.subr.mxu0 0.0
        %2376 = vmatpush1.msra.mxu0 0.0
        %2377 = vmatprep.subr.mxu0 0.0
        %2378 = vmatpush1.msra.mxu0 0.0
        %2379 = vmatprep.subr.mxu0 0.0
        %2380 = vmatpush1.msra.mxu0 0.0
        %2381 = vmatprep.subr.mxu0 0.0
        %2382 = vmatpush1.msra.mxu0 0.0
        %2383 = vmatprep.subr.mxu0 0.0
        %2384 = vmatpush1.msra.mxu0 0.0
        %2385 = vmatprep.subr.mxu0 0.0
        %2386 = vmatpush1.msra.mxu0 0.0
        %2387 = vmatprep.subr.mxu0 0.0
        %2388 = vmatpush1.msra.mxu0 0.0
        %2389 = vmatprep.subr.mxu0 0.0
        %2390 = vmatpush1.msra.mxu0 0.0
        %2391 = vmatprep.subr.mxu0 0.0
        %2392 = vmatpush1.msra.mxu0 0.0
        %2393 = vmatprep.subr.mxu0 0.0
        %2394 = vmatpush1.msra.mxu0 0.0
        %2395 = vmatprep.subr.mxu0 0.0
        %2396 = vmatpush1.msra.mxu0 0.0
        %2397 = vmatprep.subr.mxu0 0.0
        %2398 = vmatpush1.msra.mxu0 0.0
        %2399 = vmatprep.subr.mxu0 0.0
        %2400 = vmatpush1.msra.mxu0 0.0
        %2401 = vmatprep.subr.mxu0 0.0
        %2402 = vmatpush1.msra.mxu0 0.0
        %2403 = vmatprep.subr.mxu0 0.0
        %2404 = vmatpush1.msra.mxu0 0.0
        %2405 = vmatprep.subr.mxu0 0.0
        %2406 = vmatpush1.msra.mxu0 0.0
        %2407 = vmatprep.subr.mxu0 0.0
        %2408 = vmatpush1.msra.mxu0 0.0
        %2409 = vmatprep.mubr.f32.mxu0 0.0
        %2410 = vmatmul.mubr.f32.gmra.mrb[0].mxu0 %v2337
        %v2411 = vpop.f32.mrb[0].mxu0
        %v2412 = vadd.f32 0.0, %v2411
        %v2413 = vpop.f32.mrb[0].mxu0
        %v2414 = vadd.f32 0.0, %v2413
        %2415 = vdwg.mxu0
        %v2416 = vadd.f32 %v2322, %v2412
        %v2417 = vadd.f32 %v2324, %v2414
        %2418 = vrot.lane.b32.xlu0 %v2141, 1
        %v2419 = vpop.permute.xlu0 %2418
        %2420 = vrot.lane.b32.xlu0 %v2143, 1
        %v2421 = vpop.permute.xlu0 %2420
        %v2422 = vsel %vm659, %v2419, %v2421
        %v2423 = vsel %vm659, %v2421, %v2419
        %v2424 = vmul.f32 %v2423, %v668
        %v2425 = vmul.f32 %v2422, %v672
        %s2426 = scalar_lea.vmem %s6, 12
        %v2427 = vld [vmem:[%s2426] sm:$0x7]
        %v2429 = vsel %vm2164, %v2427, 0
        %v2432 = vsel %vm2168, %v2424, 0
        %v2435 = vsel %vm2168, %v2425, 0
        %2437 = vmatprep.subr.mxu0 %v2435
        %2438 = vmatpush1.msra.mxu0 %v2432
        %2439 = vmatprep.subr.mxu0 0.0
        %2440 = vmatpush1.msra.mxu0 0.0
        %2441 = vmatprep.subr.mxu0 0.0
        %2442 = vmatpush1.msra.mxu0 0.0
        %2443 = vmatprep.subr.mxu0 0.0
        %2444 = vmatpush1.msra.mxu0 0.0
        %2445 = vmatprep.subr.mxu0 0.0
        %2446 = vmatpush1.msra.mxu0 0.0
        %2447 = vmatprep.subr.mxu0 0.0
        %2448 = vmatpush1.msra.mxu0 0.0
        %2449 = vmatprep.subr.mxu0 0.0
        %2450 = vmatpush1.msra.mxu0 0.0
        %2451 = vmatprep.subr.mxu0 0.0
        %2452 = vmatpush1.msra.mxu0 0.0
        %2453 = vmatprep.subr.mxu0 0.0
        %2454 = vmatpush1.msra.mxu0 0.0
        %2455 = vmatprep.subr.mxu0 0.0
        %2456 = vmatpush1.msra.mxu0 0.0
        %2457 = vmatprep.subr.mxu0 0.0
        %2458 = vmatpush1.msra.mxu0 0.0
        %2459 = vmatprep.subr.mxu0 0.0
        %2460 = vmatpush1.msra.mxu0 0.0
        %2461 = vmatprep.subr.mxu0 0.0
        %2462 = vmatpush1.msra.mxu0 0.0
        %2463 = vmatprep.subr.mxu0 0.0
        %2464 = vmatpush1.msra.mxu0 0.0
        %2465 = vmatprep.subr.mxu0 0.0
        %2466 = vmatpush1.msra.mxu0 0.0
        %2467 = vmatprep.subr.mxu0 0.0
        %2468 = vmatpush1.msra.mxu0 0.0
        %2469 = vmatprep.subr.mxu0 0.0
        %2470 = vmatpush1.msra.mxu0 0.0
        %2471 = vmatprep.subr.mxu0 0.0
        %2472 = vmatpush1.msra.mxu0 0.0
        %2473 = vmatprep.subr.mxu0 0.0
        %2474 = vmatpush1.msra.mxu0 0.0
        %2475 = vmatprep.subr.mxu0 0.0
        %2476 = vmatpush1.msra.mxu0 0.0
        %2477 = vmatprep.subr.mxu0 0.0
        %2478 = vmatpush1.msra.mxu0 0.0
        %2479 = vmatprep.subr.mxu0 0.0
        %2480 = vmatpush1.msra.mxu0 0.0
        %2481 = vmatprep.subr.mxu0 0.0
        %2482 = vmatpush1.msra.mxu0 0.0
        %2483 = vmatprep.subr.mxu0 0.0
        %2484 = vmatpush1.msra.mxu0 0.0
        %2485 = vmatprep.subr.mxu0 0.0
        %2486 = vmatpush1.msra.mxu0 0.0
        %2487 = vmatprep.subr.mxu0 0.0
        %2488 = vmatpush1.msra.mxu0 0.0
        %2489 = vmatprep.subr.mxu0 0.0
        %2490 = vmatpush1.msra.mxu0 0.0
        %2491 = vmatprep.subr.mxu0 0.0
        %2492 = vmatpush1.msra.mxu0 0.0
        %2493 = vmatprep.subr.mxu0 0.0
        %2494 = vmatpush1.msra.mxu0 0.0
        %2495 = vmatprep.subr.mxu0 0.0
        %2496 = vmatpush1.msra.mxu0 0.0
        %2497 = vmatprep.subr.mxu0 0.0
        %2498 = vmatpush1.msra.mxu0 0.0
        %2499 = vmatprep.subr.mxu0 0.0
        %2500 = vmatpush1.msra.mxu0 0.0
        %2501 = vmatprep.mubr.f32.mxu0 0.0
        %2502 = vmatmul.mubr.f32.gmra.mrb[0].mxu0 %v2429
        %v2503 = vpop.f32.mrb[0].mxu0
        %v2504 = vadd.f32 0.0, %v2503
        %v2505 = vpop.f32.mrb[0].mxu0
        %v2506 = vadd.f32 0.0, %v2505
        %2507 = vdwg.mxu0
        %v2508 = vadd.f32 %v2416, %v2504
        %v2509 = vadd.f32 %v2417, %v2506
        %s2510 = scalar_lea.vmem %s6, 16
        %v2511 = vld [vmem:[%s2510] sm:$0x7]
        %v2513 = vsel %vm2164, %v2511, 0
        %v2515 = vsel %vm2168, %v2141, 0
        %v2517 = vsel %vm2168, %v2143, 0
        %2519 = vmatprep.subr.mxu0 %v2517
        %2520 = vmatpush1.msra.mxu0 %v2515
        %2521 = vmatprep.subr.mxu0 0.0
        %2522 = vmatpush1.msra.mxu0 0.0
        %2523 = vmatprep.subr.mxu0 0.0
        %2524 = vmatpush1.msra.mxu0 0.0
        %2525 = vmatprep.subr.mxu0 0.0
        %2526 = vmatpush1.msra.mxu0 0.0
        %2527 = vmatprep.subr.mxu0 0.0
        %2528 = vmatpush1.msra.mxu0 0.0
        %2529 = vmatprep.subr.mxu0 0.0
        %2530 = vmatpush1.msra.mxu0 0.0
        %2531 = vmatprep.subr.mxu0 0.0
        %2532 = vmatpush1.msra.mxu0 0.0
        %2533 = vmatprep.subr.mxu0 0.0
        %2534 = vmatpush1.msra.mxu0 0.0
        %2535 = vmatprep.subr.mxu0 0.0
        %2536 = vmatpush1.msra.mxu0 0.0
        %2537 = vmatprep.subr.mxu0 0.0
        %2538 = vmatpush1.msra.mxu0 0.0
        %2539 = vmatprep.subr.mxu0 0.0
        %2540 = vmatpush1.msra.mxu0 0.0
        %2541 = vmatprep.subr.mxu0 0.0
        %2542 = vmatpush1.msra.mxu0 0.0
        %2543 = vmatprep.subr.mxu0 0.0
        %2544 = vmatpush1.msra.mxu0 0.0
        %2545 = vmatprep.subr.mxu0 0.0
        %2546 = vmatpush1.msra.mxu0 0.0
        %2547 = vmatprep.subr.mxu0 0.0
        %2548 = vmatpush1.msra.mxu0 0.0
        %2549 = vmatprep.subr.mxu0 0.0
        %2550 = vmatpush1.msra.mxu0 0.0
        %2551 = vmatprep.subr.mxu0 0.0
        %2552 = vmatpush1.msra.mxu0 0.0
        %2553 = vmatprep.subr.mxu0 0.0
        %2554 = vmatpush1.msra.mxu0 0.0
        %2555 = vmatprep.subr.mxu0 0.0
        %2556 = vmatpush1.msra.mxu0 0.0
        %2557 = vmatprep.subr.mxu0 0.0
        %2558 = vmatpush1.msra.mxu0 0.0
        %2559 = vmatprep.subr.mxu0 0.0
        %2560 = vmatpush1.msra.mxu0 0.0
        %2561 = vmatprep.subr.mxu0 0.0
        %2562 = vmatpush1.msra.mxu0 0.0
        %2563 = vmatprep.subr.mxu0 0.0
        %2564 = vmatpush1.msra.mxu0 0.0
        %2565 = vmatprep.subr.mxu0 0.0
        %2566 = vmatpush1.msra.mxu0 0.0
        %2567 = vmatprep.subr.mxu0 0.0
        %2568 = vmatpush1.msra.mxu0 0.0
        %2569 = vmatprep.subr.mxu0 0.0
        %2570 = vmatpush1.msra.mxu0 0.0
        %2571 = vmatprep.subr.mxu0 0.0
        %2572 = vmatpush1.msra.mxu0 0.0
        %2573 = vmatprep.subr.mxu0 0.0
        %2574 = vmatpush1.msra.mxu0 0.0
        %2575 = vmatprep.subr.mxu0 0.0
        %2576 = vmatpush1.msra.mxu0 0.0
        %2577 = vmatprep.subr.mxu0 0.0
        %2578 = vmatpush1.msra.mxu0 0.0
        %2579 = vmatprep.subr.mxu0 0.0
        %2580 = vmatpush1.msra.mxu0 0.0
        %2581 = vmatprep.subr.mxu0 0.0
        %2582 = vmatpush1.msra.mxu0 0.0
        %2583 = vmatprep.mubr.f32.mxu0 0.0
        %2584 = vmatmul.mubr.f32.gmra.mrb[0].mxu0 %v2513
        %v2585 = vpop.f32.mrb[0].mxu0
        %v2586 = vadd.f32 0.0, %v2585
        %v2587 = vpop.f32.mrb[0].mxu0
        %v2588 = vadd.f32 0.0, %v2587
        %2589 = vdwg.mxu0
        %v2590 = vadd.f32 %v2508, %v2586
        %v2591 = vadd.f32 %v2509, %v2588
        %2592 = vrot.lane.b32.xlu0 %v2141, 127
        %v2593 = vpop.permute.xlu0 %2592
        %2594 = vrot.lane.b32.xlu0 %v2143, 127
        %v2595 = vpop.permute.xlu0 %2594
        %v2596 = vsel %vm847, %v2593, %v2595
        %v2597 = vsel %vm847, %v2595, %v2593
        %v2598 = vmul.f32 %v2596, %v856
        %v2599 = vmul.f32 %v2597, %v860
        %s2600 = scalar_lea.vmem %s6, 20
        %v2601 = vld [vmem:[%s2600] sm:$0x7]
        %v2603 = vsel %vm2164, %v2601, 0
        %v2606 = vsel %vm2168, %v2598, 0
        %v2609 = vsel %vm2168, %v2599, 0
        %2611 = vmatprep.subr.mxu0 %v2609
        %2612 = vmatpush1.msra.mxu0 %v2606
        %2613 = vmatprep.subr.mxu0 0.0
        %2614 = vmatpush1.msra.mxu0 0.0
        %2615 = vmatprep.subr.mxu0 0.0
        %2616 = vmatpush1.msra.mxu0 0.0
        %2617 = vmatprep.subr.mxu0 0.0
        %2618 = vmatpush1.msra.mxu0 0.0
        %2619 = vmatprep.subr.mxu0 0.0
        %2620 = vmatpush1.msra.mxu0 0.0
        %2621 = vmatprep.subr.mxu0 0.0
        %2622 = vmatpush1.msra.mxu0 0.0
        %2623 = vmatprep.subr.mxu0 0.0
        %2624 = vmatpush1.msra.mxu0 0.0
        %2625 = vmatprep.subr.mxu0 0.0
        %2626 = vmatpush1.msra.mxu0 0.0
        %2627 = vmatprep.subr.mxu0 0.0
        %2628 = vmatpush1.msra.mxu0 0.0
        %2629 = vmatprep.subr.mxu0 0.0
        %2630 = vmatpush1.msra.mxu0 0.0
        %2631 = vmatprep.subr.mxu0 0.0
        %2632 = vmatpush1.msra.mxu0 0.0
        %2633 = vmatprep.subr.mxu0 0.0
        %2634 = vmatpush1.msra.mxu0 0.0
        %2635 = vmatprep.subr.mxu0 0.0
        %2636 = vmatpush1.msra.mxu0 0.0
        %2637 = vmatprep.subr.mxu0 0.0
        %2638 = vmatpush1.msra.mxu0 0.0
        %2639 = vmatprep.subr.mxu0 0.0
        %2640 = vmatpush1.msra.mxu0 0.0
        %2641 = vmatprep.subr.mxu0 0.0
        %2642 = vmatpush1.msra.mxu0 0.0
        %2643 = vmatprep.subr.mxu0 0.0
        %2644 = vmatpush1.msra.mxu0 0.0
        %2645 = vmatprep.subr.mxu0 0.0
        %2646 = vmatpush1.msra.mxu0 0.0
        %2647 = vmatprep.subr.mxu0 0.0
        %2648 = vmatpush1.msra.mxu0 0.0
        %2649 = vmatprep.subr.mxu0 0.0
        %2650 = vmatpush1.msra.mxu0 0.0
        %2651 = vmatprep.subr.mxu0 0.0
        %2652 = vmatpush1.msra.mxu0 0.0
        %2653 = vmatprep.subr.mxu0 0.0
        %2654 = vmatpush1.msra.mxu0 0.0
        %2655 = vmatprep.subr.mxu0 0.0
        %2656 = vmatpush1.msra.mxu0 0.0
        %2657 = vmatprep.subr.mxu0 0.0
        %2658 = vmatpush1.msra.mxu0 0.0
        %2659 = vmatprep.subr.mxu0 0.0
        %2660 = vmatpush1.msra.mxu0 0.0
        %2661 = vmatprep.subr.mxu0 0.0
        %2662 = vmatpush1.msra.mxu0 0.0
        %2663 = vmatprep.subr.mxu0 0.0
        %2664 = vmatpush1.msra.mxu0 0.0
        %2665 = vmatprep.subr.mxu0 0.0
        %2666 = vmatpush1.msra.mxu0 0.0
        %2667 = vmatprep.subr.mxu0 0.0
        %2668 = vmatpush1.msra.mxu0 0.0
        %2669 = vmatprep.subr.mxu0 0.0
        %2670 = vmatpush1.msra.mxu0 0.0
        %2671 = vmatprep.subr.mxu0 0.0
        %2672 = vmatpush1.msra.mxu0 0.0
        %2673 = vmatprep.subr.mxu0 0.0
        %2674 = vmatpush1.msra.mxu0 0.0
        %2675 = vmatprep.mubr.f32.mxu0 0.0
        %2676 = vmatmul.mubr.f32.gmra.mrb[0].mxu0 %v2603
        %v2677 = vpop.f32.mrb[0].mxu0
        %v2678 = vadd.f32 0.0, %v2677
        %v2679 = vpop.f32.mrb[0].mxu0
        %v2680 = vadd.f32 0.0, %v2679
        %2681 = vdwg.mxu0
        %v2682 = vadd.f32 %v2590, %v2678
        %v2683 = vadd.f32 %v2591, %v2680
        %2684 = vrot.lane.b32.xlu0 %v2141, 113
        %v2685 = vpop.permute.xlu0 %2684
        %2686 = vrot.lane.b32.xlu0 %v2143, 113
        %v2687 = vpop.permute.xlu0 %2686
        %v2688 = vsel %vm953, %v2685, %v2687
        %v2689 = vsel %vm953, %v2687, %v2685
        %v2690 = vmul.f32 %v2688, %v962
        %v2691 = vmul.f32 %v2689, %v966
        %s2692 = scalar_lea.vmem %s6, 24
        %v2693 = vld [vmem:[%s2692] sm:$0x7]
        %v2695 = vsel %vm2164, %v2693, 0
        %v2698 = vsel %vm2168, %v2690, 0
        %v2701 = vsel %vm2168, %v2691, 0
        %2703 = vmatprep.subr.mxu0 %v2701
        %2704 = vmatpush1.msra.mxu0 %v2698
        %2705 = vmatprep.subr.mxu0 0.0
        %2706 = vmatpush1.msra.mxu0 0.0
        %2707 = vmatprep.subr.mxu0 0.0
        %2708 = vmatpush1.msra.mxu0 0.0
        %2709 = vmatprep.subr.mxu0 0.0
        %2710 = vmatpush1.msra.mxu0 0.0
        %2711 = vmatprep.subr.mxu0 0.0
        %2712 = vmatpush1.msra.mxu0 0.0
        %2713 = vmatprep.subr.mxu0 0.0
        %2714 = vmatpush1.msra.mxu0 0.0
        %2715 = vmatprep.subr.mxu0 0.0
        %2716 = vmatpush1.msra.mxu0 0.0
        %2717 = vmatprep.subr.mxu0 0.0
        %2718 = vmatpush1.msra.mxu0 0.0
        %2719 = vmatprep.subr.mxu0 0.0
        %2720 = vmatpush1.msra.mxu0 0.0
        %2721 = vmatprep.subr.mxu0 0.0
        %2722 = vmatpush1.msra.mxu0 0.0
        %2723 = vmatprep.subr.mxu0 0.0
        %2724 = vmatpush1.msra.mxu0 0.0
        %2725 = vmatprep.subr.mxu0 0.0
        %2726 = vmatpush1.msra.mxu0 0.0
        %2727 = vmatprep.subr.mxu0 0.0
        %2728 = vmatpush1.msra.mxu0 0.0
        %2729 = vmatprep.subr.mxu0 0.0
        %2730 = vmatpush1.msra.mxu0 0.0
        %2731 = vmatprep.subr.mxu0 0.0
        %2732 = vmatpush1.msra.mxu0 0.0
        %2733 = vmatprep.subr.mxu0 0.0
        %2734 = vmatpush1.msra.mxu0 0.0
        %2735 = vmatprep.subr.mxu0 0.0
        %2736 = vmatpush1.msra.mxu0 0.0
        %2737 = vmatprep.subr.mxu0 0.0
        %2738 = vmatpush1.msra.mxu0 0.0
        %2739 = vmatprep.subr.mxu0 0.0
        %2740 = vmatpush1.msra.mxu0 0.0
        %2741 = vmatprep.subr.mxu0 0.0
        %2742 = vmatpush1.msra.mxu0 0.0
        %2743 = vmatprep.subr.mxu0 0.0
        %2744 = vmatpush1.msra.mxu0 0.0
        %2745 = vmatprep.subr.mxu0 0.0
        %2746 = vmatpush1.msra.mxu0 0.0
        %2747 = vmatprep.subr.mxu0 0.0
        %2748 = vmatpush1.msra.mxu0 0.0
        %2749 = vmatprep.subr.mxu0 0.0
        %2750 = vmatpush1.msra.mxu0 0.0
        %2751 = vmatprep.subr.mxu0 0.0
        %2752 = vmatpush1.msra.mxu0 0.0
        %2753 = vmatprep.subr.mxu0 0.0
        %2754 = vmatpush1.msra.mxu0 0.0
        %2755 = vmatprep.subr.mxu0 0.0
        %2756 = vmatpush1.msra.mxu0 0.0
        %2757 = vmatprep.subr.mxu0 0.0
        %2758 = vmatpush1.msra.mxu0 0.0
        %2759 = vmatprep.subr.mxu0 0.0
        %2760 = vmatpush1.msra.mxu0 0.0
        %2761 = vmatprep.subr.mxu0 0.0
        %2762 = vmatpush1.msra.mxu0 0.0
        %2763 = vmatprep.subr.mxu0 0.0
        %2764 = vmatpush1.msra.mxu0 0.0
        %2765 = vmatprep.subr.mxu0 0.0
        %2766 = vmatpush1.msra.mxu0 0.0
        %2767 = vmatprep.mubr.f32.mxu0 0.0
        %2768 = vmatmul.mubr.f32.gmra.mrb[0].mxu0 %v2695
        %v2769 = vpop.f32.mrb[0].mxu0
        %v2770 = vadd.f32 0.0, %v2769
        %v2771 = vpop.f32.mrb[0].mxu0
        %v2772 = vadd.f32 0.0, %v2771
        %2773 = vdwg.mxu0
        %v2774 = vadd.f32 %v2682, %v2770
        %v2775 = vadd.f32 %v2683, %v2772
        %2776 = vrot.lane.b32.xlu0 %v2141, 112
        %v2777 = vpop.permute.xlu0 %2776
        %2778 = vrot.lane.b32.xlu0 %v2143, 112
        %v2779 = vpop.permute.xlu0 %2778
        %v2780 = vsel %vm1059, %v2777, %v2779
        %v2781 = vsel %vm1059, %v2779, %v2777
        %v2782 = vmul.f32 %v2780, %v1068
        %v2783 = vmul.f32 %v2781, %v1072
        %s2784 = scalar_lea.vmem %s6, 28
        %v2785 = vld [vmem:[%s2784] sm:$0x7]
        %v2787 = vsel %vm2164, %v2785, 0
        %v2790 = vsel %vm2168, %v2782, 0
        %v2793 = vsel %vm2168, %v2783, 0
        %2795 = vmatprep.subr.mxu0 %v2793
        %2796 = vmatpush1.msra.mxu0 %v2790
        %2797 = vmatprep.subr.mxu0 0.0
        %2798 = vmatpush1.msra.mxu0 0.0
        %2799 = vmatprep.subr.mxu0 0.0
        %2800 = vmatpush1.msra.mxu0 0.0
        %2801 = vmatprep.subr.mxu0 0.0
        %2802 = vmatpush1.msra.mxu0 0.0
        %2803 = vmatprep.subr.mxu0 0.0
        %2804 = vmatpush1.msra.mxu0 0.0
        %2805 = vmatprep.subr.mxu0 0.0
        %2806 = vmatpush1.msra.mxu0 0.0
        %2807 = vmatprep.subr.mxu0 0.0
        %2808 = vmatpush1.msra.mxu0 0.0
        %2809 = vmatprep.subr.mxu0 0.0
        %2810 = vmatpush1.msra.mxu0 0.0
        %2811 = vmatprep.subr.mxu0 0.0
        %2812 = vmatpush1.msra.mxu0 0.0
        %2813 = vmatprep.subr.mxu0 0.0
        %2814 = vmatpush1.msra.mxu0 0.0
        %2815 = vmatprep.subr.mxu0 0.0
        %2816 = vmatpush1.msra.mxu0 0.0
        %2817 = vmatprep.subr.mxu0 0.0
        %2818 = vmatpush1.msra.mxu0 0.0
        %2819 = vmatprep.subr.mxu0 0.0
        %2820 = vmatpush1.msra.mxu0 0.0
        %2821 = vmatprep.subr.mxu0 0.0
        %2822 = vmatpush1.msra.mxu0 0.0
        %2823 = vmatprep.subr.mxu0 0.0
        %2824 = vmatpush1.msra.mxu0 0.0
        %2825 = vmatprep.subr.mxu0 0.0
        %2826 = vmatpush1.msra.mxu0 0.0
        %2827 = vmatprep.subr.mxu0 0.0
        %2828 = vmatpush1.msra.mxu0 0.0
        %2829 = vmatprep.subr.mxu0 0.0
        %2830 = vmatpush1.msra.mxu0 0.0
        %2831 = vmatprep.subr.mxu0 0.0
        %2832 = vmatpush1.msra.mxu0 0.0
        %2833 = vmatprep.subr.mxu0 0.0
        %2834 = vmatpush1.msra.mxu0 0.0
        %2835 = vmatprep.subr.mxu0 0.0
        %2836 = vmatpush1.msra.mxu0 0.0
        %2837 = vmatprep.subr.mxu0 0.0
        %2838 = vmatpush1.msra.mxu0 0.0
        %2839 = vmatprep.subr.mxu0 0.0
        %2840 = vmatpush1.msra.mxu0 0.0
        %2841 = vmatprep.subr.mxu0 0.0
        %2842 = vmatpush1.msra.mxu0 0.0
        %2843 = vmatprep.subr.mxu0 0.0
        %2844 = vmatpush1.msra.mxu0 0.0
        %2845 = vmatprep.subr.mxu0 0.0
        %2846 = vmatpush1.msra.mxu0 0.0
        %2847 = vmatprep.subr.mxu0 0.0
        %2848 = vmatpush1.msra.mxu0 0.0
        %2849 = vmatprep.subr.mxu0 0.0
        %2850 = vmatpush1.msra.mxu0 0.0
        %2851 = vmatprep.subr.mxu0 0.0
        %2852 = vmatpush1.msra.mxu0 0.0
        %2853 = vmatprep.subr.mxu0 0.0
        %2854 = vmatpush1.msra.mxu0 0.0
        %2855 = vmatprep.subr.mxu0 0.0
        %2856 = vmatpush1.msra.mxu0 0.0
        %2857 = vmatprep.subr.mxu0 0.0
        %2858 = vmatpush1.msra.mxu0 0.0
        %2859 = vmatprep.mubr.f32.mxu0 0.0
        %2860 = vmatmul.mubr.f32.gmra.mrb[0].mxu0 %v2787
        %v2861 = vpop.f32.mrb[0].mxu0
        %v2862 = vadd.f32 0.0, %v2861
        %v2863 = vpop.f32.mrb[0].mxu0
        %v2864 = vadd.f32 0.0, %v2863
        %2865 = vdwg.mxu0
        %v2866 = vadd.f32 %v2774, %v2862
        %v2867 = vadd.f32 %v2775, %v2864
        %2868 = vrot.lane.b32.xlu0 %v2141, 111
        %v2869 = vpop.permute.xlu0 %2868
        %2870 = vrot.lane.b32.xlu0 %v2143, 111
        %v2871 = vpop.permute.xlu0 %2870
        %v2872 = vsel %vm1165, %v2869, %v2871
        %v2873 = vsel %vm1165, %v2871, %v2869
        %v2874 = vmul.f32 %v2872, %v1174
        %v2875 = vmul.f32 %v2873, %v1178
        %s2876 = scalar_lea.vmem %s6, 32
        %v2877 = vld [vmem:[%s2876] sm:$0x7]
        %v2879 = vsel %vm2164, %v2877, 0
        %v2882 = vsel %vm2168, %v2874, 0
        %v2885 = vsel %vm2168, %v2875, 0
        %2887 = vmatprep.subr.mxu0 %v2885
        %2888 = vmatpush1.msra.mxu0 %v2882
        %2889 = vmatprep.subr.mxu0 0.0
        %2890 = vmatpush1.msra.mxu0 0.0
        %2891 = vmatprep.subr.mxu0 0.0
        %2892 = vmatpush1.msra.mxu0 0.0
        %2893 = vmatprep.subr.mxu0 0.0
        %2894 = vmatpush1.msra.mxu0 0.0
        %2895 = vmatprep.subr.mxu0 0.0
        %2896 = vmatpush1.msra.mxu0 0.0
        %2897 = vmatprep.subr.mxu0 0.0
        %2898 = vmatpush1.msra.mxu0 0.0
        %2899 = vmatprep.subr.mxu0 0.0
        %2900 = vmatpush1.msra.mxu0 0.0
        %2901 = vmatprep.subr.mxu0 0.0
        %2902 = vmatpush1.msra.mxu0 0.0
        %2903 = vmatprep.subr.mxu0 0.0
        %2904 = vmatpush1.msra.mxu0 0.0
        %2905 = vmatprep.subr.mxu0 0.0
        %2906 = vmatpush1.msra.mxu0 0.0
        %2907 = vmatprep.subr.mxu0 0.0
        %2908 = vmatpush1.msra.mxu0 0.0
        %2909 = vmatprep.subr.mxu0 0.0
        %2910 = vmatpush1.msra.mxu0 0.0
        %2911 = vmatprep.subr.mxu0 0.0
        %2912 = vmatpush1.msra.mxu0 0.0
        %2913 = vmatprep.subr.mxu0 0.0
        %2914 = vmatpush1.msra.mxu0 0.0
        %2915 = vmatprep.subr.mxu0 0.0
        %2916 = vmatpush1.msra.mxu0 0.0
        %2917 = vmatprep.subr.mxu0 0.0
        %2918 = vmatpush1.msra.mxu0 0.0
        %2919 = vmatprep.subr.mxu0 0.0
        %2920 = vmatpush1.msra.mxu0 0.0
        %2921 = vmatprep.subr.mxu0 0.0
        %2922 = vmatpush1.msra.mxu0 0.0
        %2923 = vmatprep.subr.mxu0 0.0
        %2924 = vmatpush1.msra.mxu0 0.0
        %2925 = vmatprep.subr.mxu0 0.0
        %2926 = vmatpush1.msra.mxu0 0.0
        %2927 = vmatprep.subr.mxu0 0.0
        %2928 = vmatpush1.msra.mxu0 0.0
        %2929 = vmatprep.subr.mxu0 0.0
        %2930 = vmatpush1.msra.mxu0 0.0
        %2931 = vmatprep.subr.mxu0 0.0
        %2932 = vmatpush1.msra.mxu0 0.0
        %2933 = vmatprep.subr.mxu0 0.0
        %2934 = vmatpush1.msra.mxu0 0.0
        %2935 = vmatprep.subr.mxu0 0.0
        %2936 = vmatpush1.msra.mxu0 0.0
        %2937 = vmatprep.subr.mxu0 0.0
        %2938 = vmatpush1.msra.mxu0 0.0
        %2939 = vmatprep.subr.mxu0 0.0
        %2940 = vmatpush1.msra.mxu0 0.0
        %2941 = vmatprep.subr.mxu0 0.0
        %2942 = vmatpush1.msra.mxu0 0.0
        %2943 = vmatprep.subr.mxu0 0.0
        %2944 = vmatpush1.msra.mxu0 0.0
        %2945 = vmatprep.subr.mxu0 0.0
        %2946 = vmatpush1.msra.mxu0 0.0
        %2947 = vmatprep.subr.mxu0 0.0
        %2948 = vmatpush1.msra.mxu0 0.0
        %2949 = vmatprep.subr.mxu0 0.0
        %2950 = vmatpush1.msra.mxu0 0.0
        %2951 = vmatprep.mubr.f32.mxu0 0.0
        %2952 = vmatmul.mubr.f32.gmra.mrb[0].mxu0 %v2879
        %v2953 = vpop.f32.mrb[0].mxu0
        %v2954 = vadd.f32 0.0, %v2953
        %v2955 = vpop.f32.mrb[0].mxu0
        %v2956 = vadd.f32 0.0, %v2955
        %2957 = vdwg.mxu0
        %v2958 = vadd.f32 %v2866, %v2954
        %v2959 = vadd.f32 %v2867, %v2956
        %v2960 = vadd.f32 %v2137, %v2958
        %v2961 = vadd.f32 %v2139, %v2959
        %v2964 = vcombine.low %v2960, %v2961
        %2966 = vst [vmem:[%s315] sm:$0x77] %v2964
        %s2967 = sand.u32 %s208, 1
        %s2968 = scalar_lea.sflag [#allocation3], %s2967
        %s2969 = sand.u32 %s208, 1
        %s2970 = smul.addr %s2969, 8
        %s2971 = scalar_lea.vmem [#allocation2], %s2970
        // Predicated region
        $region53: #{tpu_custom_call.1} parent=51 // pred_check
          %p2972 = pneg %p218
        $region54: #{tpu_custom_call.1} parent=51 // pred_check_branch
          %2974 = sbr.rel (%p2972) target = $region56
        $region55: #{tpu_custom_call.1} parent=51 // pred_region
          %s2975 = smul.u32 2, %s22
          %s2977 = ssub.s32 128, 128
          %2978 = vsyncadd %s2968, %s2977
          %s2979 = smul.addr %s2975, 64
          %s2980 = scalar_lea.hbm %s8, %s2979
          %s2982 = sshll.u32 %s2971, 4
          %s2983 = int_to_ptr.vmem [resolvable:$true] %s2982
          %2985 = dma.vmem_to_hbm [thread:$0]  %s2983, 128, %s2980, %s2968
        $region56: #{tpu_custom_call.1} parent=51 // pred_fallthru
          _
      $region52: #{tpu_custom_call.1} parent=5 // pred_fallthru
        _
      %p2986 = scmp.le.s32.totalorder 2, %s17
      // Predicated region
      $region57: #{tpu_custom_call.1} parent=5 // pred_check
        %p2987 = pneg %p2986
      $region58: #{tpu_custom_call.1} parent=5 // pred_check_branch
        %2989 = sbr.rel (%p2987) target = $region60
      $region59: #{tpu_custom_call.1} parent=5 // pred_region
        %s2990 = ssub.s32 %s17, 2
        // Predicated region
        $region61: #{tpu_custom_call.1} parent=59 // pred_check
          %p2991 = pneg %p224
        $region62: #{tpu_custom_call.1} parent=59 // pred_check_branch
          %2993 = sbr.rel (%p2991) target = $region64
        $region63: #{tpu_custom_call.1} parent=59 // pred_region
          %s2994 = sand.u32 %s209, 1
          %s2995 = scalar_lea.sflag [#allocation3], %s2994
          %s2996 = sand.u32 %s209, 1
          %s2997 = smul.addr %s2996, 8
          %s2998 = scalar_lea.vmem [#allocation2], %s2997
          %2999 = dma.done %s2995, 128
        $region64: #{tpu_custom_call.1} parent=59 // pred_fallthru
          _
      $region60: #{tpu_custom_call.1} parent=5 // pred_fallthru
        _
    $region6: #{tpu_custom_call.1} parent=1 // loop_footer
      %s21 = sadd.s32 1, %s17
    $region7: #{tpu_custom_call.1} parent=1 // loop_footer_branch
      %16 = sbr.rel target = $region3
    $region8: #{tpu_custom_call.1} parent=1 // loop_exit
      _
    %3000 = vsyncpa [#allocation3], 1
    %s3001 = scalar_lea.sflag [#allocation3], 1
    %3002 = vsyncpa %s3001, 1

</llo_original>
